<compile_context>
chip_gen: v7x
topology: tpu7x:2x2x1
jax: 0.10.0
libtpu: 0.0.40
codegen_flags: <defaults>
</compile_context>

<pallas_src>
import jax
import jax.numpy as jnp
from jax import lax
from jax.experimental import pallas as pl
from jax.experimental.pallas import tpu as pltpu


# ---------------------------------------------------------------------------
# Kernels
# ---------------------------------------------------------------------------

def gru_recurrent_kernel(gi_ref, h0_ref, whh_ref, bhn_ref,
                         hseq_ref, hN_ref, h_scr):
    """One grid step == one block of TB timesteps.

    gi_ref   : (TB, B, 3H)  precomputed input-gate contribution (+ fused bias)
    h0_ref   : (B, H)       initial hidden state
    whh_ref  : (H, 3H)      hidden->gates weight (transposed; gate order r,z,n)
    bhn_ref  : (1, H)       b_hh for the n-gate only (must stay inside r*(...))
    hseq_ref : (TB, B, H)   per-step hidden states (output)
    hN_ref   : (B, H)       final hidden state (written every grid step)
    h_scr    : (B, H)       VMEM scratch carrying h across grid steps
    """
    H = h_scr.shape[-1]
    TB = gi_ref.shape[0]

    @pl.when(pl.program_id(0) == 0)
    def _():
        h_scr[...] = h0_ref[...]

    def step(t, h):
        gi = gi_ref[t]                                             # [B, 3H] f32
        # Only matmul left on the serial critical path.
        gh = jnp.dot(h.astype(whh_ref.dtype), whh_ref[...],
                     preferred_element_type=jnp.float32)           # [B, 3H] f32
        rz = jax.nn.sigmoid(gi[:, :2 * H] + gh[:, :2 * H])
        r = rz[:, :H]
        z = rz[:, H:]
        n = jnp.tanh(gi[:, 2 * H:] + r * (gh[:, 2 * H:] + bhn_ref[...]))
        h_new = (1.0 - z) * n + z * h                              # [B, H]
        hseq_ref[t] = h_new
        return h_new

    h_last = lax.fori_loop(0, TB, step, h_scr[...], unroll=True)
    h_scr[...] = h_last
    hN_ref[...] = h_last          # written every grid iteration (robust pattern)


def dense_head_kernel(h_ref, w_ref, b_ref, o_ref):
    """Logits for one row tile: (RM, H) @ (H, V) + (1, V)."""
    o_ref[...] = (jnp.dot(h_ref[...].astype(w_ref.dtype), w_ref[...],
                          preferred_element_type=jnp.float32)
                  + b_ref[...]).astype(o_ref.dtype)


# ---------------------------------------------------------------------------
# Wrapper (mirrors GRUModel.forward)
# ---------------------------------------------------------------------------

def _pick_block(n, max_block, align=1):
    """Largest divisor of n that is <= max_block (and a multiple of `align`),
    falling back to n (full extent is always a legal block)."""
    if n <= max_block:
        return n
    start = max_block - (max_block % align)
    for b in range(start, 0, -align):
        if n % b == 0:
            return b
    return n


def gru_lm_forward(X, state, params, vocab_size, *,
                   weight_dtype=jnp.float32, time_block=None, row_block=None):
    """X: int32 [batch, seq]; state: f32 [1, batch, hidden].

    Returns (logits [seq*batch, vocab], new_state [1, batch, hidden]),
    matching `output = dense(Y.view(-1, H))` with time-major row order.
    """
    B, S = X.shape
    H = params["w_hh"].shape[1]           # w_hh: (3H, H)
    V = vocab_size
    assert params["w_hh"].shape[0] == 3 * H
    assert params["w_ih"].shape == (3 * H, V)
    f32 = jnp.float32

    # ---- wrapper-side precompute (hoisted off the serial recurrence) --------
    X_t = X.T                                             # [S, B] time-major
    wih_T = params["w_ih"].T.astype(f32)                  # [V, 3H]
    whh_T = params["w_hh"].T.astype(weight_dtype)         # [H, 3H]
    wd_T = params["w_dense"].T.astype(weight_dtype)       # [H, V]
    bd = params["b_dense"].reshape(1, V).astype(f32)      # [1, V]

    # Fold b_ih fully and b_hh's r/z lanes into the gathered input gates.
    b_fold = (params["b_ih"]
              + jnp.concatenate([params["b_hh"][:2 * H],
                                 jnp.zeros((H,), f32)])).astype(f32)   # [3H]
    b_hn = params["b_hh"][2 * H:].reshape(1, H).astype(f32)            # [1, H]

    # one_hot(X) @ W_ih^T  ==  row gather of W_ih^T  (exact, no f32 one-hot).
    gi_all = jnp.take(wih_T, X_t, axis=0).astype(f32) + b_fold          # [S,B,3H]

    h0 = state[0].astype(f32)                                           # [B, H]

    # ---- recurrent kernel: sequential over time blocks ---------------------
    TB = time_block or _pick_block(S, 32)
    grid_t = S // TB

    hseq, h_final = pl.pallas_call(
        gru_recurrent_kernel,
        out_shape=(
            jax.ShapeDtypeStruct((S, B, H), f32),
            jax.ShapeDtypeStruct((B, H), f32),
        ),
        grid_spec=pltpu.PrefetchScalarGridSpec(
            num_scalar_prefetch=0,
            grid=(grid_t,),
            in_specs=[
                pl.BlockSpec((TB, B, 3 * H), lambda i: (i, 0, 0)),   # gi block
                pl.BlockSpec((B, H), lambda i: (0, 0)),              # h0
                pl.BlockSpec((H, 3 * H), lambda i: (0, 0)),          # W_hh^T
                pl.BlockSpec((1, H), lambda i: (0, 0)),              # b_hh (n)
            ],
            out_specs=[
                pl.BlockSpec((TB, B, H), lambda i: (i, 0, 0)),       # h per step
                pl.BlockSpec((B, H), lambda i: (0, 0)),              # final h
            ],
            scratch_shapes=[pltpu.VMEM((B, H), f32)],
        ),
        compiler_params=pltpu.CompilerParams(
            dimension_semantics=("arbitrary",),
        ),
    )(gi_all, h0, whh_T, b_hn)

    # ---- dense head: one big matmul, parallel over row tiles ---------------
    SB = S * B
    h2d = hseq.reshape(SB, H)
    RM = row_block or _pick_block(SB, 256, align=8)

    logits = pl.pallas_call(
        dense_head_kernel,
        out_shape=jax.ShapeDtypeStruct((SB, V), f32),
        grid_spec=pltpu.PrefetchScalarGridSpec(
            num_scalar_prefetch=0,
            grid=(SB // RM,),
            in_specs=[
                pl.BlockSpec((RM, H), lambda i: (i, 0)),
                pl.BlockSpec((H, V), lambda i: (0, 0)),
                pl.BlockSpec((1, V), lambda i: (0, 0)),
            ],
            out_specs=pl.BlockSpec((RM, V), lambda i: (i, 0)),
        ),
        compiler_params=pltpu.CompilerParams(
            dimension_semantics=("parallel",),
        ),
    )(h2d, wd_T, bd)

    return logits, h_final[None]


# ---------------------------------------------------------------------------
# Pure-JAX reference (PyTorch nn.GRU + Linear semantics)
# ---------------------------------------------------------------------------

def gru_lm_reference(X, state, params, vocab_size):
    H = params["w_hh"].shape[1]
    hp = lax.Precision.HIGHEST
    wih_T = params["w_ih"].T.astype(jnp.float32)
    whh_T = params["w_hh"].T.astype(jnp.float32)
    bih, bhh = params["b_ih"], params["b_hh"]

    x_seq = jax.nn.one_hot(X.T, vocab_size, dtype=jnp.float32)   # [S, B, V]

    def step(h, x_t):
        gi = jnp.dot(x_t, wih_T, precision=hp) + bih
        gh = jnp.dot(h, whh_T, precision=hp) + bhh
        r = jax.nn.sigmoid(gi[:, :H] + gh[:, :H])
        z = jax.nn.sigmoid(gi[:, H:2 * H] + gh[:, H:2 * H])
        n = jnp.tanh(gi[:, 2 * H:] + r * gh[:, 2 * H:])
        h_new = (1.0 - z) * n + z * h
        return h_new, h_new

    h_last, Y = lax.scan(step, state[0], x_seq)
    S, B, _ = Y.shape
    out = jnp.dot(Y.reshape(S * B, H), params["w_dense"].T, precision=hp) \
        + params["b_dense"]
    return out, h_last[None]


def init_params(key, vocab_size, hidden):
    """PyTorch-style uniform(-1/sqrt(H), 1/sqrt(H)) init; gate order r, z, n."""
    ks = jax.random.split(key, 6)
    bound = 1.0 / jnp.sqrt(hidden)
    u = lambda k, shape: jax.random.uniform(k, shape, jnp.float32, -bound, bound)
    return {
        "w_ih": u(ks[0], (3 * hidden, vocab_size)),
        "w_hh": u(ks[1], (3 * hidden, hidden)),
        "b_ih": u(ks[2], (3 * hidden,)),
        "b_hh": u(ks[3], (3 * hidden,)),
        "w_dense": u(ks[4], (vocab_size, hidden)),
        "b_dense": u(ks[5], (vocab_size,)),
    }


if __name__ == "__main__":
    # Small, tile-friendly shapes consistent with the module's forward
    # (hidden_num=256 as in the spec; small vocab / batch / seq for the demo).
    VOCAB = 128
    HIDDEN = 256
    BATCH = 8
    SEQ = 8

    key = jax.random.PRNGKey(0)
    k_params, k_x = jax.random.split(key)

    params = init_params(k_params, VOCAB, HIDDEN)
    X = jax.random.randint(k_x, (BATCH, SEQ), 0, VOCAB, dtype=jnp.int32)
    state0 = jnp.zeros((1, BATCH, HIDDEN), jnp.float32)

    # f32 path (matches the PyTorch module's numerics).
    out, new_state = gru_lm_forward(X, state0, params, VOCAB)
    out = jax.block_until_ready(out)
    new_state = jax.block_until_ready(new_state)

    out_ref, state_ref = gru_lm_reference(X, state0, params, VOCAB)
    assert out.shape == (SEQ * BATCH, VOCAB)
    assert new_state.shape == (1, BATCH, HIDDEN)
    assert jnp.allclose(out, out_ref, atol=1e-2, rtol=1e-2), \
        float(jnp.max(jnp.abs(out - out_ref)))
    assert jnp.allclose(new_state, state_ref, atol=1e-2, rtol=1e-2)

    # bf16-weight path (v6e/v7x MXU-native; f32 accumulation & gate math).
    out_bf, state_bf = gru_lm_forward(X, state0, params, VOCAB,
                                      weight_dtype=jnp.bfloat16)
    out_bf = jax.block_until_ready(out_bf)
    assert out_bf.shape == (SEQ * BATCH, VOCAB)
    assert jnp.allclose(out_bf, out_ref, atol=0.1, rtol=0.1)

    print("KERNEL_OK")
</pallas_src>

<mosaic_0001>
module attributes {stable_mosaic.version = 11 : i64} {
  func.func @gru_recurrent_kernel(%arg0: i32, %arg1: memref<8x8x768xf32, #tpu.memory_space<vmem>>, %arg2: memref<8x256xf32, #tpu.memory_space<vmem>>, %arg3: memref<256x768xf32, #tpu.memory_space<vmem>>, %arg4: memref<1x256xf32, #tpu.memory_space<vmem>>, %arg5: memref<8x8x256xf32, #tpu.memory_space<vmem>>, %arg6: memref<8x256xf32, #tpu.memory_space<vmem>>, %arg7: memref<8x256xf32, #tpu.memory_space<vmem>>) attributes {dimension_semantics = [#tpu.dimension_semantics<arbitrary>], iteration_bounds = array<i64: 1>, scalar_prefetch = 0 : i64, scratch_operands = 1 : i64, tpu.core_type = #tpu.core_type<tc>, window_params = [{transform_indices = @transform_0, window_bounds = array<i64: 8, 8, 768>}, {pipeline_mode = #tpu.pipeline_mode<synchronous>, transform_indices = @transform_1, window_bounds = array<i64: 8, 256>}, {pipeline_mode = #tpu.pipeline_mode<synchronous>, transform_indices = @transform_2, window_bounds = array<i64: 256, 768>}, {pipeline_mode = #tpu.pipeline_mode<synchronous>, transform_indices = @transform_3, window_bounds = array<i64: 1, 256>}, {transform_indices = @transform_4, window_bounds = array<i64: 8, 8, 256>}, {pipeline_mode = #tpu.pipeline_mode<synchronous>, transform_indices = @transform_5, window_bounds = array<i64: 8, 256>}]} {
    %c0_i32 = arith.constant 0 : i32
    %0 = arith.cmpi eq, %arg0, %c0_i32 : i32
    %1 = arith.extui %0 : i1 to i32
    %c0_i32_0 = arith.constant 0 : i32
    %2 = arith.cmpi ne, %1, %c0_i32_0 : i32
    scf.if %2 {
      %c0_94 = arith.constant 0 : index
      %c0_95 = arith.constant 0 : index
      %262 = vector.load %arg2[%c0_94, %c0_95] : memref<8x256xf32, #tpu.memory_space<vmem>>, vector<8x256xf32>
      %c0_96 = arith.constant 0 : index
      %c0_97 = arith.constant 0 : index
      %263 = vector.load %arg7[%c0_96, %c0_97] : memref<8x256xf32, #tpu.memory_space<vmem>>, vector<8x256xf32>
      tpu.vector_store %arg7[%c0_96, %c0_97], %262 {strides = array<i32>} : memref<8x256xf32, #tpu.memory_space<vmem>>, vector<8x256xf32>,
    } else {
    }
    %c0 = arith.constant 0 : index
    %c0_1 = arith.constant 0 : index
    %3 = vector.load %arg7[%c0, %c0_1] : memref<8x256xf32, #tpu.memory_space<vmem>>, vector<8x256xf32>
    %c0_i32_2 = arith.constant 0 : i32
    %4 = arith.index_cast %c0_i32_2 : i32 to index
    %c0_3 = arith.constant 0 : index
    %c0_4 = arith.constant 0 : index
    %5 = vector.load %arg1[%4, %c0_3, %c0_4] : memref<8x8x768xf32, #tpu.memory_space<vmem>>, vector<1x8x768xf32>
    %6 = vector.shape_cast %5 : vector<1x8x768xf32> to vector<8x768xf32>
    %c0_5 = arith.constant 0 : index
    %c0_6 = arith.constant 0 : index
    %7 = vector.load %arg3[%c0_5, %c0_6] : memref<256x768xf32, #tpu.memory_space<vmem>>, vector<256x768xf32>
    %cst = arith.constant dense<0.000000e+00> : vector<8x768xf32>
    %8 = tpu.matmul %3, %7, %cst {dimension_numbers = #tpu.dot_dimension_numbers<[1], [0], [0], [1], [0, 0, 1, 1], [], []>} : vector<8x256xf32>, vector<256x768xf32>, vector<8x768xf32> -> vector<8x768xf32>
    %9 = vector.extract_strided_slice %6 {offsets = [0, 0], sizes = [8, 512], strides = [1, 1]} : vector<8x768xf32> to vector<8x512xf32>
    %10 = vector.extract_strided_slice %8 {offsets = [0, 0], sizes = [8, 512], strides = [1, 1]} : vector<8x768xf32> to vector<8x512xf32>
    %11 = arith.addf %9, %10 : vector<8x512xf32>
    %12 = arith.negf %11 : vector<8x512xf32>
    %13 = math.exp %12 : vector<8x512xf32>
    %cst_7 = arith.constant 1.000000e+00 : f32
    %14 = vector.broadcast %cst_7 : f32 to vector<8x512xf32>
    %15 = arith.addf %14, %13 : vector<8x512xf32>
    %16 = arith.divf %14, %15 : vector<8x512xf32>
    %17 = vector.extract_strided_slice %16 {offsets = [0, 0], sizes = [8, 256], strides = [1, 1]} : vector<8x512xf32> to vector<8x256xf32>
    %18 = vector.extract_strided_slice %16 {offsets = [0, 256], sizes = [8, 256], strides = [1, 1]} : vector<8x512xf32> to vector<8x256xf32>
    %19 = vector.extract_strided_slice %6 {offsets = [0, 512], sizes = [8, 256], strides = [1, 1]} : vector<8x768xf32> to vector<8x256xf32>
    %20 = vector.extract_strided_slice %8 {offsets = [0, 512], sizes = [8, 256], strides = [1, 1]} : vector<8x768xf32> to vector<8x256xf32>
    %c0_8 = arith.constant 0 : index
    %c0_9 = arith.constant 0 : index
    %21 = vector.load %arg4[%c0_8, %c0_9] : memref<1x256xf32, #tpu.memory_space<vmem>>, vector<1x256xf32>
    %22 = vector.broadcast %21 : vector<1x256xf32> to vector<8x256xf32>
    %23 = arith.addf %20, %22 : vector<8x256xf32>
    %24 = arith.mulf %17, %23 : vector<8x256xf32>
    %25 = arith.addf %19, %24 : vector<8x256xf32>
    %26 = math.tanh %25 : vector<8x256xf32>
    %cst_10 = arith.constant 1.000000e+00 : f32
    %27 = vector.broadcast %cst_10 : f32 to vector<8x256xf32>
    %28 = arith.subf %27, %18 : vector<8x256xf32>
    %29 = arith.mulf %28, %26 : vector<8x256xf32>
    %30 = arith.mulf %18, %3 : vector<8x256xf32>
    %31 = arith.addf %29, %30 : vector<8x256xf32>
    %32 = arith.index_cast %c0_i32_2 : i32 to index
    %c0_11 = arith.constant 0 : index
    %c0_12 = arith.constant 0 : index
    %33 = vector.load %arg5[%32, %c0_11, %c0_12] : memref<8x8x256xf32, #tpu.memory_space<vmem>>, vector<1x8x256xf32>
    %34 = vector.shape_cast %33 : vector<1x8x256xf32> to vector<8x256xf32>
    %35 = vector.shape_cast %31 : vector<8x256xf32> to vector<1x8x256xf32>
    tpu.vector_store %arg5[%32, %c0_11, %c0_12], %35 {strides = array<i32>} : memref<8x8x256xf32, #tpu.memory_space<vmem>>, vector<1x8x256xf32>,
    %c1_i32 = arith.constant 1 : i32
    %36 = arith.index_cast %c1_i32 : i32 to index
    %c0_13 = arith.constant 0 : index
    %c0_14 = arith.constant 0 : index
    %37 = vector.load %arg1[%36, %c0_13, %c0_14] : memref<8x8x768xf32, #tpu.memory_space<vmem>>, vector<1x8x768xf32>
    %38 = vector.shape_cast %37 : vector<1x8x768xf32> to vector<8x768xf32>
    %c0_15 = arith.constant 0 : index
    %c0_16 = arith.constant 0 : index
    %39 = vector.load %arg3[%c0_15, %c0_16] : memref<256x768xf32, #tpu.memory_space<vmem>>, vector<256x768xf32>
    %cst_17 = arith.constant dense<0.000000e+00> : vector<8x768xf32>
    %40 = tpu.matmul %31, %39, %cst_17 {dimension_numbers = #tpu.dot_dimension_numbers<[1], [0], [0], [1], [0, 0, 1, 1], [], []>} : vector<8x256xf32>, vector<256x768xf32>, vector<8x768xf32> -> vector<8x768xf32>
    %41 = vector.extract_strided_slice %38 {offsets = [0, 0], sizes = [8, 512], strides = [1, 1]} : vector<8x768xf32> to vector<8x512xf32>
    %42 = vector.extract_strided_slice %40 {offsets = [0, 0], sizes = [8, 512], strides = [1, 1]} : vector<8x768xf32> to vector<8x512xf32>
    %43 = arith.addf %41, %42 : vector<8x512xf32>
    %44 = arith.negf %43 : vector<8x512xf32>
    %45 = math.exp %44 : vector<8x512xf32>
    %cst_18 = arith.constant 1.000000e+00 : f32
    %46 = vector.broadcast %cst_18 : f32 to vector<8x512xf32>
    %47 = arith.addf %46, %45 : vector<8x512xf32>
    %48 = arith.divf %46, %47 : vector<8x512xf32>
    %49 = vector.extract_strided_slice %48 {offsets = [0, 0], sizes = [8, 256], strides = [1, 1]} : vector<8x512xf32> to vector<8x256xf32>
    %50 = vector.extract_strided_slice %48 {offsets = [0, 256], sizes = [8, 256], strides = [1, 1]} : vector<8x512xf32> to vector<8x256xf32>
    %51 = vector.extract_strided_slice %38 {offsets = [0, 512], sizes = [8, 256], strides = [1, 1]} : vector<8x768xf32> to vector<8x256xf32>
    %52 = vector.extract_strided_slice %40 {offsets = [0, 512], sizes = [8, 256], strides = [1, 1]} : vector<8x768xf32> to vector<8x256xf32>
    %c0_19 = arith.constant 0 : index
    %c0_20 = arith.constant 0 : index
    %53 = vector.load %arg4[%c0_19, %c0_20] : memref<1x256xf32, #tpu.memory_space<vmem>>, vector<1x256xf32>
    %54 = vector.broadcast %53 : vector<1x256xf32> to vector<8x256xf32>
    %55 = arith.addf %52, %54 : vector<8x256xf32>
    %56 = arith.mulf %49, %55 : vector<8x256xf32>
    %57 = arith.addf %51, %56 : vector<8x256xf32>
    %58 = math.tanh %57 : vector<8x256xf32>
    %cst_21 = arith.constant 1.000000e+00 : f32
    %59 = vector.broadcast %cst_21 : f32 to vector<8x256xf32>
    %60 = arith.subf %59, %50 : vector<8x256xf32>
    %61 = arith.mulf %60, %58 : vector<8x256xf32>
    %62 = arith.mulf %50, %31 : vector<8x256xf32>
    %63 = arith.addf %61, %62 : vector<8x256xf32>
    %64 = arith.index_cast %c1_i32 : i32 to index
    %c0_22 = arith.constant 0 : index
    %c0_23 = arith.constant 0 : index
    %65 = vector.load %arg5[%64, %c0_22, %c0_23] : memref<8x8x256xf32, #tpu.memory_space<vmem>>, vector<1x8x256xf32>
    %66 = vector.shape_cast %65 : vector<1x8x256xf32> to vector<8x256xf32>
    %67 = vector.shape_cast %63 : vector<8x256xf32> to vector<1x8x256xf32>
    tpu.vector_store %arg5[%64, %c0_22, %c0_23], %67 {strides = array<i32>} : memref<8x8x256xf32, #tpu.memory_space<vmem>>, vector<1x8x256xf32>,
    %c2_i32 = arith.constant 2 : i32
    %68 = arith.index_cast %c2_i32 : i32 to index
    %c0_24 = arith.constant 0 : index
    %c0_25 = arith.constant 0 : index
    %69 = vector.load %arg1[%68, %c0_24, %c0_25] : memref<8x8x768xf32, #tpu.memory_space<vmem>>, vector<1x8x768xf32>
    %70 = vector.shape_cast %69 : vector<1x8x768xf32> to vector<8x768xf32>
    %c0_26 = arith.constant 0 : index
    %c0_27 = arith.constant 0 : index
    %71 = vector.load %arg3[%c0_26, %c0_27] : memref<256x768xf32, #tpu.memory_space<vmem>>, vector<256x768xf32>
    %cst_28 = arith.constant dense<0.000000e+00> : vector<8x768xf32>
    %72 = tpu.matmul %63, %71, %cst_28 {dimension_numbers = #tpu.dot_dimension_numbers<[1], [0], [0], [1], [0, 0, 1, 1], [], []>} : vector<8x256xf32>, vector<256x768xf32>, vector<8x768xf32> -> vector<8x768xf32>
    %73 = vector.extract_strided_slice %70 {offsets = [0, 0], sizes = [8, 512], strides = [1, 1]} : vector<8x768xf32> to vector<8x512xf32>
    %74 = vector.extract_strided_slice %72 {offsets = [0, 0], sizes = [8, 512], strides = [1, 1]} : vector<8x768xf32> to vector<8x512xf32>
    %75 = arith.addf %73, %74 : vector<8x512xf32>
    %76 = arith.negf %75 : vector<8x512xf32>
    %77 = math.exp %76 : vector<8x512xf32>
    %cst_29 = arith.constant 1.000000e+00 : f32
    %78 = vector.broadcast %cst_29 : f32 to vector<8x512xf32>
    %79 = arith.addf %78, %77 : vector<8x512xf32>
    %80 = arith.divf %78, %79 : vector<8x512xf32>
    %81 = vector.extract_strided_slice %80 {offsets = [0, 0], sizes = [8, 256], strides = [1, 1]} : vector<8x512xf32> to vector<8x256xf32>
    %82 = vector.extract_strided_slice %80 {offsets = [0, 256], sizes = [8, 256], strides = [1, 1]} : vector<8x512xf32> to vector<8x256xf32>
    %83 = vector.extract_strided_slice %70 {offsets = [0, 512], sizes = [8, 256], strides = [1, 1]} : vector<8x768xf32> to vector<8x256xf32>
    %84 = vector.extract_strided_slice %72 {offsets = [0, 512], sizes = [8, 256], strides = [1, 1]} : vector<8x768xf32> to vector<8x256xf32>
    %c0_30 = arith.constant 0 : index
    %c0_31 = arith.constant 0 : index
    %85 = vector.load %arg4[%c0_30, %c0_31] : memref<1x256xf32, #tpu.memory_space<vmem>>, vector<1x256xf32>
    %86 = vector.broadcast %85 : vector<1x256xf32> to vector<8x256xf32>
    %87 = arith.addf %84, %86 : vector<8x256xf32>
    %88 = arith.mulf %81, %87 : vector<8x256xf32>
    %89 = arith.addf %83, %88 : vector<8x256xf32>
    %90 = math.tanh %89 : vector<8x256xf32>
    %cst_32 = arith.constant 1.000000e+00 : f32
    %91 = vector.broadcast %cst_32 : f32 to vector<8x256xf32>
    %92 = arith.subf %91, %82 : vector<8x256xf32>
    %93 = arith.mulf %92, %90 : vector<8x256xf32>
    %94 = arith.mulf %82, %63 : vector<8x256xf32>
    %95 = arith.addf %93, %94 : vector<8x256xf32>
    %96 = arith.index_cast %c2_i32 : i32 to index
    %c0_33 = arith.constant 0 : index
    %c0_34 = arith.constant 0 : index
    %97 = vector.load %arg5[%96, %c0_33, %c0_34] : memref<8x8x256xf32, #tpu.memory_space<vmem>>, vector<1x8x256xf32>
    %98 = vector.shape_cast %97 : vector<1x8x256xf32> to vector<8x256xf32>
    %99 = vector.shape_cast %95 : vector<8x256xf32> to vector<1x8x256xf32>
    tpu.vector_store %arg5[%96, %c0_33, %c0_34], %99 {strides = array<i32>} : memref<8x8x256xf32, #tpu.memory_space<vmem>>, vector<1x8x256xf32>,
    %c3_i32 = arith.constant 3 : i32
    %100 = arith.index_cast %c3_i32 : i32 to index
    %c0_35 = arith.constant 0 : index
    %c0_36 = arith.constant 0 : index
    %101 = vector.load %arg1[%100, %c0_35, %c0_36] : memref<8x8x768xf32, #tpu.memory_space<vmem>>, vector<1x8x768xf32>
    %102 = vector.shape_cast %101 : vector<1x8x768xf32> to vector<8x768xf32>
    %c0_37 = arith.constant 0 : index
    %c0_38 = arith.constant 0 : index
    %103 = vector.load %arg3[%c0_37, %c0_38] : memref<256x768xf32, #tpu.memory_space<vmem>>, vector<256x768xf32>
    %cst_39 = arith.constant dense<0.000000e+00> : vector<8x768xf32>
    %104 = tpu.matmul %95, %103, %cst_39 {dimension_numbers = #tpu.dot_dimension_numbers<[1], [0], [0], [1], [0, 0, 1, 1], [], []>} : vector<8x256xf32>, vector<256x768xf32>, vector<8x768xf32> -> vector<8x768xf32>
    %105 = vector.extract_strided_slice %102 {offsets = [0, 0], sizes = [8, 512], strides = [1, 1]} : vector<8x768xf32> to vector<8x512xf32>
    %106 = vector.extract_strided_slice %104 {offsets = [0, 0], sizes = [8, 512], strides = [1, 1]} : vector<8x768xf32> to vector<8x512xf32>
    %107 = arith.addf %105, %106 : vector<8x512xf32>
    %108 = arith.negf %107 : vector<8x512xf32>
    %109 = math.exp %108 : vector<8x512xf32>
    %cst_40 = arith.constant 1.000000e+00 : f32
    %110 = vector.broadcast %cst_40 : f32 to vector<8x512xf32>
    %111 = arith.addf %110, %109 : vector<8x512xf32>
    %112 = arith.divf %110, %111 : vector<8x512xf32>
    %113 = vector.extract_strided_slice %112 {offsets = [0, 0], sizes = [8, 256], strides = [1, 1]} : vector<8x512xf32> to vector<8x256xf32>
    %114 = vector.extract_strided_slice %112 {offsets = [0, 256], sizes = [8, 256], strides = [1, 1]} : vector<8x512xf32> to vector<8x256xf32>
    %115 = vector.extract_strided_slice %102 {offsets = [0, 512], sizes = [8, 256], strides = [1, 1]} : vector<8x768xf32> to vector<8x256xf32>
    %116 = vector.extract_strided_slice %104 {offsets = [0, 512], sizes = [8, 256], strides = [1, 1]} : vector<8x768xf32> to vector<8x256xf32>
    %c0_41 = arith.constant 0 : index
    %c0_42 = arith.constant 0 : index
    %117 = vector.load %arg4[%c0_41, %c0_42] : memref<1x256xf32, #tpu.memory_space<vmem>>, vector<1x256xf32>
    %118 = vector.broadcast %117 : vector<1x256xf32> to vector<8x256xf32>
    %119 = arith.addf %116, %118 : vector<8x256xf32>
    %120 = arith.mulf %113, %119 : vector<8x256xf32>
    %121 = arith.addf %115, %120 : vector<8x256xf32>
    %122 = math.tanh %121 : vector<8x256xf32>
    %cst_43 = arith.constant 1.000000e+00 : f32
    %123 = vector.broadcast %cst_43 : f32 to vector<8x256xf32>
    %124 = arith.subf %123, %114 : vector<8x256xf32>
    %125 = arith.mulf %124, %122 : vector<8x256xf32>
    %126 = arith.mulf %114, %95 : vector<8x256xf32>
    %127 = arith.addf %125, %126 : vector<8x256xf32>
    %128 = arith.index_cast %c3_i32 : i32 to index
    %c0_44 = arith.constant 0 : index
    %c0_45 = arith.constant 0 : index
    %129 = vector.load %arg5[%128, %c0_44, %c0_45] : memref<8x8x256xf32, #tpu.memory_space<vmem>>, vector<1x8x256xf32>
    %130 = vector.shape_cast %129 : vector<1x8x256xf32> to vector<8x256xf32>
    %131 = vector.shape_cast %127 : vector<8x256xf32> to vector<1x8x256xf32>
    tpu.vector_store %arg5[%128, %c0_44, %c0_45], %131 {strides = array<i32>} : memref<8x8x256xf32, #tpu.memory_space<vmem>>, vector<1x8x256xf32>,
    %c4_i32 = arith.constant 4 : i32
    %132 = arith.index_cast %c4_i32 : i32 to index
    %c0_46 = arith.constant 0 : index
    %c0_47 = arith.constant 0 : index
    %133 = vector.load %arg1[%132, %c0_46, %c0_47] : memref<8x8x768xf32, #tpu.memory_space<vmem>>, vector<1x8x768xf32>
    %134 = vector.shape_cast %133 : vector<1x8x768xf32> to vector<8x768xf32>
    %c0_48 = arith.constant 0 : index
    %c0_49 = arith.constant 0 : index
    %135 = vector.load %arg3[%c0_48, %c0_49] : memref<256x768xf32, #tpu.memory_space<vmem>>, vector<256x768xf32>
    %cst_50 = arith.constant dense<0.000000e+00> : vector<8x768xf32>
    %136 = tpu.matmul %127, %135, %cst_50 {dimension_numbers = #tpu.dot_dimension_numbers<[1], [0], [0], [1], [0, 0, 1, 1], [], []>} : vector<8x256xf32>, vector<256x768xf32>, vector<8x768xf32> -> vector<8x768xf32>
    %137 = vector.extract_strided_slice %134 {offsets = [0, 0], sizes = [8, 512], strides = [1, 1]} : vector<8x768xf32> to vector<8x512xf32>
    %138 = vector.extract_strided_slice %136 {offsets = [0, 0], sizes = [8, 512], strides = [1, 1]} : vector<8x768xf32> to vector<8x512xf32>
    %139 = arith.addf %137, %138 : vector<8x512xf32>
    %140 = arith.negf %139 : vector<8x512xf32>
    %141 = math.exp %140 : vector<8x512xf32>
    %cst_51 = arith.constant 1.000000e+00 : f32
    %142 = vector.broadcast %cst_51 : f32 to vector<8x512xf32>
    %143 = arith.addf %142, %141 : vector<8x512xf32>
    %144 = arith.divf %142, %143 : vector<8x512xf32>
    %145 = vector.extract_strided_slice %144 {offsets = [0, 0], sizes = [8, 256], strides = [1, 1]} : vector<8x512xf32> to vector<8x256xf32>
    %146 = vector.extract_strided_slice %144 {offsets = [0, 256], sizes = [8, 256], strides = [1, 1]} : vector<8x512xf32> to vector<8x256xf32>
    %147 = vector.extract_strided_slice %134 {offsets = [0, 512], sizes = [8, 256], strides = [1, 1]} : vector<8x768xf32> to vector<8x256xf32>
    %148 = vector.extract_strided_slice %136 {offsets = [0, 512], sizes = [8, 256], strides = [1, 1]} : vector<8x768xf32> to vector<8x256xf32>
    %c0_52 = arith.constant 0 : index
    %c0_53 = arith.constant 0 : index
    %149 = vector.load %arg4[%c0_52, %c0_53] : memref<1x256xf32, #tpu.memory_space<vmem>>, vector<1x256xf32>
    %150 = vector.broadcast %149 : vector<1x256xf32> to vector<8x256xf32>
    %151 = arith.addf %148, %150 : vector<8x256xf32>
    %152 = arith.mulf %145, %151 : vector<8x256xf32>
    %153 = arith.addf %147, %152 : vector<8x256xf32>
    %154 = math.tanh %153 : vector<8x256xf32>
    %cst_54 = arith.constant 1.000000e+00 : f32
    %155 = vector.broadcast %cst_54 : f32 to vector<8x256xf32>
    %156 = arith.subf %155, %146 : vector<8x256xf32>
    %157 = arith.mulf %156, %154 : vector<8x256xf32>
    %158 = arith.mulf %146, %127 : vector<8x256xf32>
    %159 = arith.addf %157, %158 : vector<8x256xf32>
    %160 = arith.index_cast %c4_i32 : i32 to index
    %c0_55 = arith.constant 0 : index
    %c0_56 = arith.constant 0 : index
    %161 = vector.load %arg5[%160, %c0_55, %c0_56] : memref<8x8x256xf32, #tpu.memory_space<vmem>>, vector<1x8x256xf32>
    %162 = vector.shape_cast %161 : vector<1x8x256xf32> to vector<8x256xf32>
    %163 = vector.shape_cast %159 : vector<8x256xf32> to vector<1x8x256xf32>
    tpu.vector_store %arg5[%160, %c0_55, %c0_56], %163 {strides = array<i32>} : memref<8x8x256xf32, #tpu.memory_space<vmem>>, vector<1x8x256xf32>,
    %c5_i32 = arith.constant 5 : i32
    %164 = arith.index_cast %c5_i32 : i32 to index
    %c0_57 = arith.constant 0 : index
    %c0_58 = arith.constant 0 : index
    %165 = vector.load %arg1[%164, %c0_57, %c0_58] : memref<8x8x768xf32, #tpu.memory_space<vmem>>, vector<1x8x768xf32>
    %166 = vector.shape_cast %165 : vector<1x8x768xf32> to vector<8x768xf32>
    %c0_59 = arith.constant 0 : index
    %c0_60 = arith.constant 0 : index
    %167 = vector.load %arg3[%c0_59, %c0_60] : memref<256x768xf32, #tpu.memory_space<vmem>>, vector<256x768xf32>
    %cst_61 = arith.constant dense<0.000000e+00> : vector<8x768xf32>
    %168 = tpu.matmul %159, %167, %cst_61 {dimension_numbers = #tpu.dot_dimension_numbers<[1], [0], [0], [1], [0, 0, 1, 1], [], []>} : vector<8x256xf32>, vector<256x768xf32>, vector<8x768xf32> -> vector<8x768xf32>
    %169 = vector.extract_strided_slice %166 {offsets = [0, 0], sizes = [8, 512], strides = [1, 1]} : vector<8x768xf32> to vector<8x512xf32>
    %170 = vector.extract_strided_slice %168 {offsets = [0, 0], sizes = [8, 512], strides = [1, 1]} : vector<8x768xf32> to vector<8x512xf32>
    %171 = arith.addf %169, %170 : vector<8x512xf32>
    %172 = arith.negf %171 : vector<8x512xf32>
    %173 = math.exp %172 : vector<8x512xf32>
    %cst_62 = arith.constant 1.000000e+00 : f32
    %174 = vector.broadcast %cst_62 : f32 to vector<8x512xf32>
    %175 = arith.addf %174, %173 : vector<8x512xf32>
    %176 = arith.divf %174, %175 : vector<8x512xf32>
    %177 = vector.extract_strided_slice %176 {offsets = [0, 0], sizes = [8, 256], strides = [1, 1]} : vector<8x512xf32> to vector<8x256xf32>
    %178 = vector.extract_strided_slice %176 {offsets = [0, 256], sizes = [8, 256], strides = [1, 1]} : vector<8x512xf32> to vector<8x256xf32>
    %179 = vector.extract_strided_slice %166 {offsets = [0, 512], sizes = [8, 256], strides = [1, 1]} : vector<8x768xf32> to vector<8x256xf32>
    %180 = vector.extract_strided_slice %168 {offsets = [0, 512], sizes = [8, 256], strides = [1, 1]} : vector<8x768xf32> to vector<8x256xf32>
    %c0_63 = arith.constant 0 : index
    %c0_64 = arith.constant 0 : index
    %181 = vector.load %arg4[%c0_63, %c0_64] : memref<1x256xf32, #tpu.memory_space<vmem>>, vector<1x256xf32>
    %182 = vector.broadcast %181 : vector<1x256xf32> to vector<8x256xf32>
    %183 = arith.addf %180, %182 : vector<8x256xf32>
    %184 = arith.mulf %177, %183 : vector<8x256xf32>
    %185 = arith.addf %179, %184 : vector<8x256xf32>
    %186 = math.tanh %185 : vector<8x256xf32>
    %cst_65 = arith.constant 1.000000e+00 : f32
    %187 = vector.broadcast %cst_65 : f32 to vector<8x256xf32>
    %188 = arith.subf %187, %178 : vector<8x256xf32>
    %189 = arith.mulf %188, %186 : vector<8x256xf32>
    %190 = arith.mulf %178, %159 : vector<8x256xf32>
    %191 = arith.addf %189, %190 : vector<8x256xf32>
    %192 = arith.index_cast %c5_i32 : i32 to index
    %c0_66 = arith.constant 0 : index
    %c0_67 = arith.constant 0 : index
    %193 = vector.load %arg5[%192, %c0_66, %c0_67] : memref<8x8x256xf32, #tpu.memory_space<vmem>>, vector<1x8x256xf32>
    %194 = vector.shape_cast %193 : vector<1x8x256xf32> to vector<8x256xf32>
    %195 = vector.shape_cast %191 : vector<8x256xf32> to vector<1x8x256xf32>
    tpu.vector_store %arg5[%192, %c0_66, %c0_67], %195 {strides = array<i32>} : memref<8x8x256xf32, #tpu.memory_space<vmem>>, vector<1x8x256xf32>,
    %c6_i32 = arith.constant 6 : i32
    %196 = arith.index_cast %c6_i32 : i32 to index
    %c0_68 = arith.constant 0 : index
    %c0_69 = arith.constant 0 : index
    %197 = vector.load %arg1[%196, %c0_68, %c0_69] : memref<8x8x768xf32, #tpu.memory_space<vmem>>, vector<1x8x768xf32>
    %198 = vector.shape_cast %197 : vector<1x8x768xf32> to vector<8x768xf32>
    %c0_70 = arith.constant 0 : index
    %c0_71 = arith.constant 0 : index
    %199 = vector.load %arg3[%c0_70, %c0_71] : memref<256x768xf32, #tpu.memory_space<vmem>>, vector<256x768xf32>
    %cst_72 = arith.constant dense<0.000000e+00> : vector<8x768xf32>
    %200 = tpu.matmul %191, %199, %cst_72 {dimension_numbers = #tpu.dot_dimension_numbers<[1], [0], [0], [1], [0, 0, 1, 1], [], []>} : vector<8x256xf32>, vector<256x768xf32>, vector<8x768xf32> -> vector<8x768xf32>
    %201 = vector.extract_strided_slice %198 {offsets = [0, 0], sizes = [8, 512], strides = [1, 1]} : vector<8x768xf32> to vector<8x512xf32>
    %202 = vector.extract_strided_slice %200 {offsets = [0, 0], sizes = [8, 512], strides = [1, 1]} : vector<8x768xf32> to vector<8x512xf32>
    %203 = arith.addf %201, %202 : vector<8x512xf32>
    %204 = arith.negf %203 : vector<8x512xf32>
    %205 = math.exp %204 : vector<8x512xf32>
    %cst_73 = arith.constant 1.000000e+00 : f32
    %206 = vector.broadcast %cst_73 : f32 to vector<8x512xf32>
    %207 = arith.addf %206, %205 : vector<8x512xf32>
    %208 = arith.divf %206, %207 : vector<8x512xf32>
    %209 = vector.extract_strided_slice %208 {offsets = [0, 0], sizes = [8, 256], strides = [1, 1]} : vector<8x512xf32> to vector<8x256xf32>
    %210 = vector.extract_strided_slice %208 {offsets = [0, 256], sizes = [8, 256], strides = [1, 1]} : vector<8x512xf32> to vector<8x256xf32>
    %211 = vector.extract_strided_slice %198 {offsets = [0, 512], sizes = [8, 256], strides = [1, 1]} : vector<8x768xf32> to vector<8x256xf32>
    %212 = vector.extract_strided_slice %200 {offsets = [0, 512], sizes = [8, 256], strides = [1, 1]} : vector<8x768xf32> to vector<8x256xf32>
    %c0_74 = arith.constant 0 : index
    %c0_75 = arith.constant 0 : index
    %213 = vector.load %arg4[%c0_74, %c0_75] : memref<1x256xf32, #tpu.memory_space<vmem>>, vector<1x256xf32>
    %214 = vector.broadcast %213 : vector<1x256xf32> to vector<8x256xf32>
    %215 = arith.addf %212, %214 : vector<8x256xf32>
    %216 = arith.mulf %209, %215 : vector<8x256xf32>
    %217 = arith.addf %211, %216 : vector<8x256xf32>
    %218 = math.tanh %217 : vector<8x256xf32>
    %cst_76 = arith.constant 1.000000e+00 : f32
    %219 = vector.broadcast %cst_76 : f32 to vector<8x256xf32>
    %220 = arith.subf %219, %210 : vector<8x256xf32>
    %221 = arith.mulf %220, %218 : vector<8x256xf32>
    %222 = arith.mulf %210, %191 : vector<8x256xf32>
    %223 = arith.addf %221, %222 : vector<8x256xf32>
    %224 = arith.index_cast %c6_i32 : i32 to index
    %c0_77 = arith.constant 0 : index
    %c0_78 = arith.constant 0 : index
    %225 = vector.load %arg5[%224, %c0_77, %c0_78] : memref<8x8x256xf32, #tpu.memory_space<vmem>>, vector<1x8x256xf32>
    %226 = vector.shape_cast %225 : vector<1x8x256xf32> to vector<8x256xf32>
    %227 = vector.shape_cast %223 : vector<8x256xf32> to vector<1x8x256xf32>
    tpu.vector_store %arg5[%224, %c0_77, %c0_78], %227 {strides = array<i32>} : memref<8x8x256xf32, #tpu.memory_space<vmem>>, vector<1x8x256xf32>,
    %c7_i32 = arith.constant 7 : i32
    %228 = arith.index_cast %c7_i32 : i32 to index
    %c0_79 = arith.constant 0 : index
    %c0_80 = arith.constant 0 : index
    %229 = vector.load %arg1[%228, %c0_79, %c0_80] : memref<8x8x768xf32, #tpu.memory_space<vmem>>, vector<1x8x768xf32>
    %230 = vector.shape_cast %229 : vector<1x8x768xf32> to vector<8x768xf32>
    %c0_81 = arith.constant 0 : index
    %c0_82 = arith.constant 0 : index
    %231 = vector.load %arg3[%c0_81, %c0_82] : memref<256x768xf32, #tpu.memory_space<vmem>>, vector<256x768xf32>
    %cst_83 = arith.constant dense<0.000000e+00> : vector<8x768xf32>
    %232 = tpu.matmul %223, %231, %cst_83 {dimension_numbers = #tpu.dot_dimension_numbers<[1], [0], [0], [1], [0, 0, 1, 1], [], []>} : vector<8x256xf32>, vector<256x768xf32>, vector<8x768xf32> -> vector<8x768xf32>
    %233 = vector.extract_strided_slice %230 {offsets = [0, 0], sizes = [8, 512], strides = [1, 1]} : vector<8x768xf32> to vector<8x512xf32>
    %234 = vector.extract_strided_slice %232 {offsets = [0, 0], sizes = [8, 512], strides = [1, 1]} : vector<8x768xf32> to vector<8x512xf32>
    %235 = arith.addf %233, %234 : vector<8x512xf32>
    %236 = arith.negf %235 : vector<8x512xf32>
    %237 = math.exp %236 : vector<8x512xf32>
    %cst_84 = arith.constant 1.000000e+00 : f32
    %238 = vector.broadcast %cst_84 : f32 to vector<8x512xf32>
    %239 = arith.addf %238, %237 : vector<8x512xf32>
    %240 = arith.divf %238, %239 : vector<8x512xf32>
    %241 = vector.extract_strided_slice %240 {offsets = [0, 0], sizes = [8, 256], strides = [1, 1]} : vector<8x512xf32> to vector<8x256xf32>
    %242 = vector.extract_strided_slice %240 {offsets = [0, 256], sizes = [8, 256], strides = [1, 1]} : vector<8x512xf32> to vector<8x256xf32>
    %243 = vector.extract_strided_slice %230 {offsets = [0, 512], sizes = [8, 256], strides = [1, 1]} : vector<8x768xf32> to vector<8x256xf32>
    %244 = vector.extract_strided_slice %232 {offsets = [0, 512], sizes = [8, 256], strides = [1, 1]} : vector<8x768xf32> to vector<8x256xf32>
    %c0_85 = arith.constant 0 : index
    %c0_86 = arith.constant 0 : index
    %245 = vector.load %arg4[%c0_85, %c0_86] : memref<1x256xf32, #tpu.memory_space<vmem>>, vector<1x256xf32>
    %246 = vector.broadcast %245 : vector<1x256xf32> to vector<8x256xf32>
    %247 = arith.addf %244, %246 : vector<8x256xf32>
    %248 = arith.mulf %241, %247 : vector<8x256xf32>
    %249 = arith.addf %243, %248 : vector<8x256xf32>
    %250 = math.tanh %249 : vector<8x256xf32>
    %cst_87 = arith.constant 1.000000e+00 : f32
    %251 = vector.broadcast %cst_87 : f32 to vector<8x256xf32>
    %252 = arith.subf %251, %242 : vector<8x256xf32>
    %253 = arith.mulf %252, %250 : vector<8x256xf32>
    %254 = arith.mulf %242, %223 : vector<8x256xf32>
    %255 = arith.addf %253, %254 : vector<8x256xf32>
    %256 = arith.index_cast %c7_i32 : i32 to index
    %c0_88 = arith.constant 0 : index
    %c0_89 = arith.constant 0 : index
    %257 = vector.load %arg5[%256, %c0_88, %c0_89] : memref<8x8x256xf32, #tpu.memory_space<vmem>>, vector<1x8x256xf32>
    %258 = vector.shape_cast %257 : vector<1x8x256xf32> to vector<8x256xf32>
    %259 = vector.shape_cast %255 : vector<8x256xf32> to vector<1x8x256xf32>
    tpu.vector_store %arg5[%256, %c0_88, %c0_89], %259 {strides = array<i32>} : memref<8x8x256xf32, #tpu.memory_space<vmem>>, vector<1x8x256xf32>,
    %c8_i32 = arith.constant 8 : i32
    %c0_90 = arith.constant 0 : index
    %c0_91 = arith.constant 0 : index
    %260 = vector.load %arg7[%c0_90, %c0_91] : memref<8x256xf32, #tpu.memory_space<vmem>>, vector<8x256xf32>
    tpu.vector_store %arg7[%c0_90, %c0_91], %255 {strides = array<i32>} : memref<8x256xf32, #tpu.memory_space<vmem>>, vector<8x256xf32>,
    %c0_92 = arith.constant 0 : index
    %c0_93 = arith.constant 0 : index
    %261 = vector.load %arg6[%c0_92, %c0_93] : memref<8x256xf32, #tpu.memory_space<vmem>>, vector<8x256xf32>
    tpu.vector_store %arg6[%c0_92, %c0_93], %255 {strides = array<i32>} : memref<8x256xf32, #tpu.memory_space<vmem>>, vector<8x256xf32>,
    return
  }
  func.func @transform_0(%arg0: i32) -> (i32, i32, i32) {
    %c0_i32 = arith.constant 0 : i32
    %c0_i32_0 = arith.constant 0 : i32
    %c0_i32_1 = arith.constant 0 : i32
    return %arg0, %c0_i32, %c0_i32_0 : i32, i32, i32
  }
  func.func @transform_1(%arg0: i32) -> (i32, i32) {
    %c0_i32 = arith.constant 0 : i32
    %c0_i32_0 = arith.constant 0 : i32
    %c0_i32_1 = arith.constant 0 : i32
    return %c0_i32, %c0_i32_0 : i32, i32
  }
  func.func @transform_2(%arg0: i32) -> (i32, i32) {
    %c0_i32 = arith.constant 0 : i32
    %c0_i32_0 = arith.constant 0 : i32
    %c0_i32_1 = arith.constant 0 : i32
    return %c0_i32, %c0_i32_0 : i32, i32
  }
  func.func @transform_3(%arg0: i32) -> (i32, i32) {
    %c0_i32 = arith.constant 0 : i32
    %c0_i32_0 = arith.constant 0 : i32
    %c0_i32_1 = arith.constant 0 : i32
    return %c0_i32, %c0_i32_0 : i32, i32
  }
  func.func @transform_4(%arg0: i32) -> (i32, i32, i32) {
    %c0_i32 = arith.constant 0 : i32
    %c0_i32_0 = arith.constant 0 : i32
    %c0_i32_1 = arith.constant 0 : i32
    return %arg0, %c0_i32, %c0_i32_0 : i32, i32, i32
  }
  func.func @transform_5(%arg0: i32) -> (i32, i32) {
    %c0_i32 = arith.constant 0 : i32
    %c0_i32_0 = arith.constant 0 : i32
    %c0_i32_1 = arith.constant 0 : i32
    return %c0_i32, %c0_i32_0 : i32, i32
  }
}

</mosaic_0001>

<llo_original>
// kernel: tpu_custom_call.1
$region0: #{tpu_custom_call.1}
  #allocation0 [shape = 'u32[]', space=smem, size = 0x4, offset = 0x4, fixed_abs, tag = 'smem constant byte address 0x4 - core index']
  #allocation1 [shape = 'u32[144,128]{1,0:T(1,128)}', space=vmem, size = 0x12000, scoped, tag = 'internal scratch']
  #allocation2 [shape = 'f32[8,256]{1,0:T(8,128)}', space=vmem, size = 0x2000, scoped, tag = 'scratch operand']
  %s0 = inlined_call_operand.hbm [shape: f32[8,8,768], index: 0, kind: input, shape index: {}]
  %s1 = inlined_call_operand.hbm [shape: f32[8,256], index: 1, kind: input, shape index: {}]
  %s2 = inlined_call_operand.hbm [shape: f32[256,768], index: 2, kind: input, shape index: {}]
  %s3 = inlined_call_operand.vmem [shape: f32[1,256], index: 3, kind: input, shape index: {}]
  %s4 = inlined_call_operand.hbm [shape: f32[8,8,256], index: 4, kind: output, shape index: {0}]
  %s5 = inlined_call_operand.hbm [shape: f32[8,256], index: 5, kind: output, shape index: {1}]
  %6 = xla_tuple %s4, %s5
  %s7 = sld [smem:[#allocation0]]
  $region50: #{tpu_custom_call.1} parent=0
    _
  %s9 = ssub.s32 1, %s7
  %s10 = scalar_select 0, %s9, %s7
  $region1: #{tpu_custom_call.1} parent=0
    #allocation3 [shape = 'u8[196608]{0}', space=vmem, size = 0x30000, scoped, tag = 'input window, operand 0, single buffered']
    #allocation4 [shape = 's32[1]{0}', space=sflag, size = 0x4, scoped, tag = 'scoped memory for tpu_custom_call.1']
    #allocation5 [shape = 's32[1]{0}', space=sflag, size = 0x4, scoped, tag = 'scoped memory for tpu_custom_call.1']
    #allocation6 [shape = 'u8[8192]{0}', space=vmem, size = 0x2000, scoped, tag = 'input window, operand 1, single buffered']
    #allocation7 [shape = 's32[1]{0}', space=sflag, size = 0x4, scoped, tag = 'scoped memory for tpu_custom_call.1']
    #allocation8 [shape = 'u8[786432]{0}', space=vmem, size = 0xc0000, scoped, tag = 'input window, operand 2, single buffered']
    #allocation9 [shape = 'u8[65536]{0}', space=vmem, size = 0x10000, scoped, tag = 'output window, operand 0, single buffered']
    #allocation10 [shape = 'u8[8192]{0}', space=vmem, size = 0x2000, scoped, tag = 'output window, operand 1, single buffered']
    #allocation11 [shape = 's32[1]{0}', space=sflag, size = 0x4, scoped, tag = 'scoped memory for tpu_custom_call.1']
    %11 = vsyncpa [#allocation4], 0
    %12 = vsyncpa [#allocation7], 0
    %13 = vsyncpa [#allocation5], 0
    %14 = vsyncpa [#allocation11], 0
    // Predicated region
    $region2: #{tpu_custom_call.1} parent=1 // pred_check
      _
    $region3: #{tpu_custom_call.1} parent=1 // pred_check_branch
      %16 = sbr.rel (0) target = $region5
    $region4: #{tpu_custom_call.1} parent=1 // pred_region
      %s18 = ssub.s32 6144, 6144
      %19 = vsyncadd [#allocation4], %s18
      %s20 = sshll.u32 [#allocation3], 4
      %s21 = int_to_ptr.vmem [resolvable:$true] %s20
      %26 = dma.hbm_to_vmem [thread:$0]  %s0, 6144, %s21, [#allocation4], 768, 768, 48
    $region5: #{tpu_custom_call.1} parent=1 // pred_fallthru
      _
    // Predicated region
    $region6: #{tpu_custom_call.1} parent=1 // pred_check
      _
    $region7: #{tpu_custom_call.1} parent=1 // pred_check_branch
      %28 = sbr.rel (0) target = $region9
    $region8: #{tpu_custom_call.1} parent=1 // pred_region
      %s30 = ssub.s32 256, 256
      %31 = vsyncadd [#allocation7], %s30
      %s33 = sshll.u32 [#allocation6], 4
      %s34 = int_to_ptr.vmem [resolvable:$true] %s33
      %36 = dma.hbm_to_vmem [thread:$0]  %s1, 256, %s34, [#allocation7]
    $region9: #{tpu_custom_call.1} parent=1 // pred_fallthru
      _
    // Predicated region
    $region10: #{tpu_custom_call.1} parent=1 // pred_check
      _
    $region11: #{tpu_custom_call.1} parent=1 // pred_check_branch
      %38 = sbr.rel (0) target = $region13
    $region12: #{tpu_custom_call.1} parent=1 // pred_region
      %s40 = ssub.s32 24576, 24576
      %41 = vsyncadd [#allocation7], %s40
      %s42 = sshll.u32 [#allocation8], 4
      %s43 = int_to_ptr.vmem [resolvable:$true] %s42
      %48 = dma.hbm_to_vmem [thread:$0]  %s2, 24576, %s43, [#allocation7], 768, 768, 48
    $region13: #{tpu_custom_call.1} parent=1 // pred_fallthru
      _
    // Predicated region
    $region14: #{tpu_custom_call.1} parent=1 // pred_check
      _
    $region15: #{tpu_custom_call.1} parent=1 // pred_check_branch
      %50 = sbr.rel (0) target = $region17
    $region16: #{tpu_custom_call.1} parent=1 // pred_region
      _
    $region17: #{tpu_custom_call.1} parent=1 // pred_fallthru
      _
    // Predicated region
    $region18: #{tpu_custom_call.1} parent=1 // pred_check
      _
    $region19: #{tpu_custom_call.1} parent=1 // pred_check_branch
      %52 = sbr.rel (0) target = $region21
    $region20: #{tpu_custom_call.1} parent=1 // pred_region
      %53 = dma.done [#allocation4], 6144
    $region21: #{tpu_custom_call.1} parent=1 // pred_fallthru
      _
    // Predicated region
    $region22: #{tpu_custom_call.1} parent=1 // pred_check
      _
    $region23: #{tpu_custom_call.1} parent=1 // pred_check_branch
      %55 = sbr.rel (0) target = $region25
    $region24: #{tpu_custom_call.1} parent=1 // pred_region
      %56 = dma.done [#allocation7], 256
    $region25: #{tpu_custom_call.1} parent=1 // pred_fallthru
      _
    // Predicated region
    $region26: #{tpu_custom_call.1} parent=1 // pred_check
      _
    $region27: #{tpu_custom_call.1} parent=1 // pred_check_branch
      %58 = sbr.rel (0) target = $region29
    $region28: #{tpu_custom_call.1} parent=1 // pred_region
      %59 = dma.done [#allocation7], 24576
    $region29: #{tpu_custom_call.1} parent=1 // pred_fallthru
      _
    %p60 = scmp.eq.s32.totalorder 0, 0
    // Predicated region
    $region30: #{tpu_custom_call.1} parent=1 // pred_check
      %p61 = pneg %p60
    $region31: #{tpu_custom_call.1} parent=1 // pred_check_branch
      %63 = sbr.rel (%p61) target = $region33
    $region32: #{tpu_custom_call.1} parent=1 // pred_region
      %v64 = vld [vmem:[#allocation6] sm:$0xff]
      %v65 = vld [vmem:[#allocation6 + $0x8] sm:$0xff]
      %66 = vst [vmem:[#allocation2] sm:$0xff] %v64
      %67 = vst [vmem:[#allocation2 + $0x8] sm:$0xff] %v65
    $region33: #{tpu_custom_call.1} parent=1 // pred_fallthru
      _
    %v68 = vld [vmem:[#allocation2] sm:$0xff]
    %v69 = vld [vmem:[#allocation2 + $0x8] sm:$0xff]
    %v70 = vld [vmem:[#allocation3] sm:$0xff]
    %v71 = vld [vmem:[#allocation3 + $0x8] sm:$0xff]
    %v72 = vld [vmem:[#allocation3 + $0x10] sm:$0xff]
    %v73 = vld [vmem:[#allocation3 + $0x18] sm:$0xff]
    %v74 = vld [vmem:[#allocation3 + $0x20] sm:$0xff]
    %v75 = vld [vmem:[#allocation3 + $0x28] sm:$0xff]
    %v76 = vld [vmem:[#allocation8] sm:$0xff]
    %v77 = vld [vmem:[#allocation8 + $0x8] sm:$0xff]
    %v78 = vld [vmem:[#allocation8 + $0x10] sm:$0xff]
    %v79 = vld [vmem:[#allocation8 + $0x18] sm:$0xff]
    %v80 = vld [vmem:[#allocation8 + $0x20] sm:$0xff]
    %v81 = vld [vmem:[#allocation8 + $0x28] sm:$0xff]
    %v82 = vld [vmem:[#allocation8 + $0x30] sm:$0xff]
    %v83 = vld [vmem:[#allocation8 + $0x38] sm:$0xff]
    %v84 = vld [vmem:[#allocation8 + $0x40] sm:$0xff]
    %v85 = vld [vmem:[#allocation8 + $0x48] sm:$0xff]
    %v86 = vld [vmem:[#allocation8 + $0x50] sm:$0xff]
    %v87 = vld [vmem:[#allocation8 + $0x58] sm:$0xff]
    %v88 = vld [vmem:[#allocation8 + $0x60] sm:$0xff]
    %v89 = vld [vmem:[#allocation8 + $0x68] sm:$0xff]
    %v90 = vld [vmem:[#allocation8 + $0x70] sm:$0xff]
    %v91 = vld [vmem:[#allocation8 + $0x78] sm:$0xff]
    %v92 = vld [vmem:[#allocation8 + $0x80] sm:$0xff]
    %v93 = vld [vmem:[#allocation8 + $0x88] sm:$0xff]
    %v94 = vld [vmem:[#allocation8 + $0x90] sm:$0xff]
    %v95 = vld [vmem:[#allocation8 + $0x98] sm:$0xff]
    %v96 = vld [vmem:[#allocation8 + $0xa0] sm:$0xff]
    %v97 = vld [vmem:[#allocation8 + $0xa8] sm:$0xff]
    %v98 = vld [vmem:[#allocation8 + $0xb0] sm:$0xff]
    %v99 = vld [vmem:[#allocation8 + $0xb8] sm:$0xff]
    %v100 = vld [vmem:[#allocation8 + $0xc0] sm:$0xff]
    %v101 = vld [vmem:[#allocation8 + $0xc8] sm:$0xff]
    %v102 = vld [vmem:[#allocation8 + $0xd0] sm:$0xff]
    %v103 = vld [vmem:[#allocation8 + $0xd8] sm:$0xff]
    %v104 = vld [vmem:[#allocation8 + $0xe0] sm:$0xff]
    %v105 = vld [vmem:[#allocation8 + $0xe8] sm:$0xff]
    %v106 = vld [vmem:[#allocation8 + $0xf0] sm:$0xff]
    %v107 = vld [vmem:[#allocation8 + $0xf8] sm:$0xff]
    %v108 = vld [vmem:[#allocation8 + $0x100] sm:$0xff]
    %v109 = vld [vmem:[#allocation8 + $0x108] sm:$0xff]
    %v110 = vld [vmem:[#allocation8 + $0x110] sm:$0xff]
    %v111 = vld [vmem:[#allocation8 + $0x118] sm:$0xff]
    %v112 = vld [vmem:[#allocation8 + $0x120] sm:$0xff]
    %v113 = vld [vmem:[#allocation8 + $0x128] sm:$0xff]
    %v114 = vld [vmem:[#allocation8 + $0x130] sm:$0xff]
    %v115 = vld [vmem:[#allocation8 + $0x138] sm:$0xff]
    %v116 = vld [vmem:[#allocation8 + $0x140] sm:$0xff]
    %v117 = vld [vmem:[#allocation8 + $0x148] sm:$0xff]
    %v118 = vld [vmem:[#allocation8 + $0x150] sm:$0xff]
    %v119 = vld [vmem:[#allocation8 + $0x158] sm:$0xff]
    %v120 = vld [vmem:[#allocation8 + $0x160] sm:$0xff]
    %v121 = vld [vmem:[#allocation8 + $0x168] sm:$0xff]
    %v122 = vld [vmem:[#allocation8 + $0x170] sm:$0xff]
    %v123 = vld [vmem:[#allocation8 + $0x178] sm:$0xff]
    %v124 = vld [vmem:[#allocation8 + $0x180] sm:$0xff]
    %v125 = vld [vmem:[#allocation8 + $0x188] sm:$0xff]
    %v126 = vld [vmem:[#allocation8 + $0x190] sm:$0xff]
    %v127 = vld [vmem:[#allocation8 + $0x198] sm:$0xff]
    %v128 = vld [vmem:[#allocation8 + $0x1a0] sm:$0xff]
    %v129 = vld [vmem:[#allocation8 + $0x1a8] sm:$0xff]
    %v130 = vld [vmem:[#allocation8 + $0x1b0] sm:$0xff]
    %v131 = vld [vmem:[#allocation8 + $0x1b8] sm:$0xff]
    %v132 = vld [vmem:[#allocation8 + $0x1c0] sm:$0xff]
    %v133 = vld [vmem:[#allocation8 + $0x1c8] sm:$0xff]
    %v134 = vld [vmem:[#allocation8 + $0x1d0] sm:$0xff]
    %v135 = vld [vmem:[#allocation8 + $0x1d8] sm:$0xff]
    %v136 = vld [vmem:[#allocation8 + $0x1e0] sm:$0xff]
    %v137 = vld [vmem:[#allocation8 + $0x1e8] sm:$0xff]
    %v138 = vld [vmem:[#allocation8 + $0x1f0] sm:$0xff]
    %v139 = vld [vmem:[#allocation8 + $0x1f8] sm:$0xff]
    %v140 = vld [vmem:[#allocation8 + $0x200] sm:$0xff]
    %v141 = vld [vmem:[#allocation8 + $0x208] sm:$0xff]
    %v142 = vld [vmem:[#allocation8 + $0x210] sm:$0xff]
    %v143 = vld [vmem:[#allocation8 + $0x218] sm:$0xff]
    %v144 = vld [vmem:[#allocation8 + $0x220] sm:$0xff]
    %v145 = vld [vmem:[#allocation8 + $0x228] sm:$0xff]
    %v146 = vld [vmem:[#allocation8 + $0x230] sm:$0xff]
    %v147 = vld [vmem:[#allocation8 + $0x238] sm:$0xff]
    %v148 = vld [vmem:[#allocation8 + $0x240] sm:$0xff]
    %v149 = vld [vmem:[#allocation8 + $0x248] sm:$0xff]
    %v150 = vld [vmem:[#allocation8 + $0x250] sm:$0xff]
    %v151 = vld [vmem:[#allocation8 + $0x258] sm:$0xff]
    %v152 = vld [vmem:[#allocation8 + $0x260] sm:$0xff]
    %v153 = vld [vmem:[#allocation8 + $0x268] sm:$0xff]
    %v154 = vld [vmem:[#allocation8 + $0x270] sm:$0xff]
    %v155 = vld [vmem:[#allocation8 + $0x278] sm:$0xff]
    %v156 = vld [vmem:[#allocation8 + $0x280] sm:$0xff]
    %v157 = vld [vmem:[#allocation8 + $0x288] sm:$0xff]
    %v158 = vld [vmem:[#allocation8 + $0x290] sm:$0xff]
    %v159 = vld [vmem:[#allocation8 + $0x298] sm:$0xff]
    %v160 = vld [vmem:[#allocation8 + $0x2a0] sm:$0xff]
    %v161 = vld [vmem:[#allocation8 + $0x2a8] sm:$0xff]
    %v162 = vld [vmem:[#allocation8 + $0x2b0] sm:$0xff]
    %v163 = vld [vmem:[#allocation8 + $0x2b8] sm:$0xff]
    %v164 = vld [vmem:[#allocation8 + $0x2c0] sm:$0xff]
    %v165 = vld [vmem:[#allocation8 + $0x2c8] sm:$0xff]
    %v166 = vld [vmem:[#allocation8 + $0x2d0] sm:$0xff]
    %v167 = vld [vmem:[#allocation8 + $0x2d8] sm:$0xff]
    %v168 = vld [vmem:[#allocation8 + $0x2e0] sm:$0xff]
    %v169 = vld [vmem:[#allocation8 + $0x2e8] sm:$0xff]
    %v170 = vld [vmem:[#allocation8 + $0x2f0] sm:$0xff]
    %v171 = vld [vmem:[#allocation8 + $0x2f8] sm:$0xff]
    %v172 = vld [vmem:[#allocation8 + $0x300] sm:$0xff]
    %v173 = vld [vmem:[#allocation8 + $0x308] sm:$0xff]
    %v174 = vld [vmem:[#allocation8 + $0x310] sm:$0xff]
    %v175 = vld [vmem:[#allocation8 + $0x318] sm:$0xff]
    %v176 = vld [vmem:[#allocation8 + $0x320] sm:$0xff]
    %v177 = vld [vmem:[#allocation8 + $0x328] sm:$0xff]
    %v178 = vld [vmem:[#allocation8 + $0x330] sm:$0xff]
    %v179 = vld [vmem:[#allocation8 + $0x338] sm:$0xff]
    %v180 = vld [vmem:[#allocation8 + $0x340] sm:$0xff]
    %v181 = vld [vmem:[#allocation8 + $0x348] sm:$0xff]
    %v182 = vld [vmem:[#allocation8 + $0x350] sm:$0xff]
    %v183 = vld [vmem:[#allocation8 + $0x358] sm:$0xff]
    %v184 = vld [vmem:[#allocation8 + $0x360] sm:$0xff]
    %v185 = vld [vmem:[#allocation8 + $0x368] sm:$0xff]
    %v186 = vld [vmem:[#allocation8 + $0x370] sm:$0xff]
    %v187 = vld [vmem:[#allocation8 + $0x378] sm:$0xff]
    %v188 = vld [vmem:[#allocation8 + $0x380] sm:$0xff]
    %v189 = vld [vmem:[#allocation8 + $0x388] sm:$0xff]
    %v190 = vld [vmem:[#allocation8 + $0x390] sm:$0xff]
    %v191 = vld [vmem:[#allocation8 + $0x398] sm:$0xff]
    %v192 = vld [vmem:[#allocation8 + $0x3a0] sm:$0xff]
    %v193 = vld [vmem:[#allocation8 + $0x3a8] sm:$0xff]
    %v194 = vld [vmem:[#allocation8 + $0x3b0] sm:$0xff]
    %v195 = vld [vmem:[#allocation8 + $0x3b8] sm:$0xff]
    %v196 = vld [vmem:[#allocation8 + $0x3c0] sm:$0xff]
    %v197 = vld [vmem:[#allocation8 + $0x3c8] sm:$0xff]
    %v198 = vld [vmem:[#allocation8 + $0x3d0] sm:$0xff]
    %v199 = vld [vmem:[#allocation8 + $0x3d8] sm:$0xff]
    %v200 = vld [vmem:[#allocation8 + $0x3e0] sm:$0xff]
    %v201 = vld [vmem:[#allocation8 + $0x3e8] sm:$0xff]
    %v202 = vld [vmem:[#allocation8 + $0x3f0] sm:$0xff]
    %v203 = vld [vmem:[#allocation8 + $0x3f8] sm:$0xff]
    %v204 = vld [vmem:[#allocation8 + $0x400] sm:$0xff]
    %v205 = vld [vmem:[#allocation8 + $0x408] sm:$0xff]
    %v206 = vld [vmem:[#allocation8 + $0x410] sm:$0xff]
    %v207 = vld [vmem:[#allocation8 + $0x418] sm:$0xff]
    %v208 = vld [vmem:[#allocation8 + $0x420] sm:$0xff]
    %v209 = vld [vmem:[#allocation8 + $0x428] sm:$0xff]
    %v210 = vld [vmem:[#allocation8 + $0x430] sm:$0xff]
    %v211 = vld [vmem:[#allocation8 + $0x438] sm:$0xff]
    %v212 = vld [vmem:[#allocation8 + $0x440] sm:$0xff]
    %v213 = vld [vmem:[#allocation8 + $0x448] sm:$0xff]
    %v214 = vld [vmem:[#allocation8 + $0x450] sm:$0xff]
    %v215 = vld [vmem:[#allocation8 + $0x458] sm:$0xff]
    %v216 = vld [vmem:[#allocation8 + $0x460] sm:$0xff]
    %v217 = vld [vmem:[#allocation8 + $0x468] sm:$0xff]
    %v218 = vld [vmem:[#allocation8 + $0x470] sm:$0xff]
    %v219 = vld [vmem:[#allocation8 + $0x478] sm:$0xff]
    %v220 = vld [vmem:[#allocation8 + $0x480] sm:$0xff]
    %v221 = vld [vmem:[#allocation8 + $0x488] sm:$0xff]
    %v222 = vld [vmem:[#allocation8 + $0x490] sm:$0xff]
    %v223 = vld [vmem:[#allocation8 + $0x498] sm:$0xff]
    %v224 = vld [vmem:[#allocation8 + $0x4a0] sm:$0xff]
    %v225 = vld [vmem:[#allocation8 + $0x4a8] sm:$0xff]
    %v226 = vld [vmem:[#allocation8 + $0x4b0] sm:$0xff]
    %v227 = vld [vmem:[#allocation8 + $0x4b8] sm:$0xff]
    %v228 = vld [vmem:[#allocation8 + $0x4c0] sm:$0xff]
    %v229 = vld [vmem:[#allocation8 + $0x4c8] sm:$0xff]
    %v230 = vld [vmem:[#allocation8 + $0x4d0] sm:$0xff]
    %v231 = vld [vmem:[#allocation8 + $0x4d8] sm:$0xff]
    %v232 = vld [vmem:[#allocation8 + $0x4e0] sm:$0xff]
    %v233 = vld [vmem:[#allocation8 + $0x4e8] sm:$0xff]
    %v234 = vld [vmem:[#allocation8 + $0x4f0] sm:$0xff]
    %v235 = vld [vmem:[#allocation8 + $0x4f8] sm:$0xff]
    %v236 = vld [vmem:[#allocation8 + $0x500] sm:$0xff]
    %v237 = vld [vmem:[#allocation8 + $0x508] sm:$0xff]
    %v238 = vld [vmem:[#allocation8 + $0x510] sm:$0xff]
    %v239 = vld [vmem:[#allocation8 + $0x518] sm:$0xff]
    %v240 = vld [vmem:[#allocation8 + $0x520] sm:$0xff]
    %v241 = vld [vmem:[#allocation8 + $0x528] sm:$0xff]
    %v242 = vld [vmem:[#allocation8 + $0x530] sm:$0xff]
    %v243 = vld [vmem:[#allocation8 + $0x538] sm:$0xff]
    %v244 = vld [vmem:[#allocation8 + $0x540] sm:$0xff]
    %v245 = vld [vmem:[#allocation8 + $0x548] sm:$0xff]
    %v246 = vld [vmem:[#allocation8 + $0x550] sm:$0xff]
    %v247 = vld [vmem:[#allocation8 + $0x558] sm:$0xff]
    %v248 = vld [vmem:[#allocation8 + $0x560] sm:$0xff]
    %v249 = vld [vmem:[#allocation8 + $0x568] sm:$0xff]
    %v250 = vld [vmem:[#allocation8 + $0x570] sm:$0xff]
    %v251 = vld [vmem:[#allocation8 + $0x578] sm:$0xff]
    %v252 = vld [vmem:[#allocation8 + $0x580] sm:$0xff]
    %v253 = vld [vmem:[#allocation8 + $0x588] sm:$0xff]
    %v254 = vld [vmem:[#allocation8 + $0x590] sm:$0xff]
    %v255 = vld [vmem:[#allocation8 + $0x598] sm:$0xff]
    %v256 = vld [vmem:[#allocation8 + $0x5a0] sm:$0xff]
    %v257 = vld [vmem:[#allocation8 + $0x5a8] sm:$0xff]
    %v258 = vld [vmem:[#allocation8 + $0x5b0] sm:$0xff]
    %v259 = vld [vmem:[#allocation8 + $0x5b8] sm:$0xff]
    %v260 = vld [vmem:[#allocation8 + $0x5c0] sm:$0xff]
    %v261 = vld [vmem:[#allocation8 + $0x5c8] sm:$0xff]
    %v262 = vld [vmem:[#allocation8 + $0x5d0] sm:$0xff]
    %v263 = vld [vmem:[#allocation8 + $0x5d8] sm:$0xff]
    %v264 = vld [vmem:[#allocation8 + $0x5e0] sm:$0xff]
    %v265 = vld [vmem:[#allocation8 + $0x5e8] sm:$0xff]
    %v266 = vld [vmem:[#allocation8 + $0x5f0] sm:$0xff]
    %v267 = vld [vmem:[#allocation8 + $0x5f8] sm:$0xff]
    %268 = vmatprep.subr.mxu0 %v77
    %269 = vmatpush1.msra.mxu0 %v76
    %270 = vmatprep.subr.mxu0 %v83
    %271 = vmatpush1.msra.mxu0 %v82
    %272 = vmatprep.subr.mxu0 %v89
    %273 = vmatpush1.msra.mxu0 %v88
    %274 = vmatprep.subr.mxu0 %v95
    %275 = vmatpush1.msra.mxu0 %v94
    %276 = vmatprep.subr.mxu0 %v101
    %277 = vmatpush1.msra.mxu0 %v100
    %278 = vmatprep.subr.mxu0 %v107
    %279 = vmatpush1.msra.mxu0 %v106
    %280 = vmatprep.subr.mxu0 %v113
    %281 = vmatpush1.msra.mxu0 %v112
    %282 = vmatprep.subr.mxu0 %v119
    %283 = vmatpush1.msra.mxu0 %v118
    %284 = vmatprep.subr.mxu0 %v125
    %285 = vmatpush1.msra.mxu0 %v124
    %286 = vmatprep.subr.mxu0 %v131
    %287 = vmatpush1.msra.mxu0 %v130
    %288 = vmatprep.subr.mxu0 %v137
    %289 = vmatpush1.msra.mxu0 %v136
    %290 = vmatprep.subr.mxu0 %v143
    %291 = vmatpush1.msra.mxu0 %v142
    %292 = vmatprep.subr.mxu0 %v149
    %293 = vmatpush1.msra.mxu0 %v148
    %294 = vmatprep.subr.mxu0 %v155
    %295 = vmatpush1.msra.mxu0 %v154
    %296 = vmatprep.subr.mxu0 %v161
    %297 = vmatpush1.msra.mxu0 %v160
    %298 = vmatprep.subr.mxu0 %v167
    %299 = vmatpush1.msra.mxu0 %v166
    %300 = vmatprep.subr.mxu0 %v173
    %301 = vmatpush1.msra.mxu0 %v172
    %302 = vmatprep.subr.mxu0 %v179
    %303 = vmatpush1.msra.mxu0 %v178
    %304 = vmatprep.subr.mxu0 %v185
    %305 = vmatpush1.msra.mxu0 %v184
    %306 = vmatprep.subr.mxu0 %v191
    %307 = vmatpush1.msra.mxu0 %v190
    %308 = vmatprep.subr.mxu0 %v197
    %309 = vmatpush1.msra.mxu0 %v196
    %310 = vmatprep.subr.mxu0 %v203
    %311 = vmatpush1.msra.mxu0 %v202
    %312 = vmatprep.subr.mxu0 %v209
    %313 = vmatpush1.msra.mxu0 %v208
    %314 = vmatprep.subr.mxu0 %v215
    %315 = vmatpush1.msra.mxu0 %v214
    %316 = vmatprep.subr.mxu0 %v221
    %317 = vmatpush1.msra.mxu0 %v220
    %318 = vmatprep.subr.mxu0 %v227
    %319 = vmatpush1.msra.mxu0 %v226
    %320 = vmatprep.subr.mxu0 %v233
    %321 = vmatpush1.msra.mxu0 %v232
    %322 = vmatprep.subr.mxu0 %v239
    %323 = vmatpush1.msra.mxu0 %v238
    %324 = vmatprep.subr.mxu0 %v245
    %325 = vmatpush1.msra.mxu0 %v244
    %326 = vmatprep.subr.mxu0 %v251
    %327 = vmatpush1.msra.mxu0 %v250
    %328 = vmatprep.subr.mxu0 %v257
    %329 = vmatpush1.msra.mxu0 %v256
    %330 = vmatprep.subr.mxu0 %v263
    %331 = vmatpush1.msra.mxu0 %v262
    %332 = vmatprep.mubr.f32.mxu0 %v69
    %333 = vmatmul.mubr.f32.gmra.mrb[0].mxu0 %v68
    %v334 = vpop.f32.mrb[0].mxu0
    %v335 = vadd.f32 0.0, %v334
    %v336 = vpop.f32.mrb[0].mxu0
    %v337 = vadd.f32 0.0, %v336
    %338 = vdwg.mxu0
    %339 = vmatprep.subr.mxu0 %v79
    %340 = vmatpush1.msra.mxu0 %v78
    %341 = vmatprep.subr.mxu0 %v85
    %342 = vmatpush1.msra.mxu0 %v84
    %343 = vmatprep.subr.mxu0 %v91
    %344 = vmatpush1.msra.mxu0 %v90
    %345 = vmatprep.subr.mxu0 %v97
    %346 = vmatpush1.msra.mxu0 %v96
    %347 = vmatprep.subr.mxu0 %v103
    %348 = vmatpush1.msra.mxu0 %v102
    %349 = vmatprep.subr.mxu0 %v109
    %350 = vmatpush1.msra.mxu0 %v108
    %351 = vmatprep.subr.mxu0 %v115
    %352 = vmatpush1.msra.mxu0 %v114
    %353 = vmatprep.subr.mxu0 %v121
    %354 = vmatpush1.msra.mxu0 %v120
    %355 = vmatprep.subr.mxu0 %v127
    %356 = vmatpush1.msra.mxu0 %v126
    %357 = vmatprep.subr.mxu0 %v133
    %358 = vmatpush1.msra.mxu0 %v132
    %359 = vmatprep.subr.mxu0 %v139
    %360 = vmatpush1.msra.mxu0 %v138
    %361 = vmatprep.subr.mxu0 %v145
    %362 = vmatpush1.msra.mxu0 %v144
    %363 = vmatprep.subr.mxu0 %v151
    %364 = vmatpush1.msra.mxu0 %v150
    %365 = vmatprep.subr.mxu0 %v157
    %366 = vmatpush1.msra.mxu0 %v156
    %367 = vmatprep.subr.mxu0 %v163
    %368 = vmatpush1.msra.mxu0 %v162
    %369 = vmatprep.subr.mxu0 %v169
    %370 = vmatpush1.msra.mxu0 %v168
    %371 = vmatprep.subr.mxu0 %v175
    %372 = vmatpush1.msra.mxu0 %v174
    %373 = vmatprep.subr.mxu0 %v181
    %374 = vmatpush1.msra.mxu0 %v180
    %375 = vmatprep.subr.mxu0 %v187
    %376 = vmatpush1.msra.mxu0 %v186
    %377 = vmatprep.subr.mxu0 %v193
    %378 = vmatpush1.msra.mxu0 %v192
    %379 = vmatprep.subr.mxu0 %v199
    %380 = vmatpush1.msra.mxu0 %v198
    %381 = vmatprep.subr.mxu0 %v205
    %382 = vmatpush1.msra.mxu0 %v204
    %383 = vmatprep.subr.mxu0 %v211
    %384 = vmatpush1.msra.mxu0 %v210
    %385 = vmatprep.subr.mxu0 %v217
    %386 = vmatpush1.msra.mxu0 %v216
    %387 = vmatprep.subr.mxu0 %v223
    %388 = vmatpush1.msra.mxu0 %v222
    %389 = vmatprep.subr.mxu0 %v229
    %390 = vmatpush1.msra.mxu0 %v228
    %391 = vmatprep.subr.mxu0 %v235
    %392 = vmatpush1.msra.mxu0 %v234
    %393 = vmatprep.subr.mxu0 %v241
    %394 = vmatpush1.msra.mxu0 %v240
    %395 = vmatprep.subr.mxu0 %v247
    %396 = vmatpush1.msra.mxu0 %v246
    %397 = vmatprep.subr.mxu0 %v253
    %398 = vmatpush1.msra.mxu0 %v252
    %399 = vmatprep.subr.mxu0 %v259
    %400 = vmatpush1.msra.mxu0 %v258
    %401 = vmatprep.subr.mxu0 %v265
    %402 = vmatpush1.msra.mxu0 %v264
    %403 = vmatprep.mubr.f32.mxu0 %v69
    %404 = vmatmul.mubr.f32.gmra.mrb[0].mxu0 %v68
    %v405 = vpop.f32.mrb[0].mxu0
    %v406 = vadd.f32 0.0, %v405
    %v407 = vpop.f32.mrb[0].mxu0
    %v408 = vadd.f32 0.0, %v407
    %409 = vdwg.mxu0
    %410 = vmatprep.subr.mxu0 %v81
    %411 = vmatpush1.msra.mxu0 %v80
    %412 = vmatprep.subr.mxu0 %v87
    %413 = vmatpush1.msra.mxu0 %v86
    %414 = vmatprep.subr.mxu0 %v93
    %415 = vmatpush1.msra.mxu0 %v92
    %416 = vmatprep.subr.mxu0 %v99
    %417 = vmatpush1.msra.mxu0 %v98
    %418 = vmatprep.subr.mxu0 %v105
    %419 = vmatpush1.msra.mxu0 %v104
    %420 = vmatprep.subr.mxu0 %v111
    %421 = vmatpush1.msra.mxu0 %v110
    %422 = vmatprep.subr.mxu0 %v117
    %423 = vmatpush1.msra.mxu0 %v116
    %424 = vmatprep.subr.mxu0 %v123
    %425 = vmatpush1.msra.mxu0 %v122
    %426 = vmatprep.subr.mxu0 %v129
    %427 = vmatpush1.msra.mxu0 %v128
    %428 = vmatprep.subr.mxu0 %v135
    %429 = vmatpush1.msra.mxu0 %v134
    %430 = vmatprep.subr.mxu0 %v141
    %431 = vmatpush1.msra.mxu0 %v140
    %432 = vmatprep.subr.mxu0 %v147
    %433 = vmatpush1.msra.mxu0 %v146
    %434 = vmatprep.subr.mxu0 %v153
    %435 = vmatpush1.msra.mxu0 %v152
    %436 = vmatprep.subr.mxu0 %v159
    %437 = vmatpush1.msra.mxu0 %v158
    %438 = vmatprep.subr.mxu0 %v165
    %439 = vmatpush1.msra.mxu0 %v164
    %440 = vmatprep.subr.mxu0 %v171
    %441 = vmatpush1.msra.mxu0 %v170
    %442 = vmatprep.subr.mxu0 %v177
    %443 = vmatpush1.msra.mxu0 %v176
    %444 = vmatprep.subr.mxu0 %v183
    %445 = vmatpush1.msra.mxu0 %v182
    %446 = vmatprep.subr.mxu0 %v189
    %447 = vmatpush1.msra.mxu0 %v188
    %448 = vmatprep.subr.mxu0 %v195
    %449 = vmatpush1.msra.mxu0 %v194
    %450 = vmatprep.subr.mxu0 %v201
    %451 = vmatpush1.msra.mxu0 %v200
    %452 = vmatprep.subr.mxu0 %v207
    %453 = vmatpush1.msra.mxu0 %v206
    %454 = vmatprep.subr.mxu0 %v213
    %455 = vmatpush1.msra.mxu0 %v212
    %456 = vmatprep.subr.mxu0 %v219
    %457 = vmatpush1.msra.mxu0 %v218
    %458 = vmatprep.subr.mxu0 %v225
    %459 = vmatpush1.msra.mxu0 %v224
    %460 = vmatprep.subr.mxu0 %v231
    %461 = vmatpush1.msra.mxu0 %v230
    %462 = vmatprep.subr.mxu0 %v237
    %463 = vmatpush1.msra.mxu0 %v236
    %464 = vmatprep.subr.mxu0 %v243
    %465 = vmatpush1.msra.mxu0 %v242
    %466 = vmatprep.subr.mxu0 %v249
    %467 = vmatpush1.msra.mxu0 %v248
    %468 = vmatprep.subr.mxu0 %v255
    %469 = vmatpush1.msra.mxu0 %v254
    %470 = vmatprep.subr.mxu0 %v261
    %471 = vmatpush1.msra.mxu0 %v260
    %472 = vmatprep.subr.mxu0 %v267
    %473 = vmatpush1.msra.mxu0 %v266
    %474 = vmatprep.mubr.f32.mxu0 %v69
    %475 = vmatmul.mubr.f32.gmra.mrb[0].mxu0 %v68
    %v476 = vpop.f32.mrb[0].mxu0
    %v477 = vadd.f32 0.0, %v476
    %v478 = vpop.f32.mrb[0].mxu0
    %v479 = vadd.f32 0.0, %v478
    %480 = vdwg.mxu0
    %v481 = vadd.f32 %v70, %v335
    %v482 = vadd.f32 %v71, %v337
    %v483 = vadd.f32 %v72, %v406
    %v484 = vadd.f32 %v73, %v408
    %v485 = vxor.u32 %v481, 2147483648
    %v486 = vxor.u32 %v482, 2147483648
    %v487 = vxor.u32 %v483, 2147483648
    %v488 = vxor.u32 %v484, 2147483648
    %v489 = vmul.f32 %v485, 1.442695
    %v490 = vpow.pop %v489
    %v491 = vmul.f32 %v486, 1.442695
    %v492 = vpow.pop %v491
    %v493 = vmul.f32 %v487, 1.442695
    %v494 = vpow.pop %v493
    %v495 = vmul.f32 %v488, 1.442695
    %v496 = vpow.pop %v495
    %v497 = vadd.f32 %v490, 1.0
    %v498 = vadd.f32 %v492, 1.0
    %v499 = vadd.f32 %v494, 1.0
    %v500 = vadd.f32 %v496, 1.0
    %v501 = vrcp.pop %v497
    %v502 = vmul.f32 1.0, %v501
    %v503 = vrcp.pop %v498
    %v504 = vmul.f32 1.0, %v503
    %v505 = vrcp.pop %v499
    %v506 = vmul.f32 1.0, %v505
    %v507 = vrcp.pop %v500
    %v508 = vmul.f32 1.0, %v507
    %v509 = vld [vmem:[%s3] sm:$0x3]
    %v511 = vlaneseq
    %v512 = vshrl.u32 %v511, 7
    %v513 = vsub.s32 0, %v512
    %v514 = vrot.slane %v509, %v513
    %v515 = vlaneseq
    %v516 = vshrl.u32 %v515, 7
    %v517 = vsub.s32 1, %v516
    %v518 = vrot.slane %v509, %v517
    %v521 = vadd.f32 %v477, %v514
    %v522 = vadd.f32 %v479, %v518
    %v523 = vmul.f32 %v502, %v521
    %v524 = vmul.f32 %v504, %v522
    %v525 = vadd.f32 %v74, %v523
    %v526 = vadd.f32 %v75, %v524
    %v527 = vtanh.pop %v525
    %v528 = vtanh.pop %v526
    %v529 = vsub.f32 1.0, %v506
    %v530 = vsub.f32 1.0, %v508
    %v531 = vmul.f32 %v529, %v527
    %v532 = vmul.f32 %v530, %v528
    %v533 = vmul.f32 %v506, %v68
    %v534 = vmul.f32 %v508, %v69
    %v535 = vadd.f32 %v531, %v533
    %v536 = vadd.f32 %v532, %v534
    %537 = vst [vmem:[#allocation9] sm:$0xff] %v535
    %538 = vst [vmem:[#allocation9 + $0x8] sm:$0xff] %v536
    %s539 = scalar_lea.vmem [#allocation3], 48
    %v540 = vld [vmem:[%s539] sm:$0xff]
    %v541 = vld [vmem:[%s539 + $0x8] sm:$0xff]
    %v542 = vld [vmem:[%s539 + $0x10] sm:$0xff]
    %v543 = vld [vmem:[%s539 + $0x18] sm:$0xff]
    %v544 = vld [vmem:[%s539 + $0x20] sm:$0xff]
    %v545 = vld [vmem:[%s539 + $0x28] sm:$0xff]
    %v546 = vld [vmem:[#allocation8] sm:$0xff]
    %v547 = vld [vmem:[#allocation8 + $0x8] sm:$0xff]
    %v548 = vld [vmem:[#allocation8 + $0x10] sm:$0xff]
    %v549 = vld [vmem:[#allocation8 + $0x18] sm:$0xff]
    %v550 = vld [vmem:[#allocation8 + $0x20] sm:$0xff]
    %v551 = vld [vmem:[#allocation8 + $0x28] sm:$0xff]
    %v552 = vld [vmem:[#allocation8 + $0x30] sm:$0xff]
    %v553 = vld [vmem:[#allocation8 + $0x38] sm:$0xff]
    %v554 = vld [vmem:[#allocation8 + $0x40] sm:$0xff]
    %v555 = vld [vmem:[#allocation8 + $0x48] sm:$0xff]
    %v556 = vld [vmem:[#allocation8 + $0x50] sm:$0xff]
    %v557 = vld [vmem:[#allocation8 + $0x58] sm:$0xff]
    %v558 = vld [vmem:[#allocation8 + $0x60] sm:$0xff]
    %v559 = vld [vmem:[#allocation8 + $0x68] sm:$0xff]
    %v560 = vld [vmem:[#allocation8 + $0x70] sm:$0xff]
    %v561 = vld [vmem:[#allocation8 + $0x78] sm:$0xff]
    %v562 = vld [vmem:[#allocation8 + $0x80] sm:$0xff]
    %v563 = vld [vmem:[#allocation8 + $0x88] sm:$0xff]
    %v564 = vld [vmem:[#allocation8 + $0x90] sm:$0xff]
    %v565 = vld [vmem:[#allocation8 + $0x98] sm:$0xff]
    %v566 = vld [vmem:[#allocation8 + $0xa0] sm:$0xff]
    %v567 = vld [vmem:[#allocation8 + $0xa8] sm:$0xff]
    %v568 = vld [vmem:[#allocation8 + $0xb0] sm:$0xff]
    %v569 = vld [vmem:[#allocation8 + $0xb8] sm:$0xff]
    %v570 = vld [vmem:[#allocation8 + $0xc0] sm:$0xff]
    %v571 = vld [vmem:[#allocation8 + $0xc8] sm:$0xff]
    %v572 = vld [vmem:[#allocation8 + $0xd0] sm:$0xff]
    %v573 = vld [vmem:[#allocation8 + $0xd8] sm:$0xff]
    %v574 = vld [vmem:[#allocation8 + $0xe0] sm:$0xff]
    %v575 = vld [vmem:[#allocation8 + $0xe8] sm:$0xff]
    %v576 = vld [vmem:[#allocation8 + $0xf0] sm:$0xff]
    %v577 = vld [vmem:[#allocation8 + $0xf8] sm:$0xff]
    %v578 = vld [vmem:[#allocation8 + $0x100] sm:$0xff]
    %v579 = vld [vmem:[#allocation8 + $0x108] sm:$0xff]
    %v580 = vld [vmem:[#allocation8 + $0x110] sm:$0xff]
    %v581 = vld [vmem:[#allocation8 + $0x118] sm:$0xff]
    %v582 = vld [vmem:[#allocation8 + $0x120] sm:$0xff]
    %v583 = vld [vmem:[#allocation8 + $0x128] sm:$0xff]
    %v584 = vld [vmem:[#allocation8 + $0x130] sm:$0xff]
    %v585 = vld [vmem:[#allocation8 + $0x138] sm:$0xff]
    %v586 = vld [vmem:[#allocation8 + $0x140] sm:$0xff]
    %v587 = vld [vmem:[#allocation8 + $0x148] sm:$0xff]
    %v588 = vld [vmem:[#allocation8 + $0x150] sm:$0xff]
    %v589 = vld [vmem:[#allocation8 + $0x158] sm:$0xff]
    %v590 = vld [vmem:[#allocation8 + $0x160] sm:$0xff]
    %v591 = vld [vmem:[#allocation8 + $0x168] sm:$0xff]
    %v592 = vld [vmem:[#allocation8 + $0x170] sm:$0xff]
    %v593 = vld [vmem:[#allocation8 + $0x178] sm:$0xff]
    %v594 = vld [vmem:[#allocation8 + $0x180] sm:$0xff]
    %v595 = vld [vmem:[#allocation8 + $0x188] sm:$0xff]
    %v596 = vld [vmem:[#allocation8 + $0x190] sm:$0xff]
    %v597 = vld [vmem:[#allocation8 + $0x198] sm:$0xff]
    %v598 = vld [vmem:[#allocation8 + $0x1a0] sm:$0xff]
    %v599 = vld [vmem:[#allocation8 + $0x1a8] sm:$0xff]
    %v600 = vld [vmem:[#allocation8 + $0x1b0] sm:$0xff]
    %v601 = vld [vmem:[#allocation8 + $0x1b8] sm:$0xff]
    %v602 = vld [vmem:[#allocation8 + $0x1c0] sm:$0xff]
    %v603 = vld [vmem:[#allocation8 + $0x1c8] sm:$0xff]
    %v604 = vld [vmem:[#allocation8 + $0x1d0] sm:$0xff]
    %v605 = vld [vmem:[#allocation8 + $0x1d8] sm:$0xff]
    %v606 = vld [vmem:[#allocation8 + $0x1e0] sm:$0xff]
    %v607 = vld [vmem:[#allocation8 + $0x1e8] sm:$0xff]
    %v608 = vld [vmem:[#allocation8 + $0x1f0] sm:$0xff]
    %v609 = vld [vmem:[#allocation8 + $0x1f8] sm:$0xff]
    %v610 = vld [vmem:[#allocation8 + $0x200] sm:$0xff]
    %v611 = vld [vmem:[#allocation8 + $0x208] sm:$0xff]
    %v612 = vld [vmem:[#allocation8 + $0x210] sm:$0xff]
    %v613 = vld [vmem:[#allocation8 + $0x218] sm:$0xff]
    %v614 = vld [vmem:[#allocation8 + $0x220] sm:$0xff]
    %v615 = vld [vmem:[#allocation8 + $0x228] sm:$0xff]
    %v616 = vld [vmem:[#allocation8 + $0x230] sm:$0xff]
    %v617 = vld [vmem:[#allocation8 + $0x238] sm:$0xff]
    %v618 = vld [vmem:[#allocation8 + $0x240] sm:$0xff]
    %v619 = vld [vmem:[#allocation8 + $0x248] sm:$0xff]
    %v620 = vld [vmem:[#allocation8 + $0x250] sm:$0xff]
    %v621 = vld [vmem:[#allocation8 + $0x258] sm:$0xff]
    %v622 = vld [vmem:[#allocation8 + $0x260] sm:$0xff]
    %v623 = vld [vmem:[#allocation8 + $0x268] sm:$0xff]
    %v624 = vld [vmem:[#allocation8 + $0x270] sm:$0xff]
    %v625 = vld [vmem:[#allocation8 + $0x278] sm:$0xff]
    %v626 = vld [vmem:[#allocation8 + $0x280] sm:$0xff]
    %v627 = vld [vmem:[#allocation8 + $0x288] sm:$0xff]
    %v628 = vld [vmem:[#allocation8 + $0x290] sm:$0xff]
    %v629 = vld [vmem:[#allocation8 + $0x298] sm:$0xff]
    %v630 = vld [vmem:[#allocation8 + $0x2a0] sm:$0xff]
    %v631 = vld [vmem:[#allocation8 + $0x2a8] sm:$0xff]
    %v632 = vld [vmem:[#allocation8 + $0x2b0] sm:$0xff]
    %v633 = vld [vmem:[#allocation8 + $0x2b8] sm:$0xff]
    %v634 = vld [vmem:[#allocation8 + $0x2c0] sm:$0xff]
    %v635 = vld [vmem:[#allocation8 + $0x2c8] sm:$0xff]
    %v636 = vld [vmem:[#allocation8 + $0x2d0] sm:$0xff]
    %v637 = vld [vmem:[#allocation8 + $0x2d8] sm:$0xff]
    %v638 = vld [vmem:[#allocation8 + $0x2e0] sm:$0xff]
    %v639 = vld [vmem:[#allocation8 + $0x2e8] sm:$0xff]
    %v640 = vld [vmem:[#allocation8 + $0x2f0] sm:$0xff]
    %v641 = vld [vmem:[#allocation8 + $0x2f8] sm:$0xff]
    %v642 = vld [vmem:[#allocation8 + $0x300] sm:$0xff]
    %v643 = vld [vmem:[#allocation8 + $0x308] sm:$0xff]
    %v644 = vld [vmem:[#allocation8 + $0x310] sm:$0xff]
    %v645 = vld [vmem:[#allocation8 + $0x318] sm:$0xff]
    %v646 = vld [vmem:[#allocation8 + $0x320] sm:$0xff]
    %v647 = vld [vmem:[#allocation8 + $0x328] sm:$0xff]
    %v648 = vld [vmem:[#allocation8 + $0x330] sm:$0xff]
    %v649 = vld [vmem:[#allocation8 + $0x338] sm:$0xff]
    %v650 = vld [vmem:[#allocation8 + $0x340] sm:$0xff]
    %v651 = vld [vmem:[#allocation8 + $0x348] sm:$0xff]
    %v652 = vld [vmem:[#allocation8 + $0x350] sm:$0xff]
    %v653 = vld [vmem:[#allocation8 + $0x358] sm:$0xff]
    %v654 = vld [vmem:[#allocation8 + $0x360] sm:$0xff]
    %v655 = vld [vmem:[#allocation8 + $0x368] sm:$0xff]
    %v656 = vld [vmem:[#allocation8 + $0x370] sm:$0xff]
    %v657 = vld [vmem:[#allocation8 + $0x378] sm:$0xff]
    %v658 = vld [vmem:[#allocation8 + $0x380] sm:$0xff]
    %v659 = vld [vmem:[#allocation8 + $0x388] sm:$0xff]
    %v660 = vld [vmem:[#allocation8 + $0x390] sm:$0xff]
    %v661 = vld [vmem:[#allocation8 + $0x398] sm:$0xff]
    %v662 = vld [vmem:[#allocation8 + $0x3a0] sm:$0xff]
    %v663 = vld [vmem:[#allocation8 + $0x3a8] sm:$0xff]
    %v664 = vld [vmem:[#allocation8 + $0x3b0] sm:$0xff]
    %v665 = vld [vmem:[#allocation8 + $0x3b8] sm:$0xff]
    %v666 = vld [vmem:[#allocation8 + $0x3c0] sm:$0xff]
    %v667 = vld [vmem:[#allocation8 + $0x3c8] sm:$0xff]
    %v668 = vld [vmem:[#allocation8 + $0x3d0] sm:$0xff]
    %v669 = vld [vmem:[#allocation8 + $0x3d8] sm:$0xff]
    %v670 = vld [vmem:[#allocation8 + $0x3e0] sm:$0xff]
    %v671 = vld [vmem:[#allocation8 + $0x3e8] sm:$0xff]
    %v672 = vld [vmem:[#allocation8 + $0x3f0] sm:$0xff]
    %v673 = vld [vmem:[#allocation8 + $0x3f8] sm:$0xff]
    %v674 = vld [vmem:[#allocation8 + $0x400] sm:$0xff]
    %v675 = vld [vmem:[#allocation8 + $0x408] sm:$0xff]
    %v676 = vld [vmem:[#allocation8 + $0x410] sm:$0xff]
    %v677 = vld [vmem:[#allocation8 + $0x418] sm:$0xff]
    %v678 = vld [vmem:[#allocation8 + $0x420] sm:$0xff]
    %v679 = vld [vmem:[#allocation8 + $0x428] sm:$0xff]
    %v680 = vld [vmem:[#allocation8 + $0x430] sm:$0xff]
    %v681 = vld [vmem:[#allocation8 + $0x438] sm:$0xff]
    %v682 = vld [vmem:[#allocation8 + $0x440] sm:$0xff]
    %v683 = vld [vmem:[#allocation8 + $0x448] sm:$0xff]
    %v684 = vld [vmem:[#allocation8 + $0x450] sm:$0xff]
    %v685 = vld [vmem:[#allocation8 + $0x458] sm:$0xff]
    %v686 = vld [vmem:[#allocation8 + $0x460] sm:$0xff]
    %v687 = vld [vmem:[#allocation8 + $0x468] sm:$0xff]
    %v688 = vld [vmem:[#allocation8 + $0x470] sm:$0xff]
    %v689 = vld [vmem:[#allocation8 + $0x478] sm:$0xff]
    %v690 = vld [vmem:[#allocation8 + $0x480] sm:$0xff]
    %v691 = vld [vmem:[#allocation8 + $0x488] sm:$0xff]
    %v692 = vld [vmem:[#allocation8 + $0x490] sm:$0xff]
    %v693 = vld [vmem:[#allocation8 + $0x498] sm:$0xff]
    %v694 = vld [vmem:[#allocation8 + $0x4a0] sm:$0xff]
    %v695 = vld [vmem:[#allocation8 + $0x4a8] sm:$0xff]
    %v696 = vld [vmem:[#allocation8 + $0x4b0] sm:$0xff]
    %v697 = vld [vmem:[#allocation8 + $0x4b8] sm:$0xff]
    %v698 = vld [vmem:[#allocation8 + $0x4c0] sm:$0xff]
    %v699 = vld [vmem:[#allocation8 + $0x4c8] sm:$0xff]
    %v700 = vld [vmem:[#allocation8 + $0x4d0] sm:$0xff]
    %v701 = vld [vmem:[#allocation8 + $0x4d8] sm:$0xff]
    %v702 = vld [vmem:[#allocation8 + $0x4e0] sm:$0xff]
    %v703 = vld [vmem:[#allocation8 + $0x4e8] sm:$0xff]
    %v704 = vld [vmem:[#allocation8 + $0x4f0] sm:$0xff]
    %v705 = vld [vmem:[#allocation8 + $0x4f8] sm:$0xff]
    %v706 = vld [vmem:[#allocation8 + $0x500] sm:$0xff]
    %v707 = vld [vmem:[#allocation8 + $0x508] sm:$0xff]
    %v708 = vld [vmem:[#allocation8 + $0x510] sm:$0xff]
    %v709 = vld [vmem:[#allocation8 + $0x518] sm:$0xff]
    %v710 = vld [vmem:[#allocation8 + $0x520] sm:$0xff]
    %v711 = vld [vmem:[#allocation8 + $0x528] sm:$0xff]
    %v712 = vld [vmem:[#allocation8 + $0x530] sm:$0xff]
    %v713 = vld [vmem:[#allocation8 + $0x538] sm:$0xff]
    %v714 = vld [vmem:[#allocation8 + $0x540] sm:$0xff]
    %v715 = vld [vmem:[#allocation8 + $0x548] sm:$0xff]
    %v716 = vld [vmem:[#allocation8 + $0x550] sm:$0xff]
    %v717 = vld [vmem:[#allocation8 + $0x558] sm:$0xff]
    %v718 = vld [vmem:[#allocation8 + $0x560] sm:$0xff]
    %v719 = vld [vmem:[#allocation8 + $0x568] sm:$0xff]
    %v720 = vld [vmem:[#allocation8 + $0x570] sm:$0xff]
    %v721 = vld [vmem:[#allocation8 + $0x578] sm:$0xff]
    %v722 = vld [vmem:[#allocation8 + $0x580] sm:$0xff]
    %v723 = vld [vmem:[#allocation8 + $0x588] sm:$0xff]
    %v724 = vld [vmem:[#allocation8 + $0x590] sm:$0xff]
    %v725 = vld [vmem:[#allocation8 + $0x598] sm:$0xff]
    %v726 = vld [vmem:[#allocation8 + $0x5a0] sm:$0xff]
    %v727 = vld [vmem:[#allocation8 + $0x5a8] sm:$0xff]
    %v728 = vld [vmem:[#allocation8 + $0x5b0] sm:$0xff]
    %v729 = vld [vmem:[#allocation8 + $0x5b8] sm:$0xff]
    %v730 = vld [vmem:[#allocation8 + $0x5c0] sm:$0xff]
    %v731 = vld [vmem:[#allocation8 + $0x5c8] sm:$0xff]
    %v732 = vld [vmem:[#allocation8 + $0x5d0] sm:$0xff]
    %v733 = vld [vmem:[#allocation8 + $0x5d8] sm:$0xff]
    %v734 = vld [vmem:[#allocation8 + $0x5e0] sm:$0xff]
    %v735 = vld [vmem:[#allocation8 + $0x5e8] sm:$0xff]
    %v736 = vld [vmem:[#allocation8 + $0x5f0] sm:$0xff]
    %v737 = vld [vmem:[#allocation8 + $0x5f8] sm:$0xff]
    %738 = vmatprep.subr.mxu0 %v547
    %739 = vmatpush1.msra.mxu0 %v546
    %740 = vmatprep.subr.mxu0 %v553
    %741 = vmatpush1.msra.mxu0 %v552
    %742 = vmatprep.subr.mxu0 %v559
    %743 = vmatpush1.msra.mxu0 %v558
    %744 = vmatprep.subr.mxu0 %v565
    %745 = vmatpush1.msra.mxu0 %v564
    %746 = vmatprep.subr.mxu0 %v571
    %747 = vmatpush1.msra.mxu0 %v570
    %748 = vmatprep.subr.mxu0 %v577
    %749 = vmatpush1.msra.mxu0 %v576
    %750 = vmatprep.subr.mxu0 %v583
    %751 = vmatpush1.msra.mxu0 %v582
    %752 = vmatprep.subr.mxu0 %v589
    %753 = vmatpush1.msra.mxu0 %v588
    %754 = vmatprep.subr.mxu0 %v595
    %755 = vmatpush1.msra.mxu0 %v594
    %756 = vmatprep.subr.mxu0 %v601
    %757 = vmatpush1.msra.mxu0 %v600
    %758 = vmatprep.subr.mxu0 %v607
    %759 = vmatpush1.msra.mxu0 %v606
    %760 = vmatprep.subr.mxu0 %v613
    %761 = vmatpush1.msra.mxu0 %v612
    %762 = vmatprep.subr.mxu0 %v619
    %763 = vmatpush1.msra.mxu0 %v618
    %764 = vmatprep.subr.mxu0 %v625
    %765 = vmatpush1.msra.mxu0 %v624
    %766 = vmatprep.subr.mxu0 %v631
    %767 = vmatpush1.msra.mxu0 %v630
    %768 = vmatprep.subr.mxu0 %v637
    %769 = vmatpush1.msra.mxu0 %v636
    %770 = vmatprep.subr.mxu0 %v643
    %771 = vmatpush1.msra.mxu0 %v642
    %772 = vmatprep.subr.mxu0 %v649
    %773 = vmatpush1.msra.mxu0 %v648
    %774 = vmatprep.subr.mxu0 %v655
    %775 = vmatpush1.msra.mxu0 %v654
    %776 = vmatprep.subr.mxu0 %v661
    %777 = vmatpush1.msra.mxu0 %v660
    %778 = vmatprep.subr.mxu0 %v667
    %779 = vmatpush1.msra.mxu0 %v666
    %780 = vmatprep.subr.mxu0 %v673
    %781 = vmatpush1.msra.mxu0 %v672
    %782 = vmatprep.subr.mxu0 %v679
    %783 = vmatpush1.msra.mxu0 %v678
    %784 = vmatprep.subr.mxu0 %v685
    %785 = vmatpush1.msra.mxu0 %v684
    %786 = vmatprep.subr.mxu0 %v691
    %787 = vmatpush1.msra.mxu0 %v690
    %788 = vmatprep.subr.mxu0 %v697
    %789 = vmatpush1.msra.mxu0 %v696
    %790 = vmatprep.subr.mxu0 %v703
    %791 = vmatpush1.msra.mxu0 %v702
    %792 = vmatprep.subr.mxu0 %v709
    %793 = vmatpush1.msra.mxu0 %v708
    %794 = vmatprep.subr.mxu0 %v715
    %795 = vmatpush1.msra.mxu0 %v714
    %796 = vmatprep.subr.mxu0 %v721
    %797 = vmatpush1.msra.mxu0 %v720
    %798 = vmatprep.subr.mxu0 %v727
    %799 = vmatpush1.msra.mxu0 %v726
    %800 = vmatprep.subr.mxu0 %v733
    %801 = vmatpush1.msra.mxu0 %v732
    %802 = vmatprep.mubr.f32.mxu0 %v536
    %803 = vmatmul.mubr.f32.gmra.mrb[0].mxu0 %v535
    %v804 = vpop.f32.mrb[0].mxu0
    %v805 = vadd.f32 0.0, %v804
    %v806 = vpop.f32.mrb[0].mxu0
    %v807 = vadd.f32 0.0, %v806
    %808 = vdwg.mxu0
    %809 = vmatprep.subr.mxu0 %v549
    %810 = vmatpush1.msra.mxu0 %v548
    %811 = vmatprep.subr.mxu0 %v555
    %812 = vmatpush1.msra.mxu0 %v554
    %813 = vmatprep.subr.mxu0 %v561
    %814 = vmatpush1.msra.mxu0 %v560
    %815 = vmatprep.subr.mxu0 %v567
    %816 = vmatpush1.msra.mxu0 %v566
    %817 = vmatprep.subr.mxu0 %v573
    %818 = vmatpush1.msra.mxu0 %v572
    %819 = vmatprep.subr.mxu0 %v579
    %820 = vmatpush1.msra.mxu0 %v578
    %821 = vmatprep.subr.mxu0 %v585
    %822 = vmatpush1.msra.mxu0 %v584
    %823 = vmatprep.subr.mxu0 %v591
    %824 = vmatpush1.msra.mxu0 %v590
    %825 = vmatprep.subr.mxu0 %v597
    %826 = vmatpush1.msra.mxu0 %v596
    %827 = vmatprep.subr.mxu0 %v603
    %828 = vmatpush1.msra.mxu0 %v602
    %829 = vmatprep.subr.mxu0 %v609
    %830 = vmatpush1.msra.mxu0 %v608
    %831 = vmatprep.subr.mxu0 %v615
    %832 = vmatpush1.msra.mxu0 %v614
    %833 = vmatprep.subr.mxu0 %v621
    %834 = vmatpush1.msra.mxu0 %v620
    %835 = vmatprep.subr.mxu0 %v627
    %836 = vmatpush1.msra.mxu0 %v626
    %837 = vmatprep.subr.mxu0 %v633
    %838 = vmatpush1.msra.mxu0 %v632
    %839 = vmatprep.subr.mxu0 %v639
    %840 = vmatpush1.msra.mxu0 %v638
    %841 = vmatprep.subr.mxu0 %v645
    %842 = vmatpush1.msra.mxu0 %v644
    %843 = vmatprep.subr.mxu0 %v651
    %844 = vmatpush1.msra.mxu0 %v650
    %845 = vmatprep.subr.mxu0 %v657
    %846 = vmatpush1.msra.mxu0 %v656
    %847 = vmatprep.subr.mxu0 %v663
    %848 = vmatpush1.msra.mxu0 %v662
    %849 = vmatprep.subr.mxu0 %v669
    %850 = vmatpush1.msra.mxu0 %v668
    %851 = vmatprep.subr.mxu0 %v675
    %852 = vmatpush1.msra.mxu0 %v674
    %853 = vmatprep.subr.mxu0 %v681
    %854 = vmatpush1.msra.mxu0 %v680
    %855 = vmatprep.subr.mxu0 %v687
    %856 = vmatpush1.msra.mxu0 %v686
    %857 = vmatprep.subr.mxu0 %v693
    %858 = vmatpush1.msra.mxu0 %v692
    %859 = vmatprep.subr.mxu0 %v699
    %860 = vmatpush1.msra.mxu0 %v698
    %861 = vmatprep.subr.mxu0 %v705
    %862 = vmatpush1.msra.mxu0 %v704
    %863 = vmatprep.subr.mxu0 %v711
    %864 = vmatpush1.msra.mxu0 %v710
    %865 = vmatprep.subr.mxu0 %v717
    %866 = vmatpush1.msra.mxu0 %v716
    %867 = vmatprep.subr.mxu0 %v723
    %868 = vmatpush1.msra.mxu0 %v722
    %869 = vmatprep.subr.mxu0 %v729
    %870 = vmatpush1.msra.mxu0 %v728
    %871 = vmatprep.subr.mxu0 %v735
    %872 = vmatpush1.msra.mxu0 %v734
    %873 = vmatprep.mubr.f32.mxu0 %v536
    %874 = vmatmul.mubr.f32.gmra.mrb[0].mxu0 %v535
    %v875 = vpop.f32.mrb[0].mxu0
    %v876 = vadd.f32 0.0, %v875
    %v877 = vpop.f32.mrb[0].mxu0
    %v878 = vadd.f32 0.0, %v877
    %879 = vdwg.mxu0
    %880 = vmatprep.subr.mxu0 %v551
    %881 = vmatpush1.msra.mxu0 %v550
    %882 = vmatprep.subr.mxu0 %v557
    %883 = vmatpush1.msra.mxu0 %v556
    %884 = vmatprep.subr.mxu0 %v563
    %885 = vmatpush1.msra.mxu0 %v562
    %886 = vmatprep.subr.mxu0 %v569
    %887 = vmatpush1.msra.mxu0 %v568
    %888 = vmatprep.subr.mxu0 %v575
    %889 = vmatpush1.msra.mxu0 %v574
    %890 = vmatprep.subr.mxu0 %v581
    %891 = vmatpush1.msra.mxu0 %v580
    %892 = vmatprep.subr.mxu0 %v587
    %893 = vmatpush1.msra.mxu0 %v586
    %894 = vmatprep.subr.mxu0 %v593
    %895 = vmatpush1.msra.mxu0 %v592
    %896 = vmatprep.subr.mxu0 %v599
    %897 = vmatpush1.msra.mxu0 %v598
    %898 = vmatprep.subr.mxu0 %v605
    %899 = vmatpush1.msra.mxu0 %v604
    %900 = vmatprep.subr.mxu0 %v611
    %901 = vmatpush1.msra.mxu0 %v610
    %902 = vmatprep.subr.mxu0 %v617
    %903 = vmatpush1.msra.mxu0 %v616
    %904 = vmatprep.subr.mxu0 %v623
    %905 = vmatpush1.msra.mxu0 %v622
    %906 = vmatprep.subr.mxu0 %v629
    %907 = vmatpush1.msra.mxu0 %v628
    %908 = vmatprep.subr.mxu0 %v635
    %909 = vmatpush1.msra.mxu0 %v634
    %910 = vmatprep.subr.mxu0 %v641
    %911 = vmatpush1.msra.mxu0 %v640
    %912 = vmatprep.subr.mxu0 %v647
    %913 = vmatpush1.msra.mxu0 %v646
    %914 = vmatprep.subr.mxu0 %v653
    %915 = vmatpush1.msra.mxu0 %v652
    %916 = vmatprep.subr.mxu0 %v659
    %917 = vmatpush1.msra.mxu0 %v658
    %918 = vmatprep.subr.mxu0 %v665
    %919 = vmatpush1.msra.mxu0 %v664
    %920 = vmatprep.subr.mxu0 %v671
    %921 = vmatpush1.msra.mxu0 %v670
    %922 = vmatprep.subr.mxu0 %v677
    %923 = vmatpush1.msra.mxu0 %v676
    %924 = vmatprep.subr.mxu0 %v683
    %925 = vmatpush1.msra.mxu0 %v682
    %926 = vmatprep.subr.mxu0 %v689
    %927 = vmatpush1.msra.mxu0 %v688
    %928 = vmatprep.subr.mxu0 %v695
    %929 = vmatpush1.msra.mxu0 %v694
    %930 = vmatprep.subr.mxu0 %v701
    %931 = vmatpush1.msra.mxu0 %v700
    %932 = vmatprep.subr.mxu0 %v707
    %933 = vmatpush1.msra.mxu0 %v706
    %934 = vmatprep.subr.mxu0 %v713
    %935 = vmatpush1.msra.mxu0 %v712
    %936 = vmatprep.subr.mxu0 %v719
    %937 = vmatpush1.msra.mxu0 %v718
    %938 = vmatprep.subr.mxu0 %v725
    %939 = vmatpush1.msra.mxu0 %v724
    %940 = vmatprep.subr.mxu0 %v731
    %941 = vmatpush1.msra.mxu0 %v730
    %942 = vmatprep.subr.mxu0 %v737
    %943 = vmatpush1.msra.mxu0 %v736
    %944 = vmatprep.mubr.f32.mxu0 %v536
    %945 = vmatmul.mubr.f32.gmra.mrb[0].mxu0 %v535
    %v946 = vpop.f32.mrb[0].mxu0
    %v947 = vadd.f32 0.0, %v946
    %v948 = vpop.f32.mrb[0].mxu0
    %v949 = vadd.f32 0.0, %v948
    %950 = vdwg.mxu0
    %v951 = vadd.f32 %v540, %v805
    %v952 = vadd.f32 %v541, %v807
    %v953 = vadd.f32 %v542, %v876
    %v954 = vadd.f32 %v543, %v878
    %v955 = vxor.u32 %v951, 2147483648
    %v956 = vxor.u32 %v952, 2147483648
    %v957 = vxor.u32 %v953, 2147483648
    %v958 = vxor.u32 %v954, 2147483648
    %v959 = vmul.f32 %v955, 1.442695
    %v960 = vpow.pop %v959
    %v961 = vmul.f32 %v956, 1.442695
    %v962 = vpow.pop %v961
    %v963 = vmul.f32 %v957, 1.442695
    %v964 = vpow.pop %v963
    %v965 = vmul.f32 %v958, 1.442695
    %v966 = vpow.pop %v965
    %v967 = vadd.f32 %v960, 1.0
    %v968 = vadd.f32 %v962, 1.0
    %v969 = vadd.f32 %v964, 1.0
    %v970 = vadd.f32 %v966, 1.0
    %v971 = vrcp.pop %v967
    %v972 = vmul.f32 1.0, %v971
    %v973 = vrcp.pop %v968
    %v974 = vmul.f32 1.0, %v973
    %v975 = vrcp.pop %v969
    %v976 = vmul.f32 1.0, %v975
    %v977 = vrcp.pop %v970
    %v978 = vmul.f32 1.0, %v977
    %v979 = vld [vmem:[%s3] sm:$0x3]
    %v981 = vlaneseq
    %v982 = vshrl.u32 %v981, 7
    %v983 = vsub.s32 0, %v982
    %v984 = vrot.slane %v979, %v983
    %v985 = vlaneseq
    %v986 = vshrl.u32 %v985, 7
    %v987 = vsub.s32 1, %v986
    %v988 = vrot.slane %v979, %v987
    %v991 = vadd.f32 %v947, %v984
    %v992 = vadd.f32 %v949, %v988
    %v993 = vmul.f32 %v972, %v991
    %v994 = vmul.f32 %v974, %v992
    %v995 = vadd.f32 %v544, %v993
    %v996 = vadd.f32 %v545, %v994
    %v997 = vtanh.pop %v995
    %v998 = vtanh.pop %v996
    %v999 = vsub.f32 1.0, %v976
    %v1000 = vsub.f32 1.0, %v978
    %v1001 = vmul.f32 %v999, %v997
    %v1002 = vmul.f32 %v1000, %v998
    %v1003 = vmul.f32 %v976, %v535
    %v1004 = vmul.f32 %v978, %v536
    %v1005 = vadd.f32 %v1001, %v1003
    %v1006 = vadd.f32 %v1002, %v1004
    %s1007 = scalar_lea.vmem [#allocation9], 16
    %1008 = vst [vmem:[%s1007] sm:$0xff] %v1005
    %1009 = vst [vmem:[%s1007 + $0x8] sm:$0xff] %v1006
    %s1010 = scalar_lea.vmem [#allocation3], 96
    %v1011 = vld [vmem:[%s1010] sm:$0xff]
    %v1012 = vld [vmem:[%s1010 + $0x8] sm:$0xff]
    %v1013 = vld [vmem:[%s1010 + $0x10] sm:$0xff]
    %v1014 = vld [vmem:[%s1010 + $0x18] sm:$0xff]
    %v1015 = vld [vmem:[%s1010 + $0x20] sm:$0xff]
    %v1016 = vld [vmem:[%s1010 + $0x28] sm:$0xff]
    %v1017 = vld [vmem:[#allocation8] sm:$0xff]
    %v1018 = vld [vmem:[#allocation8 + $0x8] sm:$0xff]
    %v1019 = vld [vmem:[#allocation8 + $0x10] sm:$0xff]
    %v1020 = vld [vmem:[#allocation8 + $0x18] sm:$0xff]
    %v1021 = vld [vmem:[#allocation8 + $0x20] sm:$0xff]
    %v1022 = vld [vmem:[#allocation8 + $0x28] sm:$0xff]
    %v1023 = vld [vmem:[#allocation8 + $0x30] sm:$0xff]
    %v1024 = vld [vmem:[#allocation8 + $0x38] sm:$0xff]
    %v1025 = vld [vmem:[#allocation8 + $0x40] sm:$0xff]
    %v1026 = vld [vmem:[#allocation8 + $0x48] sm:$0xff]
    %v1027 = vld [vmem:[#allocation8 + $0x50] sm:$0xff]
    %v1028 = vld [vmem:[#allocation8 + $0x58] sm:$0xff]
    %v1029 = vld [vmem:[#allocation8 + $0x60] sm:$0xff]
    %v1030 = vld [vmem:[#allocation8 + $0x68] sm:$0xff]
    %v1031 = vld [vmem:[#allocation8 + $0x70] sm:$0xff]
    %v1032 = vld [vmem:[#allocation8 + $0x78] sm:$0xff]
    %v1033 = vld [vmem:[#allocation8 + $0x80] sm:$0xff]
    %v1034 = vld [vmem:[#allocation8 + $0x88] sm:$0xff]
    %v1035 = vld [vmem:[#allocation8 + $0x90] sm:$0xff]
    %v1036 = vld [vmem:[#allocation8 + $0x98] sm:$0xff]
    %v1037 = vld [vmem:[#allocation8 + $0xa0] sm:$0xff]
    %v1038 = vld [vmem:[#allocation8 + $0xa8] sm:$0xff]
    %v1039 = vld [vmem:[#allocation8 + $0xb0] sm:$0xff]
    %v1040 = vld [vmem:[#allocation8 + $0xb8] sm:$0xff]
    %v1041 = vld [vmem:[#allocation8 + $0xc0] sm:$0xff]
    %v1042 = vld [vmem:[#allocation8 + $0xc8] sm:$0xff]
    %v1043 = vld [vmem:[#allocation8 + $0xd0] sm:$0xff]
    %v1044 = vld [vmem:[#allocation8 + $0xd8] sm:$0xff]
    %v1045 = vld [vmem:[#allocation8 + $0xe0] sm:$0xff]
    %v1046 = vld [vmem:[#allocation8 + $0xe8] sm:$0xff]
    %v1047 = vld [vmem:[#allocation8 + $0xf0] sm:$0xff]
    %v1048 = vld [vmem:[#allocation8 + $0xf8] sm:$0xff]
    %v1049 = vld [vmem:[#allocation8 + $0x100] sm:$0xff]
    %v1050 = vld [vmem:[#allocation8 + $0x108] sm:$0xff]
    %v1051 = vld [vmem:[#allocation8 + $0x110] sm:$0xff]
    %v1052 = vld [vmem:[#allocation8 + $0x118] sm:$0xff]
    %v1053 = vld [vmem:[#allocation8 + $0x120] sm:$0xff]
    %v1054 = vld [vmem:[#allocation8 + $0x128] sm:$0xff]
    %v1055 = vld [vmem:[#allocation8 + $0x130] sm:$0xff]
    %v1056 = vld [vmem:[#allocation8 + $0x138] sm:$0xff]
    %v1057 = vld [vmem:[#allocation8 + $0x140] sm:$0xff]
    %v1058 = vld [vmem:[#allocation8 + $0x148] sm:$0xff]
    %v1059 = vld [vmem:[#allocation8 + $0x150] sm:$0xff]
    %v1060 = vld [vmem:[#allocation8 + $0x158] sm:$0xff]
    %v1061 = vld [vmem:[#allocation8 + $0x160] sm:$0xff]
    %v1062 = vld [vmem:[#allocation8 + $0x168] sm:$0xff]
    %v1063 = vld [vmem:[#allocation8 + $0x170] sm:$0xff]
    %v1064 = vld [vmem:[#allocation8 + $0x178] sm:$0xff]
    %v1065 = vld [vmem:[#allocation8 + $0x180] sm:$0xff]
    %v1066 = vld [vmem:[#allocation8 + $0x188] sm:$0xff]
    %v1067 = vld [vmem:[#allocation8 + $0x190] sm:$0xff]
    %v1068 = vld [vmem:[#allocation8 + $0x198] sm:$0xff]
    %v1069 = vld [vmem:[#allocation8 + $0x1a0] sm:$0xff]
    %v1070 = vld [vmem:[#allocation8 + $0x1a8] sm:$0xff]
    %v1071 = vld [vmem:[#allocation8 + $0x1b0] sm:$0xff]
    %v1072 = vld [vmem:[#allocation8 + $0x1b8] sm:$0xff]
    %v1073 = vld [vmem:[#allocation8 + $0x1c0] sm:$0xff]
    %v1074 = vld [vmem:[#allocation8 + $0x1c8] sm:$0xff]
    %v1075 = vld [vmem:[#allocation8 + $0x1d0] sm:$0xff]
    %v1076 = vld [vmem:[#allocation8 + $0x1d8] sm:$0xff]
    %v1077 = vld [vmem:[#allocation8 + $0x1e0] sm:$0xff]
    %v1078 = vld [vmem:[#allocation8 + $0x1e8] sm:$0xff]
    %v1079 = vld [vmem:[#allocation8 + $0x1f0] sm:$0xff]
    %v1080 = vld [vmem:[#allocation8 + $0x1f8] sm:$0xff]
    %v1081 = vld [vmem:[#allocation8 + $0x200] sm:$0xff]
    %v1082 = vld [vmem:[#allocation8 + $0x208] sm:$0xff]
    %v1083 = vld [vmem:[#allocation8 + $0x210] sm:$0xff]
    %v1084 = vld [vmem:[#allocation8 + $0x218] sm:$0xff]
    %v1085 = vld [vmem:[#allocation8 + $0x220] sm:$0xff]
    %v1086 = vld [vmem:[#allocation8 + $0x228] sm:$0xff]
    %v1087 = vld [vmem:[#allocation8 + $0x230] sm:$0xff]
    %v1088 = vld [vmem:[#allocation8 + $0x238] sm:$0xff]
    %v1089 = vld [vmem:[#allocation8 + $0x240] sm:$0xff]
    %v1090 = vld [vmem:[#allocation8 + $0x248] sm:$0xff]
    %v1091 = vld [vmem:[#allocation8 + $0x250] sm:$0xff]
    %v1092 = vld [vmem:[#allocation8 + $0x258] sm:$0xff]
    %v1093 = vld [vmem:[#allocation8 + $0x260] sm:$0xff]
    %v1094 = vld [vmem:[#allocation8 + $0x268] sm:$0xff]
    %v1095 = vld [vmem:[#allocation8 + $0x270] sm:$0xff]
    %v1096 = vld [vmem:[#allocation8 + $0x278] sm:$0xff]
    %v1097 = vld [vmem:[#allocation8 + $0x280] sm:$0xff]
    %v1098 = vld [vmem:[#allocation8 + $0x288] sm:$0xff]
    %v1099 = vld [vmem:[#allocation8 + $0x290] sm:$0xff]
    %v1100 = vld [vmem:[#allocation8 + $0x298] sm:$0xff]
    %v1101 = vld [vmem:[#allocation8 + $0x2a0] sm:$0xff]
    %v1102 = vld [vmem:[#allocation8 + $0x2a8] sm:$0xff]
    %v1103 = vld [vmem:[#allocation8 + $0x2b0] sm:$0xff]
    %v1104 = vld [vmem:[#allocation8 + $0x2b8] sm:$0xff]
    %v1105 = vld [vmem:[#allocation8 + $0x2c0] sm:$0xff]
    %v1106 = vld [vmem:[#allocation8 + $0x2c8] sm:$0xff]
    %v1107 = vld [vmem:[#allocation8 + $0x2d0] sm:$0xff]
    %v1108 = vld [vmem:[#allocation8 + $0x2d8] sm:$0xff]
    %v1109 = vld [vmem:[#allocation8 + $0x2e0] sm:$0xff]
    %v1110 = vld [vmem:[#allocation8 + $0x2e8] sm:$0xff]
    %v1111 = vld [vmem:[#allocation8 + $0x2f0] sm:$0xff]
    %v1112 = vld [vmem:[#allocation8 + $0x2f8] sm:$0xff]
    %v1113 = vld [vmem:[#allocation8 + $0x300] sm:$0xff]
    %v1114 = vld [vmem:[#allocation8 + $0x308] sm:$0xff]
    %v1115 = vld [vmem:[#allocation8 + $0x310] sm:$0xff]
    %v1116 = vld [vmem:[#allocation8 + $0x318] sm:$0xff]
    %v1117 = vld [vmem:[#allocation8 + $0x320] sm:$0xff]
    %v1118 = vld [vmem:[#allocation8 + $0x328] sm:$0xff]
    %v1119 = vld [vmem:[#allocation8 + $0x330] sm:$0xff]
    %v1120 = vld [vmem:[#allocation8 + $0x338] sm:$0xff]
    %v1121 = vld [vmem:[#allocation8 + $0x340] sm:$0xff]
    %v1122 = vld [vmem:[#allocation8 + $0x348] sm:$0xff]
    %v1123 = vld [vmem:[#allocation8 + $0x350] sm:$0xff]
    %v1124 = vld [vmem:[#allocation8 + $0x358] sm:$0xff]
    %v1125 = vld [vmem:[#allocation8 + $0x360] sm:$0xff]
    %v1126 = vld [vmem:[#allocation8 + $0x368] sm:$0xff]
    %v1127 = vld [vmem:[#allocation8 + $0x370] sm:$0xff]
    %v1128 = vld [vmem:[#allocation8 + $0x378] sm:$0xff]
    %v1129 = vld [vmem:[#allocation8 + $0x380] sm:$0xff]
    %v1130 = vld [vmem:[#allocation8 + $0x388] sm:$0xff]
    %v1131 = vld [vmem:[#allocation8 + $0x390] sm:$0xff]
    %v1132 = vld [vmem:[#allocation8 + $0x398] sm:$0xff]
    %v1133 = vld [vmem:[#allocation8 + $0x3a0] sm:$0xff]
    %v1134 = vld [vmem:[#allocation8 + $0x3a8] sm:$0xff]
    %v1135 = vld [vmem:[#allocation8 + $0x3b0] sm:$0xff]
    %v1136 = vld [vmem:[#allocation8 + $0x3b8] sm:$0xff]
    %v1137 = vld [vmem:[#allocation8 + $0x3c0] sm:$0xff]
    %v1138 = vld [vmem:[#allocation8 + $0x3c8] sm:$0xff]
    %v1139 = vld [vmem:[#allocation8 + $0x3d0] sm:$0xff]
    %v1140 = vld [vmem:[#allocation8 + $0x3d8] sm:$0xff]
    %v1141 = vld [vmem:[#allocation8 + $0x3e0] sm:$0xff]
    %v1142 = vld [vmem:[#allocation8 + $0x3e8] sm:$0xff]
    %v1143 = vld [vmem:[#allocation8 + $0x3f0] sm:$0xff]
    %v1144 = vld [vmem:[#allocation8 + $0x3f8] sm:$0xff]
    %v1145 = vld [vmem:[#allocation8 + $0x400] sm:$0xff]
    %v1146 = vld [vmem:[#allocation8 + $0x408] sm:$0xff]
    %v1147 = vld [vmem:[#allocation8 + $0x410] sm:$0xff]
    %v1148 = vld [vmem:[#allocation8 + $0x418] sm:$0xff]
    %v1149 = vld [vmem:[#allocation8 + $0x420] sm:$0xff]
    %v1150 = vld [vmem:[#allocation8 + $0x428] sm:$0xff]
    %v1151 = vld [vmem:[#allocation8 + $0x430] sm:$0xff]
    %v1152 = vld [vmem:[#allocation8 + $0x438] sm:$0xff]
    %v1153 = vld [vmem:[#allocation8 + $0x440] sm:$0xff]
    %v1154 = vld [vmem:[#allocation8 + $0x448] sm:$0xff]
    %v1155 = vld [vmem:[#allocation8 + $0x450] sm:$0xff]
    %v1156 = vld [vmem:[#allocation8 + $0x458] sm:$0xff]
    %v1157 = vld [vmem:[#allocation8 + $0x460] sm:$0xff]
    %v1158 = vld [vmem:[#allocation8 + $0x468] sm:$0xff]
    %v1159 = vld [vmem:[#allocation8 + $0x470] sm:$0xff]
    %v1160 = vld [vmem:[#allocation8 + $0x478] sm:$0xff]
    %v1161 = vld [vmem:[#allocation8 + $0x480] sm:$0xff]
    %v1162 = vld [vmem:[#allocation8 + $0x488] sm:$0xff]
    %v1163 = vld [vmem:[#allocation8 + $0x490] sm:$0xff]
    %v1164 = vld [vmem:[#allocation8 + $0x498] sm:$0xff]
    %v1165 = vld [vmem:[#allocation8 + $0x4a0] sm:$0xff]
    %v1166 = vld [vmem:[#allocation8 + $0x4a8] sm:$0xff]
    %v1167 = vld [vmem:[#allocation8 + $0x4b0] sm:$0xff]
    %v1168 = vld [vmem:[#allocation8 + $0x4b8] sm:$0xff]
    %v1169 = vld [vmem:[#allocation8 + $0x4c0] sm:$0xff]
    %v1170 = vld [vmem:[#allocation8 + $0x4c8] sm:$0xff]
    %v1171 = vld [vmem:[#allocation8 + $0x4d0] sm:$0xff]
    %v1172 = vld [vmem:[#allocation8 + $0x4d8] sm:$0xff]
    %v1173 = vld [vmem:[#allocation8 + $0x4e0] sm:$0xff]
    %v1174 = vld [vmem:[#allocation8 + $0x4e8] sm:$0xff]
    %v1175 = vld [vmem:[#allocation8 + $0x4f0] sm:$0xff]
    %v1176 = vld [vmem:[#allocation8 + $0x4f8] sm:$0xff]
    %v1177 = vld [vmem:[#allocation8 + $0x500] sm:$0xff]
    %v1178 = vld [vmem:[#allocation8 + $0x508] sm:$0xff]
    %v1179 = vld [vmem:[#allocation8 + $0x510] sm:$0xff]
    %v1180 = vld [vmem:[#allocation8 + $0x518] sm:$0xff]
    %v1181 = vld [vmem:[#allocation8 + $0x520] sm:$0xff]
    %v1182 = vld [vmem:[#allocation8 + $0x528] sm:$0xff]
    %v1183 = vld [vmem:[#allocation8 + $0x530] sm:$0xff]
    %v1184 = vld [vmem:[#allocation8 + $0x538] sm:$0xff]
    %v1185 = vld [vmem:[#allocation8 + $0x540] sm:$0xff]
    %v1186 = vld [vmem:[#allocation8 + $0x548] sm:$0xff]
    %v1187 = vld [vmem:[#allocation8 + $0x550] sm:$0xff]
    %v1188 = vld [vmem:[#allocation8 + $0x558] sm:$0xff]
    %v1189 = vld [vmem:[#allocation8 + $0x560] sm:$0xff]
    %v1190 = vld [vmem:[#allocation8 + $0x568] sm:$0xff]
    %v1191 = vld [vmem:[#allocation8 + $0x570] sm:$0xff]
    %v1192 = vld [vmem:[#allocation8 + $0x578] sm:$0xff]
    %v1193 = vld [vmem:[#allocation8 + $0x580] sm:$0xff]
    %v1194 = vld [vmem:[#allocation8 + $0x588] sm:$0xff]
    %v1195 = vld [vmem:[#allocation8 + $0x590] sm:$0xff]
    %v1196 = vld [vmem:[#allocation8 + $0x598] sm:$0xff]
    %v1197 = vld [vmem:[#allocation8 + $0x5a0] sm:$0xff]
    %v1198 = vld [vmem:[#allocation8 + $0x5a8] sm:$0xff]
    %v1199 = vld [vmem:[#allocation8 + $0x5b0] sm:$0xff]
    %v1200 = vld [vmem:[#allocation8 + $0x5b8] sm:$0xff]
    %v1201 = vld [vmem:[#allocation8 + $0x5c0] sm:$0xff]
    %v1202 = vld [vmem:[#allocation8 + $0x5c8] sm:$0xff]
    %v1203 = vld [vmem:[#allocation8 + $0x5d0] sm:$0xff]
    %v1204 = vld [vmem:[#allocation8 + $0x5d8] sm:$0xff]
    %v1205 = vld [vmem:[#allocation8 + $0x5e0] sm:$0xff]
    %v1206 = vld [vmem:[#allocation8 + $0x5e8] sm:$0xff]
    %v1207 = vld [vmem:[#allocation8 + $0x5f0] sm:$0xff]
    %v1208 = vld [vmem:[#allocation8 + $0x5f8] sm:$0xff]
    %1209 = vmatprep.subr.mxu0 %v1018
    %1210 = vmatpush1.msra.mxu0 %v1017
    %1211 = vmatprep.subr.mxu0 %v1024
    %1212 = vmatpush1.msra.mxu0 %v1023
    %1213 = vmatprep.subr.mxu0 %v1030
    %1214 = vmatpush1.msra.mxu0 %v1029
    %1215 = vmatprep.subr.mxu0 %v1036
    %1216 = vmatpush1.msra.mxu0 %v1035
    %1217 = vmatprep.subr.mxu0 %v1042
    %1218 = vmatpush1.msra.mxu0 %v1041
    %1219 = vmatprep.subr.mxu0 %v1048
    %1220 = vmatpush1.msra.mxu0 %v1047
    %1221 = vmatprep.subr.mxu0 %v1054
    %1222 = vmatpush1.msra.mxu0 %v1053
    %1223 = vmatprep.subr.mxu0 %v1060
    %1224 = vmatpush1.msra.mxu0 %v1059
    %1225 = vmatprep.subr.mxu0 %v1066
    %1226 = vmatpush1.msra.mxu0 %v1065
    %1227 = vmatprep.subr.mxu0 %v1072
    %1228 = vmatpush1.msra.mxu0 %v1071
    %1229 = vmatprep.subr.mxu0 %v1078
    %1230 = vmatpush1.msra.mxu0 %v1077
    %1231 = vmatprep.subr.mxu0 %v1084
    %1232 = vmatpush1.msra.mxu0 %v1083
    %1233 = vmatprep.subr.mxu0 %v1090
    %1234 = vmatpush1.msra.mxu0 %v1089
    %1235 = vmatprep.subr.mxu0 %v1096
    %1236 = vmatpush1.msra.mxu0 %v1095
    %1237 = vmatprep.subr.mxu0 %v1102
    %1238 = vmatpush1.msra.mxu0 %v1101
    %1239 = vmatprep.subr.mxu0 %v1108
    %1240 = vmatpush1.msra.mxu0 %v1107
    %1241 = vmatprep.subr.mxu0 %v1114
    %1242 = vmatpush1.msra.mxu0 %v1113
    %1243 = vmatprep.subr.mxu0 %v1120
    %1244 = vmatpush1.msra.mxu0 %v1119
    %1245 = vmatprep.subr.mxu0 %v1126
    %1246 = vmatpush1.msra.mxu0 %v1125
    %1247 = vmatprep.subr.mxu0 %v1132
    %1248 = vmatpush1.msra.mxu0 %v1131
    %1249 = vmatprep.subr.mxu0 %v1138
    %1250 = vmatpush1.msra.mxu0 %v1137
    %1251 = vmatprep.subr.mxu0 %v1144
    %1252 = vmatpush1.msra.mxu0 %v1143
    %1253 = vmatprep.subr.mxu0 %v1150
    %1254 = vmatpush1.msra.mxu0 %v1149
    %1255 = vmatprep.subr.mxu0 %v1156
    %1256 = vmatpush1.msra.mxu0 %v1155
    %1257 = vmatprep.subr.mxu0 %v1162
    %1258 = vmatpush1.msra.mxu0 %v1161
    %1259 = vmatprep.subr.mxu0 %v1168
    %1260 = vmatpush1.msra.mxu0 %v1167
    %1261 = vmatprep.subr.mxu0 %v1174
    %1262 = vmatpush1.msra.mxu0 %v1173
    %1263 = vmatprep.subr.mxu0 %v1180
    %1264 = vmatpush1.msra.mxu0 %v1179
    %1265 = vmatprep.subr.mxu0 %v1186
    %1266 = vmatpush1.msra.mxu0 %v1185
    %1267 = vmatprep.subr.mxu0 %v1192
    %1268 = vmatpush1.msra.mxu0 %v1191
    %1269 = vmatprep.subr.mxu0 %v1198
    %1270 = vmatpush1.msra.mxu0 %v1197
    %1271 = vmatprep.subr.mxu0 %v1204
    %1272 = vmatpush1.msra.mxu0 %v1203
    %1273 = vmatprep.mubr.f32.mxu0 %v1006
    %1274 = vmatmul.mubr.f32.gmra.mrb[0].mxu0 %v1005
    %v1275 = vpop.f32.mrb[0].mxu0
    %v1276 = vadd.f32 0.0, %v1275
    %v1277 = vpop.f32.mrb[0].mxu0
    %v1278 = vadd.f32 0.0, %v1277
    %1279 = vdwg.mxu0
    %1280 = vmatprep.subr.mxu0 %v1020
    %1281 = vmatpush1.msra.mxu0 %v1019
    %1282 = vmatprep.subr.mxu0 %v1026
    %1283 = vmatpush1.msra.mxu0 %v1025
    %1284 = vmatprep.subr.mxu0 %v1032
    %1285 = vmatpush1.msra.mxu0 %v1031
    %1286 = vmatprep.subr.mxu0 %v1038
    %1287 = vmatpush1.msra.mxu0 %v1037
    %1288 = vmatprep.subr.mxu0 %v1044
    %1289 = vmatpush1.msra.mxu0 %v1043
    %1290 = vmatprep.subr.mxu0 %v1050
    %1291 = vmatpush1.msra.mxu0 %v1049
    %1292 = vmatprep.subr.mxu0 %v1056
    %1293 = vmatpush1.msra.mxu0 %v1055
    %1294 = vmatprep.subr.mxu0 %v1062
    %1295 = vmatpush1.msra.mxu0 %v1061
    %1296 = vmatprep.subr.mxu0 %v1068
    %1297 = vmatpush1.msra.mxu0 %v1067
    %1298 = vmatprep.subr.mxu0 %v1074
    %1299 = vmatpush1.msra.mxu0 %v1073
    %1300 = vmatprep.subr.mxu0 %v1080
    %1301 = vmatpush1.msra.mxu0 %v1079
    %1302 = vmatprep.subr.mxu0 %v1086
    %1303 = vmatpush1.msra.mxu0 %v1085
    %1304 = vmatprep.subr.mxu0 %v1092
    %1305 = vmatpush1.msra.mxu0 %v1091
    %1306 = vmatprep.subr.mxu0 %v1098
    %1307 = vmatpush1.msra.mxu0 %v1097
    %1308 = vmatprep.subr.mxu0 %v1104
    %1309 = vmatpush1.msra.mxu0 %v1103
    %1310 = vmatprep.subr.mxu0 %v1110
    %1311 = vmatpush1.msra.mxu0 %v1109
    %1312 = vmatprep.subr.mxu0 %v1116
    %1313 = vmatpush1.msra.mxu0 %v1115
    %1314 = vmatprep.subr.mxu0 %v1122
    %1315 = vmatpush1.msra.mxu0 %v1121
    %1316 = vmatprep.subr.mxu0 %v1128
    %1317 = vmatpush1.msra.mxu0 %v1127
    %1318 = vmatprep.subr.mxu0 %v1134
    %1319 = vmatpush1.msra.mxu0 %v1133
    %1320 = vmatprep.subr.mxu0 %v1140
    %1321 = vmatpush1.msra.mxu0 %v1139
    %1322 = vmatprep.subr.mxu0 %v1146
    %1323 = vmatpush1.msra.mxu0 %v1145
    %1324 = vmatprep.subr.mxu0 %v1152
    %1325 = vmatpush1.msra.mxu0 %v1151
    %1326 = vmatprep.subr.mxu0 %v1158
    %1327 = vmatpush1.msra.mxu0 %v1157
    %1328 = vmatprep.subr.mxu0 %v1164
    %1329 = vmatpush1.msra.mxu0 %v1163
    %1330 = vmatprep.subr.mxu0 %v1170
    %1331 = vmatpush1.msra.mxu0 %v1169
    %1332 = vmatprep.subr.mxu0 %v1176
    %1333 = vmatpush1.msra.mxu0 %v1175
    %1334 = vmatprep.subr.mxu0 %v1182
    %1335 = vmatpush1.msra.mxu0 %v1181
    %1336 = vmatprep.subr.mxu0 %v1188
    %1337 = vmatpush1.msra.mxu0 %v1187
    %1338 = vmatprep.subr.mxu0 %v1194
    %1339 = vmatpush1.msra.mxu0 %v1193
    %1340 = vmatprep.subr.mxu0 %v1200
    %1341 = vmatpush1.msra.mxu0 %v1199
    %1342 = vmatprep.subr.mxu0 %v1206
    %1343 = vmatpush1.msra.mxu0 %v1205
    %1344 = vmatprep.mubr.f32.mxu0 %v1006
    %1345 = vmatmul.mubr.f32.gmra.mrb[0].mxu0 %v1005
    %v1346 = vpop.f32.mrb[0].mxu0
    %v1347 = vadd.f32 0.0, %v1346
    %v1348 = vpop.f32.mrb[0].mxu0
    %v1349 = vadd.f32 0.0, %v1348
    %1350 = vdwg.mxu0
    %1351 = vmatprep.subr.mxu0 %v1022
    %1352 = vmatpush1.msra.mxu0 %v1021
    %1353 = vmatprep.subr.mxu0 %v1028
    %1354 = vmatpush1.msra.mxu0 %v1027
    %1355 = vmatprep.subr.mxu0 %v1034
    %1356 = vmatpush1.msra.mxu0 %v1033
    %1357 = vmatprep.subr.mxu0 %v1040
    %1358 = vmatpush1.msra.mxu0 %v1039
    %1359 = vmatprep.subr.mxu0 %v1046
    %1360 = vmatpush1.msra.mxu0 %v1045
    %1361 = vmatprep.subr.mxu0 %v1052
    %1362 = vmatpush1.msra.mxu0 %v1051
    %1363 = vmatprep.subr.mxu0 %v1058
    %1364 = vmatpush1.msra.mxu0 %v1057
    %1365 = vmatprep.subr.mxu0 %v1064
    %1366 = vmatpush1.msra.mxu0 %v1063
    %1367 = vmatprep.subr.mxu0 %v1070
    %1368 = vmatpush1.msra.mxu0 %v1069
    %1369 = vmatprep.subr.mxu0 %v1076
    %1370 = vmatpush1.msra.mxu0 %v1075
    %1371 = vmatprep.subr.mxu0 %v1082
    %1372 = vmatpush1.msra.mxu0 %v1081
    %1373 = vmatprep.subr.mxu0 %v1088
    %1374 = vmatpush1.msra.mxu0 %v1087
    %1375 = vmatprep.subr.mxu0 %v1094
    %1376 = vmatpush1.msra.mxu0 %v1093
    %1377 = vmatprep.subr.mxu0 %v1100
    %1378 = vmatpush1.msra.mxu0 %v1099
    %1379 = vmatprep.subr.mxu0 %v1106
    %1380 = vmatpush1.msra.mxu0 %v1105
    %1381 = vmatprep.subr.mxu0 %v1112
    %1382 = vmatpush1.msra.mxu0 %v1111
    %1383 = vmatprep.subr.mxu0 %v1118
    %1384 = vmatpush1.msra.mxu0 %v1117
    %1385 = vmatprep.subr.mxu0 %v1124
    %1386 = vmatpush1.msra.mxu0 %v1123
    %1387 = vmatprep.subr.mxu0 %v1130
    %1388 = vmatpush1.msra.mxu0 %v1129
    %1389 = vmatprep.subr.mxu0 %v1136
    %1390 = vmatpush1.msra.mxu0 %v1135
    %1391 = vmatprep.subr.mxu0 %v1142
    %1392 = vmatpush1.msra.mxu0 %v1141
    %1393 = vmatprep.subr.mxu0 %v1148
    %1394 = vmatpush1.msra.mxu0 %v1147
    %1395 = vmatprep.subr.mxu0 %v1154
    %1396 = vmatpush1.msra.mxu0 %v1153
    %1397 = vmatprep.subr.mxu0 %v1160
    %1398 = vmatpush1.msra.mxu0 %v1159
    %1399 = vmatprep.subr.mxu0 %v1166
    %1400 = vmatpush1.msra.mxu0 %v1165
    %1401 = vmatprep.subr.mxu0 %v1172
    %1402 = vmatpush1.msra.mxu0 %v1171
    %1403 = vmatprep.subr.mxu0 %v1178
    %1404 = vmatpush1.msra.mxu0 %v1177
    %1405 = vmatprep.subr.mxu0 %v1184
    %1406 = vmatpush1.msra.mxu0 %v1183
    %1407 = vmatprep.subr.mxu0 %v1190
    %1408 = vmatpush1.msra.mxu0 %v1189
    %1409 = vmatprep.subr.mxu0 %v1196
    %1410 = vmatpush1.msra.mxu0 %v1195
    %1411 = vmatprep.subr.mxu0 %v1202
    %1412 = vmatpush1.msra.mxu0 %v1201
    %1413 = vmatprep.subr.mxu0 %v1208
    %1414 = vmatpush1.msra.mxu0 %v1207
    %1415 = vmatprep.mubr.f32.mxu0 %v1006
    %1416 = vmatmul.mubr.f32.gmra.mrb[0].mxu0 %v1005
    %v1417 = vpop.f32.mrb[0].mxu0
    %v1418 = vadd.f32 0.0, %v1417
    %v1419 = vpop.f32.mrb[0].mxu0
    %v1420 = vadd.f32 0.0, %v1419
    %1421 = vdwg.mxu0
    %v1422 = vadd.f32 %v1011, %v1276
    %v1423 = vadd.f32 %v1012, %v1278
    %v1424 = vadd.f32 %v1013, %v1347
    %v1425 = vadd.f32 %v1014, %v1349
    %v1426 = vxor.u32 %v1422, 2147483648
    %v1427 = vxor.u32 %v1423, 2147483648
    %v1428 = vxor.u32 %v1424, 2147483648
    %v1429 = vxor.u32 %v1425, 2147483648
    %v1430 = vmul.f32 %v1426, 1.442695
    %v1431 = vpow.pop %v1430
    %v1432 = vmul.f32 %v1427, 1.442695
    %v1433 = vpow.pop %v1432
    %v1434 = vmul.f32 %v1428, 1.442695
    %v1435 = vpow.pop %v1434
    %v1436 = vmul.f32 %v1429, 1.442695
    %v1437 = vpow.pop %v1436
    %v1438 = vadd.f32 %v1431, 1.0
    %v1439 = vadd.f32 %v1433, 1.0
    %v1440 = vadd.f32 %v1435, 1.0
    %v1441 = vadd.f32 %v1437, 1.0
    %v1442 = vrcp.pop %v1438
    %v1443 = vmul.f32 1.0, %v1442
    %v1444 = vrcp.pop %v1439
    %v1445 = vmul.f32 1.0, %v1444
    %v1446 = vrcp.pop %v1440
    %v1447 = vmul.f32 1.0, %v1446
    %v1448 = vrcp.pop %v1441
    %v1449 = vmul.f32 1.0, %v1448
    %v1450 = vld [vmem:[%s3] sm:$0x3]
    %v1452 = vlaneseq
    %v1453 = vshrl.u32 %v1452, 7
    %v1454 = vsub.s32 0, %v1453
    %v1455 = vrot.slane %v1450, %v1454
    %v1456 = vlaneseq
    %v1457 = vshrl.u32 %v1456, 7
    %v1458 = vsub.s32 1, %v1457
    %v1459 = vrot.slane %v1450, %v1458
    %v1462 = vadd.f32 %v1418, %v1455
    %v1463 = vadd.f32 %v1420, %v1459
    %v1464 = vmul.f32 %v1443, %v1462
    %v1465 = vmul.f32 %v1445, %v1463
    %v1466 = vadd.f32 %v1015, %v1464
    %v1467 = vadd.f32 %v1016, %v1465
    %v1468 = vtanh.pop %v1466
    %v1469 = vtanh.pop %v1467
    %v1470 = vsub.f32 1.0, %v1447
    %v1471 = vsub.f32 1.0, %v1449
    %v1472 = vmul.f32 %v1470, %v1468
    %v1473 = vmul.f32 %v1471, %v1469
    %v1474 = vmul.f32 %v1447, %v1005
    %v1475 = vmul.f32 %v1449, %v1006
    %v1476 = vadd.f32 %v1472, %v1474
    %v1477 = vadd.f32 %v1473, %v1475
    %s1478 = scalar_lea.vmem [#allocation9], 32
    %1479 = vst [vmem:[%s1478] sm:$0xff] %v1476
    %1480 = vst [vmem:[%s1478 + $0x8] sm:$0xff] %v1477
    %s1481 = scalar_lea.vmem [#allocation3], 144
    %v1482 = vld [vmem:[%s1481] sm:$0xff]
    %v1483 = vld [vmem:[%s1481 + $0x8] sm:$0xff]
    %v1484 = vld [vmem:[%s1481 + $0x10] sm:$0xff]
    %v1485 = vld [vmem:[%s1481 + $0x18] sm:$0xff]
    %v1486 = vld [vmem:[%s1481 + $0x20] sm:$0xff]
    %v1487 = vld [vmem:[%s1481 + $0x28] sm:$0xff]
    %v1488 = vld [vmem:[#allocation8] sm:$0xff]
    %v1489 = vld [vmem:[#allocation8 + $0x8] sm:$0xff]
    %v1490 = vld [vmem:[#allocation8 + $0x10] sm:$0xff]
    %v1491 = vld [vmem:[#allocation8 + $0x18] sm:$0xff]
    %v1492 = vld [vmem:[#allocation8 + $0x20] sm:$0xff]
    %v1493 = vld [vmem:[#allocation8 + $0x28] sm:$0xff]
    %v1494 = vld [vmem:[#allocation8 + $0x30] sm:$0xff]
    %v1495 = vld [vmem:[#allocation8 + $0x38] sm:$0xff]
    %v1496 = vld [vmem:[#allocation8 + $0x40] sm:$0xff]
    %v1497 = vld [vmem:[#allocation8 + $0x48] sm:$0xff]
    %v1498 = vld [vmem:[#allocation8 + $0x50] sm:$0xff]
    %v1499 = vld [vmem:[#allocation8 + $0x58] sm:$0xff]
    %v1500 = vld [vmem:[#allocation8 + $0x60] sm:$0xff]
    %v1501 = vld [vmem:[#allocation8 + $0x68] sm:$0xff]
    %v1502 = vld [vmem:[#allocation8 + $0x70] sm:$0xff]
    %v1503 = vld [vmem:[#allocation8 + $0x78] sm:$0xff]
    %v1504 = vld [vmem:[#allocation8 + $0x80] sm:$0xff]
    %v1505 = vld [vmem:[#allocation8 + $0x88] sm:$0xff]
    %v1506 = vld [vmem:[#allocation8 + $0x90] sm:$0xff]
    %v1507 = vld [vmem:[#allocation8 + $0x98] sm:$0xff]
    %v1508 = vld [vmem:[#allocation8 + $0xa0] sm:$0xff]
    %v1509 = vld [vmem:[#allocation8 + $0xa8] sm:$0xff]
    %v1510 = vld [vmem:[#allocation8 + $0xb0] sm:$0xff]
    %v1511 = vld [vmem:[#allocation8 + $0xb8] sm:$0xff]
    %v1512 = vld [vmem:[#allocation8 + $0xc0] sm:$0xff]
    %v1513 = vld [vmem:[#allocation8 + $0xc8] sm:$0xff]
    %v1514 = vld [vmem:[#allocation8 + $0xd0] sm:$0xff]
    %v1515 = vld [vmem:[#allocation8 + $0xd8] sm:$0xff]
    %v1516 = vld [vmem:[#allocation8 + $0xe0] sm:$0xff]
    %v1517 = vld [vmem:[#allocation8 + $0xe8] sm:$0xff]
    %v1518 = vld [vmem:[#allocation8 + $0xf0] sm:$0xff]
    %v1519 = vld [vmem:[#allocation8 + $0xf8] sm:$0xff]
    %v1520 = vld [vmem:[#allocation8 + $0x100] sm:$0xff]
    %v1521 = vld [vmem:[#allocation8 + $0x108] sm:$0xff]
    %v1522 = vld [vmem:[#allocation8 + $0x110] sm:$0xff]
    %v1523 = vld [vmem:[#allocation8 + $0x118] sm:$0xff]
    %v1524 = vld [vmem:[#allocation8 + $0x120] sm:$0xff]
    %v1525 = vld [vmem:[#allocation8 + $0x128] sm:$0xff]
    %v1526 = vld [vmem:[#allocation8 + $0x130] sm:$0xff]
    %v1527 = vld [vmem:[#allocation8 + $0x138] sm:$0xff]
    %v1528 = vld [vmem:[#allocation8 + $0x140] sm:$0xff]
    %v1529 = vld [vmem:[#allocation8 + $0x148] sm:$0xff]
    %v1530 = vld [vmem:[#allocation8 + $0x150] sm:$0xff]
    %v1531 = vld [vmem:[#allocation8 + $0x158] sm:$0xff]
    %v1532 = vld [vmem:[#allocation8 + $0x160] sm:$0xff]
    %v1533 = vld [vmem:[#allocation8 + $0x168] sm:$0xff]
    %v1534 = vld [vmem:[#allocation8 + $0x170] sm:$0xff]
    %v1535 = vld [vmem:[#allocation8 + $0x178] sm:$0xff]
    %v1536 = vld [vmem:[#allocation8 + $0x180] sm:$0xff]
    %v1537 = vld [vmem:[#allocation8 + $0x188] sm:$0xff]
    %v1538 = vld [vmem:[#allocation8 + $0x190] sm:$0xff]
    %v1539 = vld [vmem:[#allocation8 + $0x198] sm:$0xff]
    %v1540 = vld [vmem:[#allocation8 + $0x1a0] sm:$0xff]
    %v1541 = vld [vmem:[#allocation8 + $0x1a8] sm:$0xff]
    %v1542 = vld [vmem:[#allocation8 + $0x1b0] sm:$0xff]
    %v1543 = vld [vmem:[#allocation8 + $0x1b8] sm:$0xff]
    %v1544 = vld [vmem:[#allocation8 + $0x1c0] sm:$0xff]
    %v1545 = vld [vmem:[#allocation8 + $0x1c8] sm:$0xff]
    %v1546 = vld [vmem:[#allocation8 + $0x1d0] sm:$0xff]
    %v1547 = vld [vmem:[#allocation8 + $0x1d8] sm:$0xff]
    %v1548 = vld [vmem:[#allocation8 + $0x1e0] sm:$0xff]
    %v1549 = vld [vmem:[#allocation8 + $0x1e8] sm:$0xff]
    %v1550 = vld [vmem:[#allocation8 + $0x1f0] sm:$0xff]
    %v1551 = vld [vmem:[#allocation8 + $0x1f8] sm:$0xff]
    %v1552 = vld [vmem:[#allocation8 + $0x200] sm:$0xff]
    %v1553 = vld [vmem:[#allocation8 + $0x208] sm:$0xff]
    %v1554 = vld [vmem:[#allocation8 + $0x210] sm:$0xff]
    %v1555 = vld [vmem:[#allocation8 + $0x218] sm:$0xff]
    %v1556 = vld [vmem:[#allocation8 + $0x220] sm:$0xff]
    %v1557 = vld [vmem:[#allocation8 + $0x228] sm:$0xff]
    %v1558 = vld [vmem:[#allocation8 + $0x230] sm:$0xff]
    %v1559 = vld [vmem:[#allocation8 + $0x238] sm:$0xff]
    %v1560 = vld [vmem:[#allocation8 + $0x240] sm:$0xff]
    %v1561 = vld [vmem:[#allocation8 + $0x248] sm:$0xff]
    %v1562 = vld [vmem:[#allocation8 + $0x250] sm:$0xff]
    %v1563 = vld [vmem:[#allocation8 + $0x258] sm:$0xff]
    %v1564 = vld [vmem:[#allocation8 + $0x260] sm:$0xff]
    %v1565 = vld [vmem:[#allocation8 + $0x268] sm:$0xff]
    %v1566 = vld [vmem:[#allocation8 + $0x270] sm:$0xff]
    %v1567 = vld [vmem:[#allocation8 + $0x278] sm:$0xff]
    %v1568 = vld [vmem:[#allocation8 + $0x280] sm:$0xff]
    %v1569 = vld [vmem:[#allocation8 + $0x288] sm:$0xff]
    %v1570 = vld [vmem:[#allocation8 + $0x290] sm:$0xff]
    %v1571 = vld [vmem:[#allocation8 + $0x298] sm:$0xff]
    %v1572 = vld [vmem:[#allocation8 + $0x2a0] sm:$0xff]
    %v1573 = vld [vmem:[#allocation8 + $0x2a8] sm:$0xff]
    %v1574 = vld [vmem:[#allocation8 + $0x2b0] sm:$0xff]
    %v1575 = vld [vmem:[#allocation8 + $0x2b8] sm:$0xff]
    %v1576 = vld [vmem:[#allocation8 + $0x2c0] sm:$0xff]
    %v1577 = vld [vmem:[#allocation8 + $0x2c8] sm:$0xff]
    %v1578 = vld [vmem:[#allocation8 + $0x2d0] sm:$0xff]
    %v1579 = vld [vmem:[#allocation8 + $0x2d8] sm:$0xff]
    %v1580 = vld [vmem:[#allocation8 + $0x2e0] sm:$0xff]
    %v1581 = vld [vmem:[#allocation8 + $0x2e8] sm:$0xff]
    %v1582 = vld [vmem:[#allocation8 + $0x2f0] sm:$0xff]
    %v1583 = vld [vmem:[#allocation8 + $0x2f8] sm:$0xff]
    %v1584 = vld [vmem:[#allocation8 + $0x300] sm:$0xff]
    %v1585 = vld [vmem:[#allocation8 + $0x308] sm:$0xff]
    %v1586 = vld [vmem:[#allocation8 + $0x310] sm:$0xff]
    %v1587 = vld [vmem:[#allocation8 + $0x318] sm:$0xff]
    %v1588 = vld [vmem:[#allocation8 + $0x320] sm:$0xff]
    %v1589 = vld [vmem:[#allocation8 + $0x328] sm:$0xff]
    %v1590 = vld [vmem:[#allocation8 + $0x330] sm:$0xff]
    %v1591 = vld [vmem:[#allocation8 + $0x338] sm:$0xff]
    %v1592 = vld [vmem:[#allocation8 + $0x340] sm:$0xff]
    %v1593 = vld [vmem:[#allocation8 + $0x348] sm:$0xff]
    %v1594 = vld [vmem:[#allocation8 + $0x350] sm:$0xff]
    %v1595 = vld [vmem:[#allocation8 + $0x358] sm:$0xff]
    %v1596 = vld [vmem:[#allocation8 + $0x360] sm:$0xff]
    %v1597 = vld [vmem:[#allocation8 + $0x368] sm:$0xff]
    %v1598 = vld [vmem:[#allocation8 + $0x370] sm:$0xff]
    %v1599 = vld [vmem:[#allocation8 + $0x378] sm:$0xff]
    %v1600 = vld [vmem:[#allocation8 + $0x380] sm:$0xff]
    %v1601 = vld [vmem:[#allocation8 + $0x388] sm:$0xff]
    %v1602 = vld [vmem:[#allocation8 + $0x390] sm:$0xff]
    %v1603 = vld [vmem:[#allocation8 + $0x398] sm:$0xff]
    %v1604 = vld [vmem:[#allocation8 + $0x3a0] sm:$0xff]
    %v1605 = vld [vmem:[#allocation8 + $0x3a8] sm:$0xff]
    %v1606 = vld [vmem:[#allocation8 + $0x3b0] sm:$0xff]
    %v1607 = vld [vmem:[#allocation8 + $0x3b8] sm:$0xff]
    %v1608 = vld [vmem:[#allocation8 + $0x3c0] sm:$0xff]
    %v1609 = vld [vmem:[#allocation8 + $0x3c8] sm:$0xff]
    %v1610 = vld [vmem:[#allocation8 + $0x3d0] sm:$0xff]
    %v1611 = vld [vmem:[#allocation8 + $0x3d8] sm:$0xff]
    %v1612 = vld [vmem:[#allocation8 + $0x3e0] sm:$0xff]
    %v1613 = vld [vmem:[#allocation8 + $0x3e8] sm:$0xff]
    %v1614 = vld [vmem:[#allocation8 + $0x3f0] sm:$0xff]
    %v1615 = vld [vmem:[#allocation8 + $0x3f8] sm:$0xff]
    %v1616 = vld [vmem:[#allocation8 + $0x400] sm:$0xff]
    %v1617 = vld [vmem:[#allocation8 + $0x408] sm:$0xff]
    %v1618 = vld [vmem:[#allocation8 + $0x410] sm:$0xff]
    %v1619 = vld [vmem:[#allocation8 + $0x418] sm:$0xff]
    %v1620 = vld [vmem:[#allocation8 + $0x420] sm:$0xff]
    %v1621 = vld [vmem:[#allocation8 + $0x428] sm:$0xff]
    %v1622 = vld [vmem:[#allocation8 + $0x430] sm:$0xff]
    %v1623 = vld [vmem:[#allocation8 + $0x438] sm:$0xff]
    %v1624 = vld [vmem:[#allocation8 + $0x440] sm:$0xff]
    %v1625 = vld [vmem:[#allocation8 + $0x448] sm:$0xff]
    %v1626 = vld [vmem:[#allocation8 + $0x450] sm:$0xff]
    %v1627 = vld [vmem:[#allocation8 + $0x458] sm:$0xff]
    %v1628 = vld [vmem:[#allocation8 + $0x460] sm:$0xff]
    %v1629 = vld [vmem:[#allocation8 + $0x468] sm:$0xff]
    %v1630 = vld [vmem:[#allocation8 + $0x470] sm:$0xff]
    %v1631 = vld [vmem:[#allocation8 + $0x478] sm:$0xff]
    %v1632 = vld [vmem:[#allocation8 + $0x480] sm:$0xff]
    %v1633 = vld [vmem:[#allocation8 + $0x488] sm:$0xff]
    %v1634 = vld [vmem:[#allocation8 + $0x490] sm:$0xff]
    %v1635 = vld [vmem:[#allocation8 + $0x498] sm:$0xff]
    %v1636 = vld [vmem:[#allocation8 + $0x4a0] sm:$0xff]
    %v1637 = vld [vmem:[#allocation8 + $0x4a8] sm:$0xff]
    %v1638 = vld [vmem:[#allocation8 + $0x4b0] sm:$0xff]
    %v1639 = vld [vmem:[#allocation8 + $0x4b8] sm:$0xff]
    %v1640 = vld [vmem:[#allocation8 + $0x4c0] sm:$0xff]
    %v1641 = vld [vmem:[#allocation8 + $0x4c8] sm:$0xff]
    %v1642 = vld [vmem:[#allocation8 + $0x4d0] sm:$0xff]
    %v1643 = vld [vmem:[#allocation8 + $0x4d8] sm:$0xff]
    %v1644 = vld [vmem:[#allocation8 + $0x4e0] sm:$0xff]
    %v1645 = vld [vmem:[#allocation8 + $0x4e8] sm:$0xff]
    %v1646 = vld [vmem:[#allocation8 + $0x4f0] sm:$0xff]
    %v1647 = vld [vmem:[#allocation8 + $0x4f8] sm:$0xff]
    %v1648 = vld [vmem:[#allocation8 + $0x500] sm:$0xff]
    %v1649 = vld [vmem:[#allocation8 + $0x508] sm:$0xff]
    %v1650 = vld [vmem:[#allocation8 + $0x510] sm:$0xff]
    %v1651 = vld [vmem:[#allocation8 + $0x518] sm:$0xff]
    %v1652 = vld [vmem:[#allocation8 + $0x520] sm:$0xff]
    %v1653 = vld [vmem:[#allocation8 + $0x528] sm:$0xff]
    %v1654 = vld [vmem:[#allocation8 + $0x530] sm:$0xff]
    %v1655 = vld [vmem:[#allocation8 + $0x538] sm:$0xff]
    %v1656 = vld [vmem:[#allocation8 + $0x540] sm:$0xff]
    %v1657 = vld [vmem:[#allocation8 + $0x548] sm:$0xff]
    %v1658 = vld [vmem:[#allocation8 + $0x550] sm:$0xff]
    %v1659 = vld [vmem:[#allocation8 + $0x558] sm:$0xff]
    %v1660 = vld [vmem:[#allocation8 + $0x560] sm:$0xff]
    %v1661 = vld [vmem:[#allocation8 + $0x568] sm:$0xff]
    %v1662 = vld [vmem:[#allocation8 + $0x570] sm:$0xff]
    %v1663 = vld [vmem:[#allocation8 + $0x578] sm:$0xff]
    %v1664 = vld [vmem:[#allocation8 + $0x580] sm:$0xff]
    %v1665 = vld [vmem:[#allocation8 + $0x588] sm:$0xff]
    %v1666 = vld [vmem:[#allocation8 + $0x590] sm:$0xff]
    %v1667 = vld [vmem:[#allocation8 + $0x598] sm:$0xff]
    %v1668 = vld [vmem:[#allocation8 + $0x5a0] sm:$0xff]
    %v1669 = vld [vmem:[#allocation8 + $0x5a8] sm:$0xff]
    %v1670 = vld [vmem:[#allocation8 + $0x5b0] sm:$0xff]
    %v1671 = vld [vmem:[#allocation8 + $0x5b8] sm:$0xff]
    %v1672 = vld [vmem:[#allocation8 + $0x5c0] sm:$0xff]
    %v1673 = vld [vmem:[#allocation8 + $0x5c8] sm:$0xff]
    %v1674 = vld [vmem:[#allocation8 + $0x5d0] sm:$0xff]
    %v1675 = vld [vmem:[#allocation8 + $0x5d8] sm:$0xff]
    %v1676 = vld [vmem:[#allocation8 + $0x5e0] sm:$0xff]
    %v1677 = vld [vmem:[#allocation8 + $0x5e8] sm:$0xff]
    %v1678 = vld [vmem:[#allocation8 + $0x5f0] sm:$0xff]
    %v1679 = vld [vmem:[#allocation8 + $0x5f8] sm:$0xff]
    %1680 = vmatprep.subr.mxu0 %v1489
    %1681 = vmatpush1.msra.mxu0 %v1488
    %1682 = vmatprep.subr.mxu0 %v1495
    %1683 = vmatpush1.msra.mxu0 %v1494
    %1684 = vmatprep.subr.mxu0 %v1501
    %1685 = vmatpush1.msra.mxu0 %v1500
    %1686 = vmatprep.subr.mxu0 %v1507
    %1687 = vmatpush1.msra.mxu0 %v1506
    %1688 = vmatprep.subr.mxu0 %v1513
    %1689 = vmatpush1.msra.mxu0 %v1512
    %1690 = vmatprep.subr.mxu0 %v1519
    %1691 = vmatpush1.msra.mxu0 %v1518
    %1692 = vmatprep.subr.mxu0 %v1525
    %1693 = vmatpush1.msra.mxu0 %v1524
    %1694 = vmatprep.subr.mxu0 %v1531
    %1695 = vmatpush1.msra.mxu0 %v1530
    %1696 = vmatprep.subr.mxu0 %v1537
    %1697 = vmatpush1.msra.mxu0 %v1536
    %1698 = vmatprep.subr.mxu0 %v1543
    %1699 = vmatpush1.msra.mxu0 %v1542
    %1700 = vmatprep.subr.mxu0 %v1549
    %1701 = vmatpush1.msra.mxu0 %v1548
    %1702 = vmatprep.subr.mxu0 %v1555
    %1703 = vmatpush1.msra.mxu0 %v1554
    %1704 = vmatprep.subr.mxu0 %v1561
    %1705 = vmatpush1.msra.mxu0 %v1560
    %1706 = vmatprep.subr.mxu0 %v1567
    %1707 = vmatpush1.msra.mxu0 %v1566
    %1708 = vmatprep.subr.mxu0 %v1573
    %1709 = vmatpush1.msra.mxu0 %v1572
    %1710 = vmatprep.subr.mxu0 %v1579
    %1711 = vmatpush1.msra.mxu0 %v1578
    %1712 = vmatprep.subr.mxu0 %v1585
    %1713 = vmatpush1.msra.mxu0 %v1584
    %1714 = vmatprep.subr.mxu0 %v1591
    %1715 = vmatpush1.msra.mxu0 %v1590
    %1716 = vmatprep.subr.mxu0 %v1597
    %1717 = vmatpush1.msra.mxu0 %v1596
    %1718 = vmatprep.subr.mxu0 %v1603
    %1719 = vmatpush1.msra.mxu0 %v1602
    %1720 = vmatprep.subr.mxu0 %v1609
    %1721 = vmatpush1.msra.mxu0 %v1608
    %1722 = vmatprep.subr.mxu0 %v1615
    %1723 = vmatpush1.msra.mxu0 %v1614
    %1724 = vmatprep.subr.mxu0 %v1621
    %1725 = vmatpush1.msra.mxu0 %v1620
    %1726 = vmatprep.subr.mxu0 %v1627
    %1727 = vmatpush1.msra.mxu0 %v1626
    %1728 = vmatprep.subr.mxu0 %v1633
    %1729 = vmatpush1.msra.mxu0 %v1632
    %1730 = vmatprep.subr.mxu0 %v1639
    %1731 = vmatpush1.msra.mxu0 %v1638
    %1732 = vmatprep.subr.mxu0 %v1645
    %1733 = vmatpush1.msra.mxu0 %v1644
    %1734 = vmatprep.subr.mxu0 %v1651
    %1735 = vmatpush1.msra.mxu0 %v1650
    %1736 = vmatprep.subr.mxu0 %v1657
    %1737 = vmatpush1.msra.mxu0 %v1656
    %1738 = vmatprep.subr.mxu0 %v1663
    %1739 = vmatpush1.msra.mxu0 %v1662
    %1740 = vmatprep.subr.mxu0 %v1669
    %1741 = vmatpush1.msra.mxu0 %v1668
    %1742 = vmatprep.subr.mxu0 %v1675
    %1743 = vmatpush1.msra.mxu0 %v1674
    %1744 = vmatprep.mubr.f32.mxu0 %v1477
    %1745 = vmatmul.mubr.f32.gmra.mrb[0].mxu0 %v1476
    %v1746 = vpop.f32.mrb[0].mxu0
    %v1747 = vadd.f32 0.0, %v1746
    %v1748 = vpop.f32.mrb[0].mxu0
    %v1749 = vadd.f32 0.0, %v1748
    %1750 = vdwg.mxu0
    %1751 = vmatprep.subr.mxu0 %v1491
    %1752 = vmatpush1.msra.mxu0 %v1490
    %1753 = vmatprep.subr.mxu0 %v1497
    %1754 = vmatpush1.msra.mxu0 %v1496
    %1755 = vmatprep.subr.mxu0 %v1503
    %1756 = vmatpush1.msra.mxu0 %v1502
    %1757 = vmatprep.subr.mxu0 %v1509
    %1758 = vmatpush1.msra.mxu0 %v1508
    %1759 = vmatprep.subr.mxu0 %v1515
    %1760 = vmatpush1.msra.mxu0 %v1514
    %1761 = vmatprep.subr.mxu0 %v1521
    %1762 = vmatpush1.msra.mxu0 %v1520
    %1763 = vmatprep.subr.mxu0 %v1527
    %1764 = vmatpush1.msra.mxu0 %v1526
    %1765 = vmatprep.subr.mxu0 %v1533
    %1766 = vmatpush1.msra.mxu0 %v1532
    %1767 = vmatprep.subr.mxu0 %v1539
    %1768 = vmatpush1.msra.mxu0 %v1538
    %1769 = vmatprep.subr.mxu0 %v1545
    %1770 = vmatpush1.msra.mxu0 %v1544
    %1771 = vmatprep.subr.mxu0 %v1551
    %1772 = vmatpush1.msra.mxu0 %v1550
    %1773 = vmatprep.subr.mxu0 %v1557
    %1774 = vmatpush1.msra.mxu0 %v1556
    %1775 = vmatprep.subr.mxu0 %v1563
    %1776 = vmatpush1.msra.mxu0 %v1562
    %1777 = vmatprep.subr.mxu0 %v1569
    %1778 = vmatpush1.msra.mxu0 %v1568
    %1779 = vmatprep.subr.mxu0 %v1575
    %1780 = vmatpush1.msra.mxu0 %v1574
    %1781 = vmatprep.subr.mxu0 %v1581
    %1782 = vmatpush1.msra.mxu0 %v1580
    %1783 = vmatprep.subr.mxu0 %v1587
    %1784 = vmatpush1.msra.mxu0 %v1586
    %1785 = vmatprep.subr.mxu0 %v1593
    %1786 = vmatpush1.msra.mxu0 %v1592
    %1787 = vmatprep.subr.mxu0 %v1599
    %1788 = vmatpush1.msra.mxu0 %v1598
    %1789 = vmatprep.subr.mxu0 %v1605
    %1790 = vmatpush1.msra.mxu0 %v1604
    %1791 = vmatprep.subr.mxu0 %v1611
    %1792 = vmatpush1.msra.mxu0 %v1610
    %1793 = vmatprep.subr.mxu0 %v1617
    %1794 = vmatpush1.msra.mxu0 %v1616
    %1795 = vmatprep.subr.mxu0 %v1623
    %1796 = vmatpush1.msra.mxu0 %v1622
    %1797 = vmatprep.subr.mxu0 %v1629
    %1798 = vmatpush1.msra.mxu0 %v1628
    %1799 = vmatprep.subr.mxu0 %v1635
    %1800 = vmatpush1.msra.mxu0 %v1634
    %1801 = vmatprep.subr.mxu0 %v1641
    %1802 = vmatpush1.msra.mxu0 %v1640
    %1803 = vmatprep.subr.mxu0 %v1647
    %1804 = vmatpush1.msra.mxu0 %v1646
    %1805 = vmatprep.subr.mxu0 %v1653
    %1806 = vmatpush1.msra.mxu0 %v1652
    %1807 = vmatprep.subr.mxu0 %v1659
    %1808 = vmatpush1.msra.mxu0 %v1658
    %1809 = vmatprep.subr.mxu0 %v1665
    %1810 = vmatpush1.msra.mxu0 %v1664
    %1811 = vmatprep.subr.mxu0 %v1671
    %1812 = vmatpush1.msra.mxu0 %v1670
    %1813 = vmatprep.subr.mxu0 %v1677
    %1814 = vmatpush1.msra.mxu0 %v1676
    %1815 = vmatprep.mubr.f32.mxu0 %v1477
    %1816 = vmatmul.mubr.f32.gmra.mrb[0].mxu0 %v1476
    %v1817 = vpop.f32.mrb[0].mxu0
    %v1818 = vadd.f32 0.0, %v1817
    %v1819 = vpop.f32.mrb[0].mxu0
    %v1820 = vadd.f32 0.0, %v1819
    %1821 = vdwg.mxu0
    %1822 = vmatprep.subr.mxu0 %v1493
    %1823 = vmatpush1.msra.mxu0 %v1492
    %1824 = vmatprep.subr.mxu0 %v1499
    %1825 = vmatpush1.msra.mxu0 %v1498
    %1826 = vmatprep.subr.mxu0 %v1505
    %1827 = vmatpush1.msra.mxu0 %v1504
    %1828 = vmatprep.subr.mxu0 %v1511
    %1829 = vmatpush1.msra.mxu0 %v1510
    %1830 = vmatprep.subr.mxu0 %v1517
    %1831 = vmatpush1.msra.mxu0 %v1516
    %1832 = vmatprep.subr.mxu0 %v1523
    %1833 = vmatpush1.msra.mxu0 %v1522
    %1834 = vmatprep.subr.mxu0 %v1529
    %1835 = vmatpush1.msra.mxu0 %v1528
    %1836 = vmatprep.subr.mxu0 %v1535
    %1837 = vmatpush1.msra.mxu0 %v1534
    %1838 = vmatprep.subr.mxu0 %v1541
    %1839 = vmatpush1.msra.mxu0 %v1540
    %1840 = vmatprep.subr.mxu0 %v1547
    %1841 = vmatpush1.msra.mxu0 %v1546
    %1842 = vmatprep.subr.mxu0 %v1553
    %1843 = vmatpush1.msra.mxu0 %v1552
    %1844 = vmatprep.subr.mxu0 %v1559
    %1845 = vmatpush1.msra.mxu0 %v1558
    %1846 = vmatprep.subr.mxu0 %v1565
    %1847 = vmatpush1.msra.mxu0 %v1564
    %1848 = vmatprep.subr.mxu0 %v1571
    %1849 = vmatpush1.msra.mxu0 %v1570
    %1850 = vmatprep.subr.mxu0 %v1577
    %1851 = vmatpush1.msra.mxu0 %v1576
    %1852 = vmatprep.subr.mxu0 %v1583
    %1853 = vmatpush1.msra.mxu0 %v1582
    %1854 = vmatprep.subr.mxu0 %v1589
    %1855 = vmatpush1.msra.mxu0 %v1588
    %1856 = vmatprep.subr.mxu0 %v1595
    %1857 = vmatpush1.msra.mxu0 %v1594
    %1858 = vmatprep.subr.mxu0 %v1601
    %1859 = vmatpush1.msra.mxu0 %v1600
    %1860 = vmatprep.subr.mxu0 %v1607
    %1861 = vmatpush1.msra.mxu0 %v1606
    %1862 = vmatprep.subr.mxu0 %v1613
    %1863 = vmatpush1.msra.mxu0 %v1612
    %1864 = vmatprep.subr.mxu0 %v1619
    %1865 = vmatpush1.msra.mxu0 %v1618
    %1866 = vmatprep.subr.mxu0 %v1625
    %1867 = vmatpush1.msra.mxu0 %v1624
    %1868 = vmatprep.subr.mxu0 %v1631
    %1869 = vmatpush1.msra.mxu0 %v1630
    %1870 = vmatprep.subr.mxu0 %v1637
    %1871 = vmatpush1.msra.mxu0 %v1636
    %1872 = vmatprep.subr.mxu0 %v1643
    %1873 = vmatpush1.msra.mxu0 %v1642
    %1874 = vmatprep.subr.mxu0 %v1649
    %1875 = vmatpush1.msra.mxu0 %v1648
    %1876 = vmatprep.subr.mxu0 %v1655
    %1877 = vmatpush1.msra.mxu0 %v1654
    %1878 = vmatprep.subr.mxu0 %v1661
    %1879 = vmatpush1.msra.mxu0 %v1660
    %1880 = vmatprep.subr.mxu0 %v1667
    %1881 = vmatpush1.msra.mxu0 %v1666
    %1882 = vmatprep.subr.mxu0 %v1673
    %1883 = vmatpush1.msra.mxu0 %v1672
    %1884 = vmatprep.subr.mxu0 %v1679
    %1885 = vmatpush1.msra.mxu0 %v1678
    %1886 = vmatprep.mubr.f32.mxu0 %v1477
    %1887 = vmatmul.mubr.f32.gmra.mrb[0].mxu0 %v1476
    %v1888 = vpop.f32.mrb[0].mxu0
    %v1889 = vadd.f32 0.0, %v1888
    %v1890 = vpop.f32.mrb[0].mxu0
    %v1891 = vadd.f32 0.0, %v1890
    %1892 = vdwg.mxu0
    %v1893 = vadd.f32 %v1482, %v1747
    %v1894 = vadd.f32 %v1483, %v1749
    %v1895 = vadd.f32 %v1484, %v1818
    %v1896 = vadd.f32 %v1485, %v1820
    %v1897 = vxor.u32 %v1893, 2147483648
    %v1898 = vxor.u32 %v1894, 2147483648
    %v1899 = vxor.u32 %v1895, 2147483648
    %v1900 = vxor.u32 %v1896, 2147483648
    %v1901 = vmul.f32 %v1897, 1.442695
    %v1902 = vpow.pop %v1901
    %v1903 = vmul.f32 %v1898, 1.442695
    %v1904 = vpow.pop %v1903
    %v1905 = vmul.f32 %v1899, 1.442695
    %v1906 = vpow.pop %v1905
    %v1907 = vmul.f32 %v1900, 1.442695
    %v1908 = vpow.pop %v1907
    %v1909 = vadd.f32 %v1902, 1.0
    %v1910 = vadd.f32 %v1904, 1.0
    %v1911 = vadd.f32 %v1906, 1.0
    %v1912 = vadd.f32 %v1908, 1.0
    %v1913 = vrcp.pop %v1909
    %v1914 = vmul.f32 1.0, %v1913
    %v1915 = vrcp.pop %v1910
    %v1916 = vmul.f32 1.0, %v1915
    %v1917 = vrcp.pop %v1911
    %v1918 = vmul.f32 1.0, %v1917
    %v1919 = vrcp.pop %v1912
    %v1920 = vmul.f32 1.0, %v1919
    %v1921 = vld [vmem:[%s3] sm:$0x3]
    %v1923 = vlaneseq
    %v1924 = vshrl.u32 %v1923, 7
    %v1925 = vsub.s32 0, %v1924
    %v1926 = vrot.slane %v1921, %v1925
    %v1927 = vlaneseq
    %v1928 = vshrl.u32 %v1927, 7
    %v1929 = vsub.s32 1, %v1928
    %v1930 = vrot.slane %v1921, %v1929
    %v1933 = vadd.f32 %v1889, %v1926
    %v1934 = vadd.f32 %v1891, %v1930
    %v1935 = vmul.f32 %v1914, %v1933
    %v1936 = vmul.f32 %v1916, %v1934
    %v1937 = vadd.f32 %v1486, %v1935
    %v1938 = vadd.f32 %v1487, %v1936
    %v1939 = vtanh.pop %v1937
    %v1940 = vtanh.pop %v1938
    %v1941 = vsub.f32 1.0, %v1918
    %v1942 = vsub.f32 1.0, %v1920
    %v1943 = vmul.f32 %v1941, %v1939
    %v1944 = vmul.f32 %v1942, %v1940
    %v1945 = vmul.f32 %v1918, %v1476
    %v1946 = vmul.f32 %v1920, %v1477
    %v1947 = vadd.f32 %v1943, %v1945
    %v1948 = vadd.f32 %v1944, %v1946
    %s1949 = scalar_lea.vmem [#allocation9], 48
    %1950 = vst [vmem:[%s1949] sm:$0xff] %v1947
    %1951 = vst [vmem:[%s1949 + $0x8] sm:$0xff] %v1948
    %s1952 = scalar_lea.vmem [#allocation3], 192
    %v1953 = vld [vmem:[%s1952] sm:$0xff]
    %v1954 = vld [vmem:[%s1952 + $0x8] sm:$0xff]
    %v1955 = vld [vmem:[%s1952 + $0x10] sm:$0xff]
    %v1956 = vld [vmem:[%s1952 + $0x18] sm:$0xff]
    %v1957 = vld [vmem:[%s1952 + $0x20] sm:$0xff]
    %v1958 = vld [vmem:[%s1952 + $0x28] sm:$0xff]
    %v1959 = vld [vmem:[#allocation8] sm:$0xff]
    %v1960 = vld [vmem:[#allocation8 + $0x8] sm:$0xff]
    %v1961 = vld [vmem:[#allocation8 + $0x10] sm:$0xff]
    %v1962 = vld [vmem:[#allocation8 + $0x18] sm:$0xff]
    %v1963 = vld [vmem:[#allocation8 + $0x20] sm:$0xff]
    %v1964 = vld [vmem:[#allocation8 + $0x28] sm:$0xff]
    %v1965 = vld [vmem:[#allocation8 + $0x30] sm:$0xff]
    %v1966 = vld [vmem:[#allocation8 + $0x38] sm:$0xff]
    %v1967 = vld [vmem:[#allocation8 + $0x40] sm:$0xff]
    %v1968 = vld [vmem:[#allocation8 + $0x48] sm:$0xff]
    %v1969 = vld [vmem:[#allocation8 + $0x50] sm:$0xff]
    %v1970 = vld [vmem:[#allocation8 + $0x58] sm:$0xff]
    %v1971 = vld [vmem:[#allocation8 + $0x60] sm:$0xff]
    %v1972 = vld [vmem:[#allocation8 + $0x68] sm:$0xff]
    %v1973 = vld [vmem:[#allocation8 + $0x70] sm:$0xff]
    %v1974 = vld [vmem:[#allocation8 + $0x78] sm:$0xff]
    %v1975 = vld [vmem:[#allocation8 + $0x80] sm:$0xff]
    %v1976 = vld [vmem:[#allocation8 + $0x88] sm:$0xff]
    %v1977 = vld [vmem:[#allocation8 + $0x90] sm:$0xff]
    %v1978 = vld [vmem:[#allocation8 + $0x98] sm:$0xff]
    %v1979 = vld [vmem:[#allocation8 + $0xa0] sm:$0xff]
    %v1980 = vld [vmem:[#allocation8 + $0xa8] sm:$0xff]
    %v1981 = vld [vmem:[#allocation8 + $0xb0] sm:$0xff]
    %v1982 = vld [vmem:[#allocation8 + $0xb8] sm:$0xff]
    %v1983 = vld [vmem:[#allocation8 + $0xc0] sm:$0xff]
    %v1984 = vld [vmem:[#allocation8 + $0xc8] sm:$0xff]
    %v1985 = vld [vmem:[#allocation8 + $0xd0] sm:$0xff]
    %v1986 = vld [vmem:[#allocation8 + $0xd8] sm:$0xff]
    %v1987 = vld [vmem:[#allocation8 + $0xe0] sm:$0xff]
    %v1988 = vld [vmem:[#allocation8 + $0xe8] sm:$0xff]
    %v1989 = vld [vmem:[#allocation8 + $0xf0] sm:$0xff]
    %v1990 = vld [vmem:[#allocation8 + $0xf8] sm:$0xff]
    %v1991 = vld [vmem:[#allocation8 + $0x100] sm:$0xff]
    %v1992 = vld [vmem:[#allocation8 + $0x108] sm:$0xff]
    %v1993 = vld [vmem:[#allocation8 + $0x110] sm:$0xff]
    %v1994 = vld [vmem:[#allocation8 + $0x118] sm:$0xff]
    %v1995 = vld [vmem:[#allocation8 + $0x120] sm:$0xff]
    %v1996 = vld [vmem:[#allocation8 + $0x128] sm:$0xff]
    %v1997 = vld [vmem:[#allocation8 + $0x130] sm:$0xff]
    %v1998 = vld [vmem:[#allocation8 + $0x138] sm:$0xff]
    %v1999 = vld [vmem:[#allocation8 + $0x140] sm:$0xff]
    %v2000 = vld [vmem:[#allocation8 + $0x148] sm:$0xff]
    %v2001 = vld [vmem:[#allocation8 + $0x150] sm:$0xff]
    %v2002 = vld [vmem:[#allocation8 + $0x158] sm:$0xff]
    %v2003 = vld [vmem:[#allocation8 + $0x160] sm:$0xff]
    %v2004 = vld [vmem:[#allocation8 + $0x168] sm:$0xff]
    %v2005 = vld [vmem:[#allocation8 + $0x170] sm:$0xff]
    %v2006 = vld [vmem:[#allocation8 + $0x178] sm:$0xff]
    %v2007 = vld [vmem:[#allocation8 + $0x180] sm:$0xff]
    %v2008 = vld [vmem:[#allocation8 + $0x188] sm:$0xff]
    %v2009 = vld [vmem:[#allocation8 + $0x190] sm:$0xff]
    %v2010 = vld [vmem:[#allocation8 + $0x198] sm:$0xff]
    %v2011 = vld [vmem:[#allocation8 + $0x1a0] sm:$0xff]
    %v2012 = vld [vmem:[#allocation8 + $0x1a8] sm:$0xff]
    %v2013 = vld [vmem:[#allocation8 + $0x1b0] sm:$0xff]
    %v2014 = vld [vmem:[#allocation8 + $0x1b8] sm:$0xff]
    %v2015 = vld [vmem:[#allocation8 + $0x1c0] sm:$0xff]
    %v2016 = vld [vmem:[#allocation8 + $0x1c8] sm:$0xff]
    %v2017 = vld [vmem:[#allocation8 + $0x1d0] sm:$0xff]
    %v2018 = vld [vmem:[#allocation8 + $0x1d8] sm:$0xff]
    %v2019 = vld [vmem:[#allocation8 + $0x1e0] sm:$0xff]
    %v2020 = vld [vmem:[#allocation8 + $0x1e8] sm:$0xff]
    %v2021 = vld [vmem:[#allocation8 + $0x1f0] sm:$0xff]
    %v2022 = vld [vmem:[#allocation8 + $0x1f8] sm:$0xff]
    %v2023 = vld [vmem:[#allocation8 + $0x200] sm:$0xff]
    %v2024 = vld [vmem:[#allocation8 + $0x208] sm:$0xff]
    %v2025 = vld [vmem:[#allocation8 + $0x210] sm:$0xff]
    %v2026 = vld [vmem:[#allocation8 + $0x218] sm:$0xff]
    %v2027 = vld [vmem:[#allocation8 + $0x220] sm:$0xff]
    %v2028 = vld [vmem:[#allocation8 + $0x228] sm:$0xff]
    %v2029 = vld [vmem:[#allocation8 + $0x230] sm:$0xff]
    %v2030 = vld [vmem:[#allocation8 + $0x238] sm:$0xff]
    %v2031 = vld [vmem:[#allocation8 + $0x240] sm:$0xff]
    %v2032 = vld [vmem:[#allocation8 + $0x248] sm:$0xff]
    %v2033 = vld [vmem:[#allocation8 + $0x250] sm:$0xff]
    %v2034 = vld [vmem:[#allocation8 + $0x258] sm:$0xff]
    %v2035 = vld [vmem:[#allocation8 + $0x260] sm:$0xff]
    %v2036 = vld [vmem:[#allocation8 + $0x268] sm:$0xff]
    %v2037 = vld [vmem:[#allocation8 + $0x270] sm:$0xff]
    %v2038 = vld [vmem:[#allocation8 + $0x278] sm:$0xff]
    %v2039 = vld [vmem:[#allocation8 + $0x280] sm:$0xff]
    %v2040 = vld [vmem:[#allocation8 + $0x288] sm:$0xff]
    %v2041 = vld [vmem:[#allocation8 + $0x290] sm:$0xff]
    %v2042 = vld [vmem:[#allocation8 + $0x298] sm:$0xff]
    %v2043 = vld [vmem:[#allocation8 + $0x2a0] sm:$0xff]
    %v2044 = vld [vmem:[#allocation8 + $0x2a8] sm:$0xff]
    %v2045 = vld [vmem:[#allocation8 + $0x2b0] sm:$0xff]
    %v2046 = vld [vmem:[#allocation8 + $0x2b8] sm:$0xff]
    %v2047 = vld [vmem:[#allocation8 + $0x2c0] sm:$0xff]
    %v2048 = vld [vmem:[#allocation8 + $0x2c8] sm:$0xff]
    %v2049 = vld [vmem:[#allocation8 + $0x2d0] sm:$0xff]
    %v2050 = vld [vmem:[#allocation8 + $0x2d8] sm:$0xff]
    %v2051 = vld [vmem:[#allocation8 + $0x2e0] sm:$0xff]
    %v2052 = vld [vmem:[#allocation8 + $0x2e8] sm:$0xff]
    %v2053 = vld [vmem:[#allocation8 + $0x2f0] sm:$0xff]
    %v2054 = vld [vmem:[#allocation8 + $0x2f8] sm:$0xff]
    %v2055 = vld [vmem:[#allocation8 + $0x300] sm:$0xff]
    %v2056 = vld [vmem:[#allocation8 + $0x308] sm:$0xff]
    %v2057 = vld [vmem:[#allocation8 + $0x310] sm:$0xff]
    %v2058 = vld [vmem:[#allocation8 + $0x318] sm:$0xff]
    %v2059 = vld [vmem:[#allocation8 + $0x320] sm:$0xff]
    %v2060 = vld [vmem:[#allocation8 + $0x328] sm:$0xff]
    %v2061 = vld [vmem:[#allocation8 + $0x330] sm:$0xff]
    %v2062 = vld [vmem:[#allocation8 + $0x338] sm:$0xff]
    %v2063 = vld [vmem:[#allocation8 + $0x340] sm:$0xff]
    %v2064 = vld [vmem:[#allocation8 + $0x348] sm:$0xff]
    %v2065 = vld [vmem:[#allocation8 + $0x350] sm:$0xff]
    %v2066 = vld [vmem:[#allocation8 + $0x358] sm:$0xff]
    %v2067 = vld [vmem:[#allocation8 + $0x360] sm:$0xff]
    %v2068 = vld [vmem:[#allocation8 + $0x368] sm:$0xff]
    %v2069 = vld [vmem:[#allocation8 + $0x370] sm:$0xff]
    %v2070 = vld [vmem:[#allocation8 + $0x378] sm:$0xff]
    %v2071 = vld [vmem:[#allocation8 + $0x380] sm:$0xff]
    %v2072 = vld [vmem:[#allocation8 + $0x388] sm:$0xff]
    %v2073 = vld [vmem:[#allocation8 + $0x390] sm:$0xff]
    %v2074 = vld [vmem:[#allocation8 + $0x398] sm:$0xff]
    %v2075 = vld [vmem:[#allocation8 + $0x3a0] sm:$0xff]
    %v2076 = vld [vmem:[#allocation8 + $0x3a8] sm:$0xff]
    %v2077 = vld [vmem:[#allocation8 + $0x3b0] sm:$0xff]
    %v2078 = vld [vmem:[#allocation8 + $0x3b8] sm:$0xff]
    %v2079 = vld [vmem:[#allocation8 + $0x3c0] sm:$0xff]
    %v2080 = vld [vmem:[#allocation8 + $0x3c8] sm:$0xff]
    %v2081 = vld [vmem:[#allocation8 + $0x3d0] sm:$0xff]
    %v2082 = vld [vmem:[#allocation8 + $0x3d8] sm:$0xff]
    %v2083 = vld [vmem:[#allocation8 + $0x3e0] sm:$0xff]
    %v2084 = vld [vmem:[#allocation8 + $0x3e8] sm:$0xff]
    %v2085 = vld [vmem:[#allocation8 + $0x3f0] sm:$0xff]
    %v2086 = vld [vmem:[#allocation8 + $0x3f8] sm:$0xff]
    %v2087 = vld [vmem:[#allocation8 + $0x400] sm:$0xff]
    %v2088 = vld [vmem:[#allocation8 + $0x408] sm:$0xff]
    %v2089 = vld [vmem:[#allocation8 + $0x410] sm:$0xff]
    %v2090 = vld [vmem:[#allocation8 + $0x418] sm:$0xff]
    %v2091 = vld [vmem:[#allocation8 + $0x420] sm:$0xff]
    %v2092 = vld [vmem:[#allocation8 + $0x428] sm:$0xff]
    %v2093 = vld [vmem:[#allocation8 + $0x430] sm:$0xff]
    %v2094 = vld [vmem:[#allocation8 + $0x438] sm:$0xff]
    %v2095 = vld [vmem:[#allocation8 + $0x440] sm:$0xff]
    %v2096 = vld [vmem:[#allocation8 + $0x448] sm:$0xff]
    %v2097 = vld [vmem:[#allocation8 + $0x450] sm:$0xff]
    %v2098 = vld [vmem:[#allocation8 + $0x458] sm:$0xff]
    %v2099 = vld [vmem:[#allocation8 + $0x460] sm:$0xff]
    %v2100 = vld [vmem:[#allocation8 + $0x468] sm:$0xff]
    %v2101 = vld [vmem:[#allocation8 + $0x470] sm:$0xff]
    %v2102 = vld [vmem:[#allocation8 + $0x478] sm:$0xff]
    %v2103 = vld [vmem:[#allocation8 + $0x480] sm:$0xff]
    %v2104 = vld [vmem:[#allocation8 + $0x488] sm:$0xff]
    %v2105 = vld [vmem:[#allocation8 + $0x490] sm:$0xff]
    %v2106 = vld [vmem:[#allocation8 + $0x498] sm:$0xff]
    %v2107 = vld [vmem:[#allocation8 + $0x4a0] sm:$0xff]
    %v2108 = vld [vmem:[#allocation8 + $0x4a8] sm:$0xff]
    %v2109 = vld [vmem:[#allocation8 + $0x4b0] sm:$0xff]
    %v2110 = vld [vmem:[#allocation8 + $0x4b8] sm:$0xff]
    %v2111 = vld [vmem:[#allocation8 + $0x4c0] sm:$0xff]
    %v2112 = vld [vmem:[#allocation8 + $0x4c8] sm:$0xff]
    %v2113 = vld [vmem:[#allocation8 + $0x4d0] sm:$0xff]
    %v2114 = vld [vmem:[#allocation8 + $0x4d8] sm:$0xff]
    %v2115 = vld [vmem:[#allocation8 + $0x4e0] sm:$0xff]
    %v2116 = vld [vmem:[#allocation8 + $0x4e8] sm:$0xff]
    %v2117 = vld [vmem:[#allocation8 + $0x4f0] sm:$0xff]
    %v2118 = vld [vmem:[#allocation8 + $0x4f8] sm:$0xff]
    %v2119 = vld [vmem:[#allocation8 + $0x500] sm:$0xff]
    %v2120 = vld [vmem:[#allocation8 + $0x508] sm:$0xff]
    %v2121 = vld [vmem:[#allocation8 + $0x510] sm:$0xff]
    %v2122 = vld [vmem:[#allocation8 + $0x518] sm:$0xff]
    %v2123 = vld [vmem:[#allocation8 + $0x520] sm:$0xff]
    %v2124 = vld [vmem:[#allocation8 + $0x528] sm:$0xff]
    %v2125 = vld [vmem:[#allocation8 + $0x530] sm:$0xff]
    %v2126 = vld [vmem:[#allocation8 + $0x538] sm:$0xff]
    %v2127 = vld [vmem:[#allocation8 + $0x540] sm:$0xff]
    %v2128 = vld [vmem:[#allocation8 + $0x548] sm:$0xff]
    %v2129 = vld [vmem:[#allocation8 + $0x550] sm:$0xff]
    %v2130 = vld [vmem:[#allocation8 + $0x558] sm:$0xff]
    %v2131 = vld [vmem:[#allocation8 + $0x560] sm:$0xff]
    %v2132 = vld [vmem:[#allocation8 + $0x568] sm:$0xff]
    %v2133 = vld [vmem:[#allocation8 + $0x570] sm:$0xff]
    %v2134 = vld [vmem:[#allocation8 + $0x578] sm:$0xff]
    %v2135 = vld [vmem:[#allocation8 + $0x580] sm:$0xff]
    %v2136 = vld [vmem:[#allocation8 + $0x588] sm:$0xff]
    %v2137 = vld [vmem:[#allocation8 + $0x590] sm:$0xff]
    %v2138 = vld [vmem:[#allocation8 + $0x598] sm:$0xff]
    %v2139 = vld [vmem:[#allocation8 + $0x5a0] sm:$0xff]
    %v2140 = vld [vmem:[#allocation8 + $0x5a8] sm:$0xff]
    %v2141 = vld [vmem:[#allocation8 + $0x5b0] sm:$0xff]
    %v2142 = vld [vmem:[#allocation8 + $0x5b8] sm:$0xff]
    %v2143 = vld [vmem:[#allocation8 + $0x5c0] sm:$0xff]
    %v2144 = vld [vmem:[#allocation8 + $0x5c8] sm:$0xff]
    %v2145 = vld [vmem:[#allocation8 + $0x5d0] sm:$0xff]
    %v2146 = vld [vmem:[#allocation8 + $0x5d8] sm:$0xff]
    %v2147 = vld [vmem:[#allocation8 + $0x5e0] sm:$0xff]
    %v2148 = vld [vmem:[#allocation8 + $0x5e8] sm:$0xff]
    %v2149 = vld [vmem:[#allocation8 + $0x5f0] sm:$0xff]
    %v2150 = vld [vmem:[#allocation8 + $0x5f8] sm:$0xff]
    %2151 = vmatprep.subr.mxu0 %v1960
    %2152 = vmatpush1.msra.mxu0 %v1959
    %2153 = vmatprep.subr.mxu0 %v1966
    %2154 = vmatpush1.msra.mxu0 %v1965
    %2155 = vmatprep.subr.mxu0 %v1972
    %2156 = vmatpush1.msra.mxu0 %v1971
    %2157 = vmatprep.subr.mxu0 %v1978
    %2158 = vmatpush1.msra.mxu0 %v1977
    %2159 = vmatprep.subr.mxu0 %v1984
    %2160 = vmatpush1.msra.mxu0 %v1983
    %2161 = vmatprep.subr.mxu0 %v1990
    %2162 = vmatpush1.msra.mxu0 %v1989
    %2163 = vmatprep.subr.mxu0 %v1996
    %2164 = vmatpush1.msra.mxu0 %v1995
    %2165 = vmatprep.subr.mxu0 %v2002
    %2166 = vmatpush1.msra.mxu0 %v2001
    %2167 = vmatprep.subr.mxu0 %v2008
    %2168 = vmatpush1.msra.mxu0 %v2007
    %2169 = vmatprep.subr.mxu0 %v2014
    %2170 = vmatpush1.msra.mxu0 %v2013
    %2171 = vmatprep.subr.mxu0 %v2020
    %2172 = vmatpush1.msra.mxu0 %v2019
    %2173 = vmatprep.subr.mxu0 %v2026
    %2174 = vmatpush1.msra.mxu0 %v2025
    %2175 = vmatprep.subr.mxu0 %v2032
    %2176 = vmatpush1.msra.mxu0 %v2031
    %2177 = vmatprep.subr.mxu0 %v2038
    %2178 = vmatpush1.msra.mxu0 %v2037
    %2179 = vmatprep.subr.mxu0 %v2044
    %2180 = vmatpush1.msra.mxu0 %v2043
    %2181 = vmatprep.subr.mxu0 %v2050
    %2182 = vmatpush1.msra.mxu0 %v2049
    %2183 = vmatprep.subr.mxu0 %v2056
    %2184 = vmatpush1.msra.mxu0 %v2055
    %2185 = vmatprep.subr.mxu0 %v2062
    %2186 = vmatpush1.msra.mxu0 %v2061
    %2187 = vmatprep.subr.mxu0 %v2068
    %2188 = vmatpush1.msra.mxu0 %v2067
    %2189 = vmatprep.subr.mxu0 %v2074
    %2190 = vmatpush1.msra.mxu0 %v2073
    %2191 = vmatprep.subr.mxu0 %v2080
    %2192 = vmatpush1.msra.mxu0 %v2079
    %2193 = vmatprep.subr.mxu0 %v2086
    %2194 = vmatpush1.msra.mxu0 %v2085
    %2195 = vmatprep.subr.mxu0 %v2092
    %2196 = vmatpush1.msra.mxu0 %v2091
    %2197 = vmatprep.subr.mxu0 %v2098
    %2198 = vmatpush1.msra.mxu0 %v2097
    %2199 = vmatprep.subr.mxu0 %v2104
    %2200 = vmatpush1.msra.mxu0 %v2103
    %2201 = vmatprep.subr.mxu0 %v2110
    %2202 = vmatpush1.msra.mxu0 %v2109
    %2203 = vmatprep.subr.mxu0 %v2116
    %2204 = vmatpush1.msra.mxu0 %v2115
    %2205 = vmatprep.subr.mxu0 %v2122
    %2206 = vmatpush1.msra.mxu0 %v2121
    %2207 = vmatprep.subr.mxu0 %v2128
    %2208 = vmatpush1.msra.mxu0 %v2127
    %2209 = vmatprep.subr.mxu0 %v2134
    %2210 = vmatpush1.msra.mxu0 %v2133
    %2211 = vmatprep.subr.mxu0 %v2140
    %2212 = vmatpush1.msra.mxu0 %v2139
    %2213 = vmatprep.subr.mxu0 %v2146
    %2214 = vmatpush1.msra.mxu0 %v2145
    %2215 = vmatprep.mubr.f32.mxu0 %v1948
    %2216 = vmatmul.mubr.f32.gmra.mrb[0].mxu0 %v1947
    %v2217 = vpop.f32.mrb[0].mxu0
    %v2218 = vadd.f32 0.0, %v2217
    %v2219 = vpop.f32.mrb[0].mxu0
    %v2220 = vadd.f32 0.0, %v2219
    %2221 = vdwg.mxu0
    %2222 = vmatprep.subr.mxu0 %v1962
    %2223 = vmatpush1.msra.mxu0 %v1961
    %2224 = vmatprep.subr.mxu0 %v1968
    %2225 = vmatpush1.msra.mxu0 %v1967
    %2226 = vmatprep.subr.mxu0 %v1974
    %2227 = vmatpush1.msra.mxu0 %v1973
    %2228 = vmatprep.subr.mxu0 %v1980
    %2229 = vmatpush1.msra.mxu0 %v1979
    %2230 = vmatprep.subr.mxu0 %v1986
    %2231 = vmatpush1.msra.mxu0 %v1985
    %2232 = vmatprep.subr.mxu0 %v1992
    %2233 = vmatpush1.msra.mxu0 %v1991
    %2234 = vmatprep.subr.mxu0 %v1998
    %2235 = vmatpush1.msra.mxu0 %v1997
    %2236 = vmatprep.subr.mxu0 %v2004
    %2237 = vmatpush1.msra.mxu0 %v2003
    %2238 = vmatprep.subr.mxu0 %v2010
    %2239 = vmatpush1.msra.mxu0 %v2009
    %2240 = vmatprep.subr.mxu0 %v2016
    %2241 = vmatpush1.msra.mxu0 %v2015
    %2242 = vmatprep.subr.mxu0 %v2022
    %2243 = vmatpush1.msra.mxu0 %v2021
    %2244 = vmatprep.subr.mxu0 %v2028
    %2245 = vmatpush1.msra.mxu0 %v2027
    %2246 = vmatprep.subr.mxu0 %v2034
    %2247 = vmatpush1.msra.mxu0 %v2033
    %2248 = vmatprep.subr.mxu0 %v2040
    %2249 = vmatpush1.msra.mxu0 %v2039
    %2250 = vmatprep.subr.mxu0 %v2046
    %2251 = vmatpush1.msra.mxu0 %v2045
    %2252 = vmatprep.subr.mxu0 %v2052
    %2253 = vmatpush1.msra.mxu0 %v2051
    %2254 = vmatprep.subr.mxu0 %v2058
    %2255 = vmatpush1.msra.mxu0 %v2057
    %2256 = vmatprep.subr.mxu0 %v2064
    %2257 = vmatpush1.msra.mxu0 %v2063
    %2258 = vmatprep.subr.mxu0 %v2070
    %2259 = vmatpush1.msra.mxu0 %v2069
    %2260 = vmatprep.subr.mxu0 %v2076
    %2261 = vmatpush1.msra.mxu0 %v2075
    %2262 = vmatprep.subr.mxu0 %v2082
    %2263 = vmatpush1.msra.mxu0 %v2081
    %2264 = vmatprep.subr.mxu0 %v2088
    %2265 = vmatpush1.msra.mxu0 %v2087
    %2266 = vmatprep.subr.mxu0 %v2094
    %2267 = vmatpush1.msra.mxu0 %v2093
    %2268 = vmatprep.subr.mxu0 %v2100
    %2269 = vmatpush1.msra.mxu0 %v2099
    %2270 = vmatprep.subr.mxu0 %v2106
    %2271 = vmatpush1.msra.mxu0 %v2105
    %2272 = vmatprep.subr.mxu0 %v2112
    %2273 = vmatpush1.msra.mxu0 %v2111
    %2274 = vmatprep.subr.mxu0 %v2118
    %2275 = vmatpush1.msra.mxu0 %v2117
    %2276 = vmatprep.subr.mxu0 %v2124
    %2277 = vmatpush1.msra.mxu0 %v2123
    %2278 = vmatprep.subr.mxu0 %v2130
    %2279 = vmatpush1.msra.mxu0 %v2129
    %2280 = vmatprep.subr.mxu0 %v2136
    %2281 = vmatpush1.msra.mxu0 %v2135
    %2282 = vmatprep.subr.mxu0 %v2142
    %2283 = vmatpush1.msra.mxu0 %v2141
    %2284 = vmatprep.subr.mxu0 %v2148
    %2285 = vmatpush1.msra.mxu0 %v2147
    %2286 = vmatprep.mubr.f32.mxu0 %v1948
    %2287 = vmatmul.mubr.f32.gmra.mrb[0].mxu0 %v1947
    %v2288 = vpop.f32.mrb[0].mxu0
    %v2289 = vadd.f32 0.0, %v2288
    %v2290 = vpop.f32.mrb[0].mxu0
    %v2291 = vadd.f32 0.0, %v2290
    %2292 = vdwg.mxu0
    %2293 = vmatprep.subr.mxu0 %v1964
    %2294 = vmatpush1.msra.mxu0 %v1963
    %2295 = vmatprep.subr.mxu0 %v1970
    %2296 = vmatpush1.msra.mxu0 %v1969
    %2297 = vmatprep.subr.mxu0 %v1976
    %2298 = vmatpush1.msra.mxu0 %v1975
    %2299 = vmatprep.subr.mxu0 %v1982
    %2300 = vmatpush1.msra.mxu0 %v1981
    %2301 = vmatprep.subr.mxu0 %v1988
    %2302 = vmatpush1.msra.mxu0 %v1987
    %2303 = vmatprep.subr.mxu0 %v1994
    %2304 = vmatpush1.msra.mxu0 %v1993
    %2305 = vmatprep.subr.mxu0 %v2000
    %2306 = vmatpush1.msra.mxu0 %v1999
    %2307 = vmatprep.subr.mxu0 %v2006
    %2308 = vmatpush1.msra.mxu0 %v2005
    %2309 = vmatprep.subr.mxu0 %v2012
    %2310 = vmatpush1.msra.mxu0 %v2011
    %2311 = vmatprep.subr.mxu0 %v2018
    %2312 = vmatpush1.msra.mxu0 %v2017
    %2313 = vmatprep.subr.mxu0 %v2024
    %2314 = vmatpush1.msra.mxu0 %v2023
    %2315 = vmatprep.subr.mxu0 %v2030
    %2316 = vmatpush1.msra.mxu0 %v2029
    %2317 = vmatprep.subr.mxu0 %v2036
    %2318 = vmatpush1.msra.mxu0 %v2035
    %2319 = vmatprep.subr.mxu0 %v2042
    %2320 = vmatpush1.msra.mxu0 %v2041
    %2321 = vmatprep.subr.mxu0 %v2048
    %2322 = vmatpush1.msra.mxu0 %v2047
    %2323 = vmatprep.subr.mxu0 %v2054
    %2324 = vmatpush1.msra.mxu0 %v2053
    %2325 = vmatprep.subr.mxu0 %v2060
    %2326 = vmatpush1.msra.mxu0 %v2059
    %2327 = vmatprep.subr.mxu0 %v2066
    %2328 = vmatpush1.msra.mxu0 %v2065
    %2329 = vmatprep.subr.mxu0 %v2072
    %2330 = vmatpush1.msra.mxu0 %v2071
    %2331 = vmatprep.subr.mxu0 %v2078
    %2332 = vmatpush1.msra.mxu0 %v2077
    %2333 = vmatprep.subr.mxu0 %v2084
    %2334 = vmatpush1.msra.mxu0 %v2083
    %2335 = vmatprep.subr.mxu0 %v2090
    %2336 = vmatpush1.msra.mxu0 %v2089
    %2337 = vmatprep.subr.mxu0 %v2096
    %2338 = vmatpush1.msra.mxu0 %v2095
    %2339 = vmatprep.subr.mxu0 %v2102
    %2340 = vmatpush1.msra.mxu0 %v2101
    %2341 = vmatprep.subr.mxu0 %v2108
    %2342 = vmatpush1.msra.mxu0 %v2107
    %2343 = vmatprep.subr.mxu0 %v2114
    %2344 = vmatpush1.msra.mxu0 %v2113
    %2345 = vmatprep.subr.mxu0 %v2120
    %2346 = vmatpush1.msra.mxu0 %v2119
    %2347 = vmatprep.subr.mxu0 %v2126
    %2348 = vmatpush1.msra.mxu0 %v2125
    %2349 = vmatprep.subr.mxu0 %v2132
    %2350 = vmatpush1.msra.mxu0 %v2131
    %2351 = vmatprep.subr.mxu0 %v2138
    %2352 = vmatpush1.msra.mxu0 %v2137
    %2353 = vmatprep.subr.mxu0 %v2144
    %2354 = vmatpush1.msra.mxu0 %v2143
    %2355 = vmatprep.subr.mxu0 %v2150
    %2356 = vmatpush1.msra.mxu0 %v2149
    %2357 = vmatprep.mubr.f32.mxu0 %v1948
    %2358 = vmatmul.mubr.f32.gmra.mrb[0].mxu0 %v1947
    %v2359 = vpop.f32.mrb[0].mxu0
    %v2360 = vadd.f32 0.0, %v2359
    %v2361 = vpop.f32.mrb[0].mxu0
    %v2362 = vadd.f32 0.0, %v2361
    %2363 = vdwg.mxu0
    %v2364 = vadd.f32 %v1953, %v2218
    %v2365 = vadd.f32 %v1954, %v2220
    %v2366 = vadd.f32 %v1955, %v2289
    %v2367 = vadd.f32 %v1956, %v2291
    %v2368 = vxor.u32 %v2364, 2147483648
    %v2369 = vxor.u32 %v2365, 2147483648
    %v2370 = vxor.u32 %v2366, 2147483648
    %v2371 = vxor.u32 %v2367, 2147483648
    %v2372 = vmul.f32 %v2368, 1.442695
    %v2373 = vpow.pop %v2372
    %v2374 = vmul.f32 %v2369, 1.442695
    %v2375 = vpow.pop %v2374
    %v2376 = vmul.f32 %v2370, 1.442695
    %v2377 = vpow.pop %v2376
    %v2378 = vmul.f32 %v2371, 1.442695
    %v2379 = vpow.pop %v2378
    %v2380 = vadd.f32 %v2373, 1.0
    %v2381 = vadd.f32 %v2375, 1.0
    %v2382 = vadd.f32 %v2377, 1.0
    %v2383 = vadd.f32 %v2379, 1.0
    %v2384 = vrcp.pop %v2380
    %v2385 = vmul.f32 1.0, %v2384
    %v2386 = vrcp.pop %v2381
    %v2387 = vmul.f32 1.0, %v2386
    %v2388 = vrcp.pop %v2382
    %v2389 = vmul.f32 1.0, %v2388
    %v2390 = vrcp.pop %v2383
    %v2391 = vmul.f32 1.0, %v2390
    %v2392 = vld [vmem:[%s3] sm:$0x3]
    %v2394 = vlaneseq
    %v2395 = vshrl.u32 %v2394, 7
    %v2396 = vsub.s32 0, %v2395
    %v2397 = vrot.slane %v2392, %v2396
    %v2398 = vlaneseq
    %v2399 = vshrl.u32 %v2398, 7
    %v2400 = vsub.s32 1, %v2399
    %v2401 = vrot.slane %v2392, %v2400
    %v2404 = vadd.f32 %v2360, %v2397
    %v2405 = vadd.f32 %v2362, %v2401
    %v2406 = vmul.f32 %v2385, %v2404
    %v2407 = vmul.f32 %v2387, %v2405
    %v2408 = vadd.f32 %v1957, %v2406
    %v2409 = vadd.f32 %v1958, %v2407
    %v2410 = vtanh.pop %v2408
    %v2411 = vtanh.pop %v2409
    %v2412 = vsub.f32 1.0, %v2389
    %v2413 = vsub.f32 1.0, %v2391
    %v2414 = vmul.f32 %v2412, %v2410
    %v2415 = vmul.f32 %v2413, %v2411
    %v2416 = vmul.f32 %v2389, %v1947
    %v2417 = vmul.f32 %v2391, %v1948
    %v2418 = vadd.f32 %v2414, %v2416
    %v2419 = vadd.f32 %v2415, %v2417
    %s2420 = scalar_lea.vmem [#allocation9], 64
    %2421 = vst [vmem:[%s2420] sm:$0xff] %v2418
    %2422 = vst [vmem:[%s2420 + $0x8] sm:$0xff] %v2419
    %s2423 = scalar_lea.vmem [#allocation3], 240
    %v2424 = vld [vmem:[%s2423] sm:$0xff]
    %v2425 = vld [vmem:[%s2423 + $0x8] sm:$0xff]
    %v2426 = vld [vmem:[%s2423 + $0x10] sm:$0xff]
    %v2427 = vld [vmem:[%s2423 + $0x18] sm:$0xff]
    %v2428 = vld [vmem:[%s2423 + $0x20] sm:$0xff]
    %v2429 = vld [vmem:[%s2423 + $0x28] sm:$0xff]
    %v2430 = vld [vmem:[#allocation8] sm:$0xff]
    %v2431 = vld [vmem:[#allocation8 + $0x8] sm:$0xff]
    %v2432 = vld [vmem:[#allocation8 + $0x10] sm:$0xff]
    %v2433 = vld [vmem:[#allocation8 + $0x18] sm:$0xff]
    %v2434 = vld [vmem:[#allocation8 + $0x20] sm:$0xff]
    %v2435 = vld [vmem:[#allocation8 + $0x28] sm:$0xff]
    %v2436 = vld [vmem:[#allocation8 + $0x30] sm:$0xff]
    %v2437 = vld [vmem:[#allocation8 + $0x38] sm:$0xff]
    %v2438 = vld [vmem:[#allocation8 + $0x40] sm:$0xff]
    %v2439 = vld [vmem:[#allocation8 + $0x48] sm:$0xff]
    %v2440 = vld [vmem:[#allocation8 + $0x50] sm:$0xff]
    %v2441 = vld [vmem:[#allocation8 + $0x58] sm:$0xff]
    %v2442 = vld [vmem:[#allocation8 + $0x60] sm:$0xff]
    %v2443 = vld [vmem:[#allocation8 + $0x68] sm:$0xff]
    %v2444 = vld [vmem:[#allocation8 + $0x70] sm:$0xff]
    %v2445 = vld [vmem:[#allocation8 + $0x78] sm:$0xff]
    %v2446 = vld [vmem:[#allocation8 + $0x80] sm:$0xff]
    %v2447 = vld [vmem:[#allocation8 + $0x88] sm:$0xff]
    %v2448 = vld [vmem:[#allocation8 + $0x90] sm:$0xff]
    %v2449 = vld [vmem:[#allocation8 + $0x98] sm:$0xff]
    %v2450 = vld [vmem:[#allocation8 + $0xa0] sm:$0xff]
    %v2451 = vld [vmem:[#allocation8 + $0xa8] sm:$0xff]
    %v2452 = vld [vmem:[#allocation8 + $0xb0] sm:$0xff]
    %v2453 = vld [vmem:[#allocation8 + $0xb8] sm:$0xff]
    %v2454 = vld [vmem:[#allocation8 + $0xc0] sm:$0xff]
    %v2455 = vld [vmem:[#allocation8 + $0xc8] sm:$0xff]
    %v2456 = vld [vmem:[#allocation8 + $0xd0] sm:$0xff]
    %v2457 = vld [vmem:[#allocation8 + $0xd8] sm:$0xff]
    %v2458 = vld [vmem:[#allocation8 + $0xe0] sm:$0xff]
    %v2459 = vld [vmem:[#allocation8 + $0xe8] sm:$0xff]
    %v2460 = vld [vmem:[#allocation8 + $0xf0] sm:$0xff]
    %v2461 = vld [vmem:[#allocation8 + $0xf8] sm:$0xff]
    %v2462 = vld [vmem:[#allocation8 + $0x100] sm:$0xff]
    %v2463 = vld [vmem:[#allocation8 + $0x108] sm:$0xff]
    %v2464 = vld [vmem:[#allocation8 + $0x110] sm:$0xff]
    %v2465 = vld [vmem:[#allocation8 + $0x118] sm:$0xff]
    %v2466 = vld [vmem:[#allocation8 + $0x120] sm:$0xff]
    %v2467 = vld [vmem:[#allocation8 + $0x128] sm:$0xff]
    %v2468 = vld [vmem:[#allocation8 + $0x130] sm:$0xff]
    %v2469 = vld [vmem:[#allocation8 + $0x138] sm:$0xff]
    %v2470 = vld [vmem:[#allocation8 + $0x140] sm:$0xff]
    %v2471 = vld [vmem:[#allocation8 + $0x148] sm:$0xff]
    %v2472 = vld [vmem:[#allocation8 + $0x150] sm:$0xff]
    %v2473 = vld [vmem:[#allocation8 + $0x158] sm:$0xff]
    %v2474 = vld [vmem:[#allocation8 + $0x160] sm:$0xff]
    %v2475 = vld [vmem:[#allocation8 + $0x168] sm:$0xff]
    %v2476 = vld [vmem:[#allocation8 + $0x170] sm:$0xff]
    %v2477 = vld [vmem:[#allocation8 + $0x178] sm:$0xff]
    %v2478 = vld [vmem:[#allocation8 + $0x180] sm:$0xff]
    %v2479 = vld [vmem:[#allocation8 + $0x188] sm:$0xff]
    %v2480 = vld [vmem:[#allocation8 + $0x190] sm:$0xff]
    %v2481 = vld [vmem:[#allocation8 + $0x198] sm:$0xff]
    %v2482 = vld [vmem:[#allocation8 + $0x1a0] sm:$0xff]
    %v2483 = vld [vmem:[#allocation8 + $0x1a8] sm:$0xff]
    %v2484 = vld [vmem:[#allocation8 + $0x1b0] sm:$0xff]
    %v2485 = vld [vmem:[#allocation8 + $0x1b8] sm:$0xff]
    %v2486 = vld [vmem:[#allocation8 + $0x1c0] sm:$0xff]
    %v2487 = vld [vmem:[#allocation8 + $0x1c8] sm:$0xff]
    %v2488 = vld [vmem:[#allocation8 + $0x1d0] sm:$0xff]
    %v2489 = vld [vmem:[#allocation8 + $0x1d8] sm:$0xff]
    %v2490 = vld [vmem:[#allocation8 + $0x1e0] sm:$0xff]
    %v2491 = vld [vmem:[#allocation8 + $0x1e8] sm:$0xff]
    %v2492 = vld [vmem:[#allocation8 + $0x1f0] sm:$0xff]
    %v2493 = vld [vmem:[#allocation8 + $0x1f8] sm:$0xff]
    %v2494 = vld [vmem:[#allocation8 + $0x200] sm:$0xff]
    %v2495 = vld [vmem:[#allocation8 + $0x208] sm:$0xff]
    %v2496 = vld [vmem:[#allocation8 + $0x210] sm:$0xff]
    %v2497 = vld [vmem:[#allocation8 + $0x218] sm:$0xff]
    %v2498 = vld [vmem:[#allocation8 + $0x220] sm:$0xff]
    %v2499 = vld [vmem:[#allocation8 + $0x228] sm:$0xff]
    %v2500 = vld [vmem:[#allocation8 + $0x230] sm:$0xff]
    %v2501 = vld [vmem:[#allocation8 + $0x238] sm:$0xff]
    %v2502 = vld [vmem:[#allocation8 + $0x240] sm:$0xff]
    %v2503 = vld [vmem:[#allocation8 + $0x248] sm:$0xff]
    %v2504 = vld [vmem:[#allocation8 + $0x250] sm:$0xff]
    %v2505 = vld [vmem:[#allocation8 + $0x258] sm:$0xff]
    %v2506 = vld [vmem:[#allocation8 + $0x260] sm:$0xff]
    %v2507 = vld [vmem:[#allocation8 + $0x268] sm:$0xff]
    %v2508 = vld [vmem:[#allocation8 + $0x270] sm:$0xff]
    %v2509 = vld [vmem:[#allocation8 + $0x278] sm:$0xff]
    %v2510 = vld [vmem:[#allocation8 + $0x280] sm:$0xff]
    %v2511 = vld [vmem:[#allocation8 + $0x288] sm:$0xff]
    %v2512 = vld [vmem:[#allocation8 + $0x290] sm:$0xff]
    %v2513 = vld [vmem:[#allocation8 + $0x298] sm:$0xff]
    %v2514 = vld [vmem:[#allocation8 + $0x2a0] sm:$0xff]
    %v2515 = vld [vmem:[#allocation8 + $0x2a8] sm:$0xff]
    %v2516 = vld [vmem:[#allocation8 + $0x2b0] sm:$0xff]
    %v2517 = vld [vmem:[#allocation8 + $0x2b8] sm:$0xff]
    %v2518 = vld [vmem:[#allocation8 + $0x2c0] sm:$0xff]
    %v2519 = vld [vmem:[#allocation8 + $0x2c8] sm:$0xff]
    %v2520 = vld [vmem:[#allocation8 + $0x2d0] sm:$0xff]
    %v2521 = vld [vmem:[#allocation8 + $0x2d8] sm:$0xff]
    %v2522 = vld [vmem:[#allocation8 + $0x2e0] sm:$0xff]
    %v2523 = vld [vmem:[#allocation8 + $0x2e8] sm:$0xff]
    %v2524 = vld [vmem:[#allocation8 + $0x2f0] sm:$0xff]
    %v2525 = vld [vmem:[#allocation8 + $0x2f8] sm:$0xff]
    %v2526 = vld [vmem:[#allocation8 + $0x300] sm:$0xff]
    %v2527 = vld [vmem:[#allocation8 + $0x308] sm:$0xff]
    %v2528 = vld [vmem:[#allocation8 + $0x310] sm:$0xff]
    %v2529 = vld [vmem:[#allocation8 + $0x318] sm:$0xff]
    %v2530 = vld [vmem:[#allocation8 + $0x320] sm:$0xff]
    %v2531 = vld [vmem:[#allocation8 + $0x328] sm:$0xff]
    %v2532 = vld [vmem:[#allocation8 + $0x330] sm:$0xff]
    %v2533 = vld [vmem:[#allocation8 + $0x338] sm:$0xff]
    %v2534 = vld [vmem:[#allocation8 + $0x340] sm:$0xff]
    %v2535 = vld [vmem:[#allocation8 + $0x348] sm:$0xff]
    %v2536 = vld [vmem:[#allocation8 + $0x350] sm:$0xff]
    %v2537 = vld [vmem:[#allocation8 + $0x358] sm:$0xff]
    %v2538 = vld [vmem:[#allocation8 + $0x360] sm:$0xff]
    %v2539 = vld [vmem:[#allocation8 + $0x368] sm:$0xff]
    %v2540 = vld [vmem:[#allocation8 + $0x370] sm:$0xff]
    %v2541 = vld [vmem:[#allocation8 + $0x378] sm:$0xff]
    %v2542 = vld [vmem:[#allocation8 + $0x380] sm:$0xff]
    %v2543 = vld [vmem:[#allocation8 + $0x388] sm:$0xff]
    %v2544 = vld [vmem:[#allocation8 + $0x390] sm:$0xff]
    %v2545 = vld [vmem:[#allocation8 + $0x398] sm:$0xff]
    %v2546 = vld [vmem:[#allocation8 + $0x3a0] sm:$0xff]
    %v2547 = vld [vmem:[#allocation8 + $0x3a8] sm:$0xff]
    %v2548 = vld [vmem:[#allocation8 + $0x3b0] sm:$0xff]
    %v2549 = vld [vmem:[#allocation8 + $0x3b8] sm:$0xff]
    %v2550 = vld [vmem:[#allocation8 + $0x3c0] sm:$0xff]
    %v2551 = vld [vmem:[#allocation8 + $0x3c8] sm:$0xff]
    %v2552 = vld [vmem:[#allocation8 + $0x3d0] sm:$0xff]
    %v2553 = vld [vmem:[#allocation8 + $0x3d8] sm:$0xff]
    %v2554 = vld [vmem:[#allocation8 + $0x3e0] sm:$0xff]
    %v2555 = vld [vmem:[#allocation8 + $0x3e8] sm:$0xff]
    %v2556 = vld [vmem:[#allocation8 + $0x3f0] sm:$0xff]
    %v2557 = vld [vmem:[#allocation8 + $0x3f8] sm:$0xff]
    %v2558 = vld [vmem:[#allocation8 + $0x400] sm:$0xff]
    %v2559 = vld [vmem:[#allocation8 + $0x408] sm:$0xff]
    %v2560 = vld [vmem:[#allocation8 + $0x410] sm:$0xff]
    %v2561 = vld [vmem:[#allocation8 + $0x418] sm:$0xff]
    %v2562 = vld [vmem:[#allocation8 + $0x420] sm:$0xff]
    %v2563 = vld [vmem:[#allocation8 + $0x428] sm:$0xff]
    %v2564 = vld [vmem:[#allocation8 + $0x430] sm:$0xff]
    %v2565 = vld [vmem:[#allocation8 + $0x438] sm:$0xff]
    %v2566 = vld [vmem:[#allocation8 + $0x440] sm:$0xff]
    %v2567 = vld [vmem:[#allocation8 + $0x448] sm:$0xff]
    %v2568 = vld [vmem:[#allocation8 + $0x450] sm:$0xff]
    %v2569 = vld [vmem:[#allocation8 + $0x458] sm:$0xff]
    %v2570 = vld [vmem:[#allocation8 + $0x460] sm:$0xff]
    %v2571 = vld [vmem:[#allocation8 + $0x468] sm:$0xff]
    %v2572 = vld [vmem:[#allocation8 + $0x470] sm:$0xff]
    %v2573 = vld [vmem:[#allocation8 + $0x478] sm:$0xff]
    %v2574 = vld [vmem:[#allocation8 + $0x480] sm:$0xff]
    %v2575 = vld [vmem:[#allocation8 + $0x488] sm:$0xff]
    %v2576 = vld [vmem:[#allocation8 + $0x490] sm:$0xff]
    %v2577 = vld [vmem:[#allocation8 + $0x498] sm:$0xff]
    %v2578 = vld [vmem:[#allocation8 + $0x4a0] sm:$0xff]
    %v2579 = vld [vmem:[#allocation8 + $0x4a8] sm:$0xff]
    %v2580 = vld [vmem:[#allocation8 + $0x4b0] sm:$0xff]
    %v2581 = vld [vmem:[#allocation8 + $0x4b8] sm:$0xff]
    %v2582 = vld [vmem:[#allocation8 + $0x4c0] sm:$0xff]
    %v2583 = vld [vmem:[#allocation8 + $0x4c8] sm:$0xff]
    %v2584 = vld [vmem:[#allocation8 + $0x4d0] sm:$0xff]
    %v2585 = vld [vmem:[#allocation8 + $0x4d8] sm:$0xff]
    %v2586 = vld [vmem:[#allocation8 + $0x4e0] sm:$0xff]
    %v2587 = vld [vmem:[#allocation8 + $0x4e8] sm:$0xff]
    %v2588 = vld [vmem:[#allocation8 + $0x4f0] sm:$0xff]
    %v2589 = vld [vmem:[#allocation8 + $0x4f8] sm:$0xff]
    %v2590 = vld [vmem:[#allocation8 + $0x500] sm:$0xff]
    %v2591 = vld [vmem:[#allocation8 + $0x508] sm:$0xff]
    %v2592 = vld [vmem:[#allocation8 + $0x510] sm:$0xff]
    %v2593 = vld [vmem:[#allocation8 + $0x518] sm:$0xff]
    %v2594 = vld [vmem:[#allocation8 + $0x520] sm:$0xff]
    %v2595 = vld [vmem:[#allocation8 + $0x528] sm:$0xff]
    %v2596 = vld [vmem:[#allocation8 + $0x530] sm:$0xff]
    %v2597 = vld [vmem:[#allocation8 + $0x538] sm:$0xff]
    %v2598 = vld [vmem:[#allocation8 + $0x540] sm:$0xff]
    %v2599 = vld [vmem:[#allocation8 + $0x548] sm:$0xff]
    %v2600 = vld [vmem:[#allocation8 + $0x550] sm:$0xff]
    %v2601 = vld [vmem:[#allocation8 + $0x558] sm:$0xff]
    %v2602 = vld [vmem:[#allocation8 + $0x560] sm:$0xff]
    %v2603 = vld [vmem:[#allocation8 + $0x568] sm:$0xff]
    %v2604 = vld [vmem:[#allocation8 + $0x570] sm:$0xff]
    %v2605 = vld [vmem:[#allocation8 + $0x578] sm:$0xff]
    %v2606 = vld [vmem:[#allocation8 + $0x580] sm:$0xff]
    %v2607 = vld [vmem:[#allocation8 + $0x588] sm:$0xff]
    %v2608 = vld [vmem:[#allocation8 + $0x590] sm:$0xff]
    %v2609 = vld [vmem:[#allocation8 + $0x598] sm:$0xff]
    %v2610 = vld [vmem:[#allocation8 + $0x5a0] sm:$0xff]
    %v2611 = vld [vmem:[#allocation8 + $0x5a8] sm:$0xff]
    %v2612 = vld [vmem:[#allocation8 + $0x5b0] sm:$0xff]
    %v2613 = vld [vmem:[#allocation8 + $0x5b8] sm:$0xff]
    %v2614 = vld [vmem:[#allocation8 + $0x5c0] sm:$0xff]
    %v2615 = vld [vmem:[#allocation8 + $0x5c8] sm:$0xff]
    %v2616 = vld [vmem:[#allocation8 + $0x5d0] sm:$0xff]
    %v2617 = vld [vmem:[#allocation8 + $0x5d8] sm:$0xff]
    %v2618 = vld [vmem:[#allocation8 + $0x5e0] sm:$0xff]
    %v2619 = vld [vmem:[#allocation8 + $0x5e8] sm:$0xff]
    %v2620 = vld [vmem:[#allocation8 + $0x5f0] sm:$0xff]
    %v2621 = vld [vmem:[#allocation8 + $0x5f8] sm:$0xff]
    %2622 = vmatprep.subr.mxu0 %v2431
    %2623 = vmatpush1.msra.mxu0 %v2430
    %2624 = vmatprep.subr.mxu0 %v2437
    %2625 = vmatpush1.msra.mxu0 %v2436
    %2626 = vmatprep.subr.mxu0 %v2443
    %2627 = vmatpush1.msra.mxu0 %v2442
    %2628 = vmatprep.subr.mxu0 %v2449
    %2629 = vmatpush1.msra.mxu0 %v2448
    %2630 = vmatprep.subr.mxu0 %v2455
    %2631 = vmatpush1.msra.mxu0 %v2454
    %2632 = vmatprep.subr.mxu0 %v2461
    %2633 = vmatpush1.msra.mxu0 %v2460
    %2634 = vmatprep.subr.mxu0 %v2467
    %2635 = vmatpush1.msra.mxu0 %v2466
    %2636 = vmatprep.subr.mxu0 %v2473
    %2637 = vmatpush1.msra.mxu0 %v2472
    %2638 = vmatprep.subr.mxu0 %v2479
    %2639 = vmatpush1.msra.mxu0 %v2478
    %2640 = vmatprep.subr.mxu0 %v2485
    %2641 = vmatpush1.msra.mxu0 %v2484
    %2642 = vmatprep.subr.mxu0 %v2491
    %2643 = vmatpush1.msra.mxu0 %v2490
    %2644 = vmatprep.subr.mxu0 %v2497
    %2645 = vmatpush1.msra.mxu0 %v2496
    %2646 = vmatprep.subr.mxu0 %v2503
    %2647 = vmatpush1.msra.mxu0 %v2502
    %2648 = vmatprep.subr.mxu0 %v2509
    %2649 = vmatpush1.msra.mxu0 %v2508
    %2650 = vmatprep.subr.mxu0 %v2515
    %2651 = vmatpush1.msra.mxu0 %v2514
    %2652 = vmatprep.subr.mxu0 %v2521
    %2653 = vmatpush1.msra.mxu0 %v2520
    %2654 = vmatprep.subr.mxu0 %v2527
    %2655 = vmatpush1.msra.mxu0 %v2526
    %2656 = vmatprep.subr.mxu0 %v2533
    %2657 = vmatpush1.msra.mxu0 %v2532
    %2658 = vmatprep.subr.mxu0 %v2539
    %2659 = vmatpush1.msra.mxu0 %v2538
    %2660 = vmatprep.subr.mxu0 %v2545
    %2661 = vmatpush1.msra.mxu0 %v2544
    %2662 = vmatprep.subr.mxu0 %v2551
    %2663 = vmatpush1.msra.mxu0 %v2550
    %2664 = vmatprep.subr.mxu0 %v2557
    %2665 = vmatpush1.msra.mxu0 %v2556
    %2666 = vmatprep.subr.mxu0 %v2563
    %2667 = vmatpush1.msra.mxu0 %v2562
    %2668 = vmatprep.subr.mxu0 %v2569
    %2669 = vmatpush1.msra.mxu0 %v2568
    %2670 = vmatprep.subr.mxu0 %v2575
    %2671 = vmatpush1.msra.mxu0 %v2574
    %2672 = vmatprep.subr.mxu0 %v2581
    %2673 = vmatpush1.msra.mxu0 %v2580
    %2674 = vmatprep.subr.mxu0 %v2587
    %2675 = vmatpush1.msra.mxu0 %v2586
    %2676 = vmatprep.subr.mxu0 %v2593
    %2677 = vmatpush1.msra.mxu0 %v2592
    %2678 = vmatprep.subr.mxu0 %v2599
    %2679 = vmatpush1.msra.mxu0 %v2598
    %2680 = vmatprep.subr.mxu0 %v2605
    %2681 = vmatpush1.msra.mxu0 %v2604
    %2682 = vmatprep.subr.mxu0 %v2611
    %2683 = vmatpush1.msra.mxu0 %v2610
    %2684 = vmatprep.subr.mxu0 %v2617
    %2685 = vmatpush1.msra.mxu0 %v2616
    %2686 = vmatprep.mubr.f32.mxu0 %v2419
    %2687 = vmatmul.mubr.f32.gmra.mrb[0].mxu0 %v2418
    %v2688 = vpop.f32.mrb[0].mxu0
    %v2689 = vadd.f32 0.0, %v2688
    %v2690 = vpop.f32.mrb[0].mxu0
    %v2691 = vadd.f32 0.0, %v2690
    %2692 = vdwg.mxu0
    %2693 = vmatprep.subr.mxu0 %v2433
    %2694 = vmatpush1.msra.mxu0 %v2432
    %2695 = vmatprep.subr.mxu0 %v2439
    %2696 = vmatpush1.msra.mxu0 %v2438
    %2697 = vmatprep.subr.mxu0 %v2445
    %2698 = vmatpush1.msra.mxu0 %v2444
    %2699 = vmatprep.subr.mxu0 %v2451
    %2700 = vmatpush1.msra.mxu0 %v2450
    %2701 = vmatprep.subr.mxu0 %v2457
    %2702 = vmatpush1.msra.mxu0 %v2456
    %2703 = vmatprep.subr.mxu0 %v2463
    %2704 = vmatpush1.msra.mxu0 %v2462
    %2705 = vmatprep.subr.mxu0 %v2469
    %2706 = vmatpush1.msra.mxu0 %v2468
    %2707 = vmatprep.subr.mxu0 %v2475
    %2708 = vmatpush1.msra.mxu0 %v2474
    %2709 = vmatprep.subr.mxu0 %v2481
    %2710 = vmatpush1.msra.mxu0 %v2480
    %2711 = vmatprep.subr.mxu0 %v2487
    %2712 = vmatpush1.msra.mxu0 %v2486
    %2713 = vmatprep.subr.mxu0 %v2493
    %2714 = vmatpush1.msra.mxu0 %v2492
    %2715 = vmatprep.subr.mxu0 %v2499
    %2716 = vmatpush1.msra.mxu0 %v2498
    %2717 = vmatprep.subr.mxu0 %v2505
    %2718 = vmatpush1.msra.mxu0 %v2504
    %2719 = vmatprep.subr.mxu0 %v2511
    %2720 = vmatpush1.msra.mxu0 %v2510
    %2721 = vmatprep.subr.mxu0 %v2517
    %2722 = vmatpush1.msra.mxu0 %v2516
    %2723 = vmatprep.subr.mxu0 %v2523
    %2724 = vmatpush1.msra.mxu0 %v2522
    %2725 = vmatprep.subr.mxu0 %v2529
    %2726 = vmatpush1.msra.mxu0 %v2528
    %2727 = vmatprep.subr.mxu0 %v2535
    %2728 = vmatpush1.msra.mxu0 %v2534
    %2729 = vmatprep.subr.mxu0 %v2541
    %2730 = vmatpush1.msra.mxu0 %v2540
    %2731 = vmatprep.subr.mxu0 %v2547
    %2732 = vmatpush1.msra.mxu0 %v2546
    %2733 = vmatprep.subr.mxu0 %v2553
    %2734 = vmatpush1.msra.mxu0 %v2552
    %2735 = vmatprep.subr.mxu0 %v2559
    %2736 = vmatpush1.msra.mxu0 %v2558
    %2737 = vmatprep.subr.mxu0 %v2565
    %2738 = vmatpush1.msra.mxu0 %v2564
    %2739 = vmatprep.subr.mxu0 %v2571
    %2740 = vmatpush1.msra.mxu0 %v2570
    %2741 = vmatprep.subr.mxu0 %v2577
    %2742 = vmatpush1.msra.mxu0 %v2576
    %2743 = vmatprep.subr.mxu0 %v2583
    %2744 = vmatpush1.msra.mxu0 %v2582
    %2745 = vmatprep.subr.mxu0 %v2589
    %2746 = vmatpush1.msra.mxu0 %v2588
    %2747 = vmatprep.subr.mxu0 %v2595
    %2748 = vmatpush1.msra.mxu0 %v2594
    %2749 = vmatprep.subr.mxu0 %v2601
    %2750 = vmatpush1.msra.mxu0 %v2600
    %2751 = vmatprep.subr.mxu0 %v2607
    %2752 = vmatpush1.msra.mxu0 %v2606
    %2753 = vmatprep.subr.mxu0 %v2613
    %2754 = vmatpush1.msra.mxu0 %v2612
    %2755 = vmatprep.subr.mxu0 %v2619
    %2756 = vmatpush1.msra.mxu0 %v2618
    %2757 = vmatprep.mubr.f32.mxu0 %v2419
    %2758 = vmatmul.mubr.f32.gmra.mrb[0].mxu0 %v2418
    %v2759 = vpop.f32.mrb[0].mxu0
    %v2760 = vadd.f32 0.0, %v2759
    %v2761 = vpop.f32.mrb[0].mxu0
    %v2762 = vadd.f32 0.0, %v2761
    %2763 = vdwg.mxu0
    %2764 = vmatprep.subr.mxu0 %v2435
    %2765 = vmatpush1.msra.mxu0 %v2434
    %2766 = vmatprep.subr.mxu0 %v2441
    %2767 = vmatpush1.msra.mxu0 %v2440
    %2768 = vmatprep.subr.mxu0 %v2447
    %2769 = vmatpush1.msra.mxu0 %v2446
    %2770 = vmatprep.subr.mxu0 %v2453
    %2771 = vmatpush1.msra.mxu0 %v2452
    %2772 = vmatprep.subr.mxu0 %v2459
    %2773 = vmatpush1.msra.mxu0 %v2458
    %2774 = vmatprep.subr.mxu0 %v2465
    %2775 = vmatpush1.msra.mxu0 %v2464
    %2776 = vmatprep.subr.mxu0 %v2471
    %2777 = vmatpush1.msra.mxu0 %v2470
    %2778 = vmatprep.subr.mxu0 %v2477
    %2779 = vmatpush1.msra.mxu0 %v2476
    %2780 = vmatprep.subr.mxu0 %v2483
    %2781 = vmatpush1.msra.mxu0 %v2482
    %2782 = vmatprep.subr.mxu0 %v2489
    %2783 = vmatpush1.msra.mxu0 %v2488
    %2784 = vmatprep.subr.mxu0 %v2495
    %2785 = vmatpush1.msra.mxu0 %v2494
    %2786 = vmatprep.subr.mxu0 %v2501
    %2787 = vmatpush1.msra.mxu0 %v2500
    %2788 = vmatprep.subr.mxu0 %v2507
    %2789 = vmatpush1.msra.mxu0 %v2506
    %2790 = vmatprep.subr.mxu0 %v2513
    %2791 = vmatpush1.msra.mxu0 %v2512
    %2792 = vmatprep.subr.mxu0 %v2519
    %2793 = vmatpush1.msra.mxu0 %v2518
    %2794 = vmatprep.subr.mxu0 %v2525
    %2795 = vmatpush1.msra.mxu0 %v2524
    %2796 = vmatprep.subr.mxu0 %v2531
    %2797 = vmatpush1.msra.mxu0 %v2530
    %2798 = vmatprep.subr.mxu0 %v2537
    %2799 = vmatpush1.msra.mxu0 %v2536
    %2800 = vmatprep.subr.mxu0 %v2543
    %2801 = vmatpush1.msra.mxu0 %v2542
    %2802 = vmatprep.subr.mxu0 %v2549
    %2803 = vmatpush1.msra.mxu0 %v2548
    %2804 = vmatprep.subr.mxu0 %v2555
    %2805 = vmatpush1.msra.mxu0 %v2554
    %2806 = vmatprep.subr.mxu0 %v2561
    %2807 = vmatpush1.msra.mxu0 %v2560
    %2808 = vmatprep.subr.mxu0 %v2567
    %2809 = vmatpush1.msra.mxu0 %v2566
    %2810 = vmatprep.subr.mxu0 %v2573
    %2811 = vmatpush1.msra.mxu0 %v2572
    %2812 = vmatprep.subr.mxu0 %v2579
    %2813 = vmatpush1.msra.mxu0 %v2578
    %2814 = vmatprep.subr.mxu0 %v2585
    %2815 = vmatpush1.msra.mxu0 %v2584
    %2816 = vmatprep.subr.mxu0 %v2591
    %2817 = vmatpush1.msra.mxu0 %v2590
    %2818 = vmatprep.subr.mxu0 %v2597
    %2819 = vmatpush1.msra.mxu0 %v2596
    %2820 = vmatprep.subr.mxu0 %v2603
    %2821 = vmatpush1.msra.mxu0 %v2602
    %2822 = vmatprep.subr.mxu0 %v2609
    %2823 = vmatpush1.msra.mxu0 %v2608
    %2824 = vmatprep.subr.mxu0 %v2615
    %2825 = vmatpush1.msra.mxu0 %v2614
    %2826 = vmatprep.subr.mxu0 %v2621
    %2827 = vmatpush1.msra.mxu0 %v2620
    %2828 = vmatprep.mubr.f32.mxu0 %v2419
    %2829 = vmatmul.mubr.f32.gmra.mrb[0].mxu0 %v2418
    %v2830 = vpop.f32.mrb[0].mxu0
    %v2831 = vadd.f32 0.0, %v2830
    %v2832 = vpop.f32.mrb[0].mxu0
    %v2833 = vadd.f32 0.0, %v2832
    %2834 = vdwg.mxu0
    %v2835 = vadd.f32 %v2424, %v2689
    %v2836 = vadd.f32 %v2425, %v2691
    %v2837 = vadd.f32 %v2426, %v2760
    %v2838 = vadd.f32 %v2427, %v2762
    %v2839 = vxor.u32 %v2835, 2147483648
    %v2840 = vxor.u32 %v2836, 2147483648
    %v2841 = vxor.u32 %v2837, 2147483648
    %v2842 = vxor.u32 %v2838, 2147483648
    %v2843 = vmul.f32 %v2839, 1.442695
    %v2844 = vpow.pop %v2843
    %v2845 = vmul.f32 %v2840, 1.442695
    %v2846 = vpow.pop %v2845
    %v2847 = vmul.f32 %v2841, 1.442695
    %v2848 = vpow.pop %v2847
    %v2849 = vmul.f32 %v2842, 1.442695
    %v2850 = vpow.pop %v2849
    %v2851 = vadd.f32 %v2844, 1.0
    %v2852 = vadd.f32 %v2846, 1.0
    %v2853 = vadd.f32 %v2848, 1.0
    %v2854 = vadd.f32 %v2850, 1.0
    %v2855 = vrcp.pop %v2851
    %v2856 = vmul.f32 1.0, %v2855
    %v2857 = vrcp.pop %v2852
    %v2858 = vmul.f32 1.0, %v2857
    %v2859 = vrcp.pop %v2853
    %v2860 = vmul.f32 1.0, %v2859
    %v2861 = vrcp.pop %v2854
    %v2862 = vmul.f32 1.0, %v2861
    %v2863 = vld [vmem:[%s3] sm:$0x3]
    %v2865 = vlaneseq
    %v2866 = vshrl.u32 %v2865, 7
    %v2867 = vsub.s32 0, %v2866
    %v2868 = vrot.slane %v2863, %v2867
    %v2869 = vlaneseq
    %v2870 = vshrl.u32 %v2869, 7
    %v2871 = vsub.s32 1, %v2870
    %v2872 = vrot.slane %v2863, %v2871
    %v2875 = vadd.f32 %v2831, %v2868
    %v2876 = vadd.f32 %v2833, %v2872
    %v2877 = vmul.f32 %v2856, %v2875
    %v2878 = vmul.f32 %v2858, %v2876
    %v2879 = vadd.f32 %v2428, %v2877
    %v2880 = vadd.f32 %v2429, %v2878
    %v2881 = vtanh.pop %v2879
    %v2882 = vtanh.pop %v2880
    %v2883 = vsub.f32 1.0, %v2860
    %v2884 = vsub.f32 1.0, %v2862
    %v2885 = vmul.f32 %v2883, %v2881
    %v2886 = vmul.f32 %v2884, %v2882
    %v2887 = vmul.f32 %v2860, %v2418
    %v2888 = vmul.f32 %v2862, %v2419
    %v2889 = vadd.f32 %v2885, %v2887
    %v2890 = vadd.f32 %v2886, %v2888
    %s2891 = scalar_lea.vmem [#allocation9], 80
    %2892 = vst [vmem:[%s2891] sm:$0xff] %v2889
    %2893 = vst [vmem:[%s2891 + $0x8] sm:$0xff] %v2890
    %s2894 = scalar_lea.vmem [#allocation3], 288
    %v2895 = vld [vmem:[%s2894] sm:$0xff]
    %v2896 = vld [vmem:[%s2894 + $0x8] sm:$0xff]
    %v2897 = vld [vmem:[%s2894 + $0x10] sm:$0xff]
    %v2898 = vld [vmem:[%s2894 + $0x18] sm:$0xff]
    %v2899 = vld [vmem:[%s2894 + $0x20] sm:$0xff]
    %v2900 = vld [vmem:[%s2894 + $0x28] sm:$0xff]
    %v2901 = vld [vmem:[#allocation8] sm:$0xff]
    %v2902 = vld [vmem:[#allocation8 + $0x8] sm:$0xff]
    %v2903 = vld [vmem:[#allocation8 + $0x10] sm:$0xff]
    %v2904 = vld [vmem:[#allocation8 + $0x18] sm:$0xff]
    %v2905 = vld [vmem:[#allocation8 + $0x20] sm:$0xff]
    %v2906 = vld [vmem:[#allocation8 + $0x28] sm:$0xff]
    %v2907 = vld [vmem:[#allocation8 + $0x30] sm:$0xff]
    %v2908 = vld [vmem:[#allocation8 + $0x38] sm:$0xff]
    %v2909 = vld [vmem:[#allocation8 + $0x40] sm:$0xff]
    %v2910 = vld [vmem:[#allocation8 + $0x48] sm:$0xff]
    %v2911 = vld [vmem:[#allocation8 + $0x50] sm:$0xff]
    %v2912 = vld [vmem:[#allocation8 + $0x58] sm:$0xff]
    %v2913 = vld [vmem:[#allocation8 + $0x60] sm:$0xff]
    %v2914 = vld [vmem:[#allocation8 + $0x68] sm:$0xff]
    %v2915 = vld [vmem:[#allocation8 + $0x70] sm:$0xff]
    %v2916 = vld [vmem:[#allocation8 + $0x78] sm:$0xff]
    %v2917 = vld [vmem:[#allocation8 + $0x80] sm:$0xff]
    %v2918 = vld [vmem:[#allocation8 + $0x88] sm:$0xff]
    %v2919 = vld [vmem:[#allocation8 + $0x90] sm:$0xff]
    %v2920 = vld [vmem:[#allocation8 + $0x98] sm:$0xff]
    %v2921 = vld [vmem:[#allocation8 + $0xa0] sm:$0xff]
    %v2922 = vld [vmem:[#allocation8 + $0xa8] sm:$0xff]
    %v2923 = vld [vmem:[#allocation8 + $0xb0] sm:$0xff]
    %v2924 = vld [vmem:[#allocation8 + $0xb8] sm:$0xff]
    %v2925 = vld [vmem:[#allocation8 + $0xc0] sm:$0xff]
    %v2926 = vld [vmem:[#allocation8 + $0xc8] sm:$0xff]
    %v2927 = vld [vmem:[#allocation8 + $0xd0] sm:$0xff]
    %v2928 = vld [vmem:[#allocation8 + $0xd8] sm:$0xff]
    %v2929 = vld [vmem:[#allocation8 + $0xe0] sm:$0xff]
    %v2930 = vld [vmem:[#allocation8 + $0xe8] sm:$0xff]
    %v2931 = vld [vmem:[#allocation8 + $0xf0] sm:$0xff]
    %v2932 = vld [vmem:[#allocation8 + $0xf8] sm:$0xff]
    %v2933 = vld [vmem:[#allocation8 + $0x100] sm:$0xff]
    %v2934 = vld [vmem:[#allocation8 + $0x108] sm:$0xff]
    %v2935 = vld [vmem:[#allocation8 + $0x110] sm:$0xff]
    %v2936 = vld [vmem:[#allocation8 + $0x118] sm:$0xff]
    %v2937 = vld [vmem:[#allocation8 + $0x120] sm:$0xff]
    %v2938 = vld [vmem:[#allocation8 + $0x128] sm:$0xff]
    %v2939 = vld [vmem:[#allocation8 + $0x130] sm:$0xff]
    %v2940 = vld [vmem:[#allocation8 + $0x138] sm:$0xff]
    %v2941 = vld [vmem:[#allocation8 + $0x140] sm:$0xff]
    %v2942 = vld [vmem:[#allocation8 + $0x148] sm:$0xff]
    %v2943 = vld [vmem:[#allocation8 + $0x150] sm:$0xff]
    %v2944 = vld [vmem:[#allocation8 + $0x158] sm:$0xff]
    %v2945 = vld [vmem:[#allocation8 + $0x160] sm:$0xff]
    %v2946 = vld [vmem:[#allocation8 + $0x168] sm:$0xff]
    %v2947 = vld [vmem:[#allocation8 + $0x170] sm:$0xff]
    %v2948 = vld [vmem:[#allocation8 + $0x178] sm:$0xff]
    %v2949 = vld [vmem:[#allocation8 + $0x180] sm:$0xff]
    %v2950 = vld [vmem:[#allocation8 + $0x188] sm:$0xff]
    %v2951 = vld [vmem:[#allocation8 + $0x190] sm:$0xff]
    %v2952 = vld [vmem:[#allocation8 + $0x198] sm:$0xff]
    %v2953 = vld [vmem:[#allocation8 + $0x1a0] sm:$0xff]
    %v2954 = vld [vmem:[#allocation8 + $0x1a8] sm:$0xff]
    %v2955 = vld [vmem:[#allocation8 + $0x1b0] sm:$0xff]
    %v2956 = vld [vmem:[#allocation8 + $0x1b8] sm:$0xff]
    %v2957 = vld [vmem:[#allocation8 + $0x1c0] sm:$0xff]
    %v2958 = vld [vmem:[#allocation8 + $0x1c8] sm:$0xff]
    %v2959 = vld [vmem:[#allocation8 + $0x1d0] sm:$0xff]
    %v2960 = vld [vmem:[#allocation8 + $0x1d8] sm:$0xff]
    %v2961 = vld [vmem:[#allocation8 + $0x1e0] sm:$0xff]
    %v2962 = vld [vmem:[#allocation8 + $0x1e8] sm:$0xff]
    %v2963 = vld [vmem:[#allocation8 + $0x1f0] sm:$0xff]
    %v2964 = vld [vmem:[#allocation8 + $0x1f8] sm:$0xff]
    %v2965 = vld [vmem:[#allocation8 + $0x200] sm:$0xff]
    %v2966 = vld [vmem:[#allocation8 + $0x208] sm:$0xff]
    %v2967 = vld [vmem:[#allocation8 + $0x210] sm:$0xff]
    %v2968 = vld [vmem:[#allocation8 + $0x218] sm:$0xff]
    %v2969 = vld [vmem:[#allocation8 + $0x220] sm:$0xff]
    %v2970 = vld [vmem:[#allocation8 + $0x228] sm:$0xff]
    %v2971 = vld [vmem:[#allocation8 + $0x230] sm:$0xff]
    %v2972 = vld [vmem:[#allocation8 + $0x238] sm:$0xff]
    %v2973 = vld [vmem:[#allocation8 + $0x240] sm:$0xff]
    %v2974 = vld [vmem:[#allocation8 + $0x248] sm:$0xff]
    %v2975 = vld [vmem:[#allocation8 + $0x250] sm:$0xff]
    %v2976 = vld [vmem:[#allocation8 + $0x258] sm:$0xff]
    %v2977 = vld [vmem:[#allocation8 + $0x260] sm:$0xff]
    %v2978 = vld [vmem:[#allocation8 + $0x268] sm:$0xff]
    %v2979 = vld [vmem:[#allocation8 + $0x270] sm:$0xff]
    %v2980 = vld [vmem:[#allocation8 + $0x278] sm:$0xff]
    %v2981 = vld [vmem:[#allocation8 + $0x280] sm:$0xff]
    %v2982 = vld [vmem:[#allocation8 + $0x288] sm:$0xff]
    %v2983 = vld [vmem:[#allocation8 + $0x290] sm:$0xff]
    %v2984 = vld [vmem:[#allocation8 + $0x298] sm:$0xff]
    %v2985 = vld [vmem:[#allocation8 + $0x2a0] sm:$0xff]
    %v2986 = vld [vmem:[#allocation8 + $0x2a8] sm:$0xff]
    %v2987 = vld [vmem:[#allocation8 + $0x2b0] sm:$0xff]
    %v2988 = vld [vmem:[#allocation8 + $0x2b8] sm:$0xff]
    %v2989 = vld [vmem:[#allocation8 + $0x2c0] sm:$0xff]
    %v2990 = vld [vmem:[#allocation8 + $0x2c8] sm:$0xff]
    %v2991 = vld [vmem:[#allocation8 + $0x2d0] sm:$0xff]
    %v2992 = vld [vmem:[#allocation8 + $0x2d8] sm:$0xff]
    %v2993 = vld [vmem:[#allocation8 + $0x2e0] sm:$0xff]
    %v2994 = vld [vmem:[#allocation8 + $0x2e8] sm:$0xff]
    %v2995 = vld [vmem:[#allocation8 + $0x2f0] sm:$0xff]
    %v2996 = vld [vmem:[#allocation8 + $0x2f8] sm:$0xff]
    %v2997 = vld [vmem:[#allocation8 + $0x300] sm:$0xff]
    %v2998 = vld [vmem:[#allocation8 + $0x308] sm:$0xff]
    %v2999 = vld [vmem:[#allocation8 + $0x310] sm:$0xff]
    %v3000 = vld [vmem:[#allocation8 + $0x318] sm:$0xff]
    %v3001 = vld [vmem:[#allocation8 + $0x320] sm:$0xff]
    %v3002 = vld [vmem:[#allocation8 + $0x328] sm:$0xff]
    %v3003 = vld [vmem:[#allocation8 + $0x330] sm:$0xff]
    %v3004 = vld [vmem:[#allocation8 + $0x338] sm:$0xff]
    %v3005 = vld [vmem:[#allocation8 + $0x340] sm:$0xff]
    %v3006 = vld [vmem:[#allocation8 + $0x348] sm:$0xff]
    %v3007 = vld [vmem:[#allocation8 + $0x350] sm:$0xff]
    %v3008 = vld [vmem:[#allocation8 + $0x358] sm:$0xff]
    %v3009 = vld [vmem:[#allocation8 + $0x360] sm:$0xff]
    %v3010 = vld [vmem:[#allocation8 + $0x368] sm:$0xff]
    %v3011 = vld [vmem:[#allocation8 + $0x370] sm:$0xff]
    %v3012 = vld [vmem:[#allocation8 + $0x378] sm:$0xff]
    %v3013 = vld [vmem:[#allocation8 + $0x380] sm:$0xff]
    %v3014 = vld [vmem:[#allocation8 + $0x388] sm:$0xff]
    %v3015 = vld [vmem:[#allocation8 + $0x390] sm:$0xff]
    %v3016 = vld [vmem:[#allocation8 + $0x398] sm:$0xff]
    %v3017 = vld [vmem:[#allocation8 + $0x3a0] sm:$0xff]
    %v3018 = vld [vmem:[#allocation8 + $0x3a8] sm:$0xff]
    %v3019 = vld [vmem:[#allocation8 + $0x3b0] sm:$0xff]
    %v3020 = vld [vmem:[#allocation8 + $0x3b8] sm:$0xff]
    %v3021 = vld [vmem:[#allocation8 + $0x3c0] sm:$0xff]
    %v3022 = vld [vmem:[#allocation8 + $0x3c8] sm:$0xff]
    %v3023 = vld [vmem:[#allocation8 + $0x3d0] sm:$0xff]
    %v3024 = vld [vmem:[#allocation8 + $0x3d8] sm:$0xff]
    %v3025 = vld [vmem:[#allocation8 + $0x3e0] sm:$0xff]
    %v3026 = vld [vmem:[#allocation8 + $0x3e8] sm:$0xff]
    %v3027 = vld [vmem:[#allocation8 + $0x3f0] sm:$0xff]
    %v3028 = vld [vmem:[#allocation8 + $0x3f8] sm:$0xff]
    %v3029 = vld [vmem:[#allocation8 + $0x400] sm:$0xff]
    %v3030 = vld [vmem:[#allocation8 + $0x408] sm:$0xff]
    %v3031 = vld [vmem:[#allocation8 + $0x410] sm:$0xff]
    %v3032 = vld [vmem:[#allocation8 + $0x418] sm:$0xff]
    %v3033 = vld [vmem:[#allocation8 + $0x420] sm:$0xff]
    %v3034 = vld [vmem:[#allocation8 + $0x428] sm:$0xff]
    %v3035 = vld [vmem:[#allocation8 + $0x430] sm:$0xff]
    %v3036 = vld [vmem:[#allocation8 + $0x438] sm:$0xff]
    %v3037 = vld [vmem:[#allocation8 + $0x440] sm:$0xff]
    %v3038 = vld [vmem:[#allocation8 + $0x448] sm:$0xff]
    %v3039 = vld [vmem:[#allocation8 + $0x450] sm:$0xff]
    %v3040 = vld [vmem:[#allocation8 + $0x458] sm:$0xff]
    %v3041 = vld [vmem:[#allocation8 + $0x460] sm:$0xff]
    %v3042 = vld [vmem:[#allocation8 + $0x468] sm:$0xff]
    %v3043 = vld [vmem:[#allocation8 + $0x470] sm:$0xff]
    %v3044 = vld [vmem:[#allocation8 + $0x478] sm:$0xff]
    %v3045 = vld [vmem:[#allocation8 + $0x480] sm:$0xff]
    %v3046 = vld [vmem:[#allocation8 + $0x488] sm:$0xff]
    %v3047 = vld [vmem:[#allocation8 + $0x490] sm:$0xff]
    %v3048 = vld [vmem:[#allocation8 + $0x498] sm:$0xff]
    %v3049 = vld [vmem:[#allocation8 + $0x4a0] sm:$0xff]
    %v3050 = vld [vmem:[#allocation8 + $0x4a8] sm:$0xff]
    %v3051 = vld [vmem:[#allocation8 + $0x4b0] sm:$0xff]
    %v3052 = vld [vmem:[#allocation8 + $0x4b8] sm:$0xff]
    %v3053 = vld [vmem:[#allocation8 + $0x4c0] sm:$0xff]
    %v3054 = vld [vmem:[#allocation8 + $0x4c8] sm:$0xff]
    %v3055 = vld [vmem:[#allocation8 + $0x4d0] sm:$0xff]
    %v3056 = vld [vmem:[#allocation8 + $0x4d8] sm:$0xff]
    %v3057 = vld [vmem:[#allocation8 + $0x4e0] sm:$0xff]
    %v3058 = vld [vmem:[#allocation8 + $0x4e8] sm:$0xff]
    %v3059 = vld [vmem:[#allocation8 + $0x4f0] sm:$0xff]
    %v3060 = vld [vmem:[#allocation8 + $0x4f8] sm:$0xff]
    %v3061 = vld [vmem:[#allocation8 + $0x500] sm:$0xff]
    %v3062 = vld [vmem:[#allocation8 + $0x508] sm:$0xff]
    %v3063 = vld [vmem:[#allocation8 + $0x510] sm:$0xff]
    %v3064 = vld [vmem:[#allocation8 + $0x518] sm:$0xff]
    %v3065 = vld [vmem:[#allocation8 + $0x520] sm:$0xff]
    %v3066 = vld [vmem:[#allocation8 + $0x528] sm:$0xff]
    %v3067 = vld [vmem:[#allocation8 + $0x530] sm:$0xff]
    %v3068 = vld [vmem:[#allocation8 + $0x538] sm:$0xff]
    %v3069 = vld [vmem:[#allocation8 + $0x540] sm:$0xff]
    %v3070 = vld [vmem:[#allocation8 + $0x548] sm:$0xff]
    %v3071 = vld [vmem:[#allocation8 + $0x550] sm:$0xff]
    %v3072 = vld [vmem:[#allocation8 + $0x558] sm:$0xff]
    %v3073 = vld [vmem:[#allocation8 + $0x560] sm:$0xff]
    %v3074 = vld [vmem:[#allocation8 + $0x568] sm:$0xff]
    %v3075 = vld [vmem:[#allocation8 + $0x570] sm:$0xff]
    %v3076 = vld [vmem:[#allocation8 + $0x578] sm:$0xff]
    %v3077 = vld [vmem:[#allocation8 + $0x580] sm:$0xff]
    %v3078 = vld [vmem:[#allocation8 + $0x588] sm:$0xff]
    %v3079 = vld [vmem:[#allocation8 + $0x590] sm:$0xff]
    %v3080 = vld [vmem:[#allocation8 + $0x598] sm:$0xff]
    %v3081 = vld [vmem:[#allocation8 + $0x5a0] sm:$0xff]
    %v3082 = vld [vmem:[#allocation8 + $0x5a8] sm:$0xff]
    %v3083 = vld [vmem:[#allocation8 + $0x5b0] sm:$0xff]
    %v3084 = vld [vmem:[#allocation8 + $0x5b8] sm:$0xff]
    %v3085 = vld [vmem:[#allocation8 + $0x5c0] sm:$0xff]
    %v3086 = vld [vmem:[#allocation8 + $0x5c8] sm:$0xff]
    %v3087 = vld [vmem:[#allocation8 + $0x5d0] sm:$0xff]
    %v3088 = vld [vmem:[#allocation8 + $0x5d8] sm:$0xff]
    %v3089 = vld [vmem:[#allocation8 + $0x5e0] sm:$0xff]
    %v3090 = vld [vmem:[#allocation8 + $0x5e8] sm:$0xff]
    %v3091 = vld [vmem:[#allocation8 + $0x5f0] sm:$0xff]
    %v3092 = vld [vmem:[#allocation8 + $0x5f8] sm:$0xff]
    %3093 = vmatprep.subr.mxu0 %v2902
    %3094 = vmatpush1.msra.mxu0 %v2901
    %3095 = vmatprep.subr.mxu0 %v2908
    %3096 = vmatpush1.msra.mxu0 %v2907
    %3097 = vmatprep.subr.mxu0 %v2914
    %3098 = vmatpush1.msra.mxu0 %v2913
    %3099 = vmatprep.subr.mxu0 %v2920
    %3100 = vmatpush1.msra.mxu0 %v2919
    %3101 = vmatprep.subr.mxu0 %v2926
    %3102 = vmatpush1.msra.mxu0 %v2925
    %3103 = vmatprep.subr.mxu0 %v2932
    %3104 = vmatpush1.msra.mxu0 %v2931
    %3105 = vmatprep.subr.mxu0 %v2938
    %3106 = vmatpush1.msra.mxu0 %v2937
    %3107 = vmatprep.subr.mxu0 %v2944
    %3108 = vmatpush1.msra.mxu0 %v2943
    %3109 = vmatprep.subr.mxu0 %v2950
    %3110 = vmatpush1.msra.mxu0 %v2949
    %3111 = vmatprep.subr.mxu0 %v2956
    %3112 = vmatpush1.msra.mxu0 %v2955
    %3113 = vmatprep.subr.mxu0 %v2962
    %3114 = vmatpush1.msra.mxu0 %v2961
    %3115 = vmatprep.subr.mxu0 %v2968
    %3116 = vmatpush1.msra.mxu0 %v2967
    %3117 = vmatprep.subr.mxu0 %v2974
    %3118 = vmatpush1.msra.mxu0 %v2973
    %3119 = vmatprep.subr.mxu0 %v2980
    %3120 = vmatpush1.msra.mxu0 %v2979
    %3121 = vmatprep.subr.mxu0 %v2986
    %3122 = vmatpush1.msra.mxu0 %v2985
    %3123 = vmatprep.subr.mxu0 %v2992
    %3124 = vmatpush1.msra.mxu0 %v2991
    %3125 = vmatprep.subr.mxu0 %v2998
    %3126 = vmatpush1.msra.mxu0 %v2997
    %3127 = vmatprep.subr.mxu0 %v3004
    %3128 = vmatpush1.msra.mxu0 %v3003
    %3129 = vmatprep.subr.mxu0 %v3010
    %3130 = vmatpush1.msra.mxu0 %v3009
    %3131 = vmatprep.subr.mxu0 %v3016
    %3132 = vmatpush1.msra.mxu0 %v3015
    %3133 = vmatprep.subr.mxu0 %v3022
    %3134 = vmatpush1.msra.mxu0 %v3021
    %3135 = vmatprep.subr.mxu0 %v3028
    %3136 = vmatpush1.msra.mxu0 %v3027
    %3137 = vmatprep.subr.mxu0 %v3034
    %3138 = vmatpush1.msra.mxu0 %v3033
    %3139 = vmatprep.subr.mxu0 %v3040
    %3140 = vmatpush1.msra.mxu0 %v3039
    %3141 = vmatprep.subr.mxu0 %v3046
    %3142 = vmatpush1.msra.mxu0 %v3045
    %3143 = vmatprep.subr.mxu0 %v3052
    %3144 = vmatpush1.msra.mxu0 %v3051
    %3145 = vmatprep.subr.mxu0 %v3058
    %3146 = vmatpush1.msra.mxu0 %v3057
    %3147 = vmatprep.subr.mxu0 %v3064
    %3148 = vmatpush1.msra.mxu0 %v3063
    %3149 = vmatprep.subr.mxu0 %v3070
    %3150 = vmatpush1.msra.mxu0 %v3069
    %3151 = vmatprep.subr.mxu0 %v3076
    %3152 = vmatpush1.msra.mxu0 %v3075
    %3153 = vmatprep.subr.mxu0 %v3082
    %3154 = vmatpush1.msra.mxu0 %v3081
    %3155 = vmatprep.subr.mxu0 %v3088
    %3156 = vmatpush1.msra.mxu0 %v3087
    %3157 = vmatprep.mubr.f32.mxu0 %v2890
    %3158 = vmatmul.mubr.f32.gmra.mrb[0].mxu0 %v2889
    %v3159 = vpop.f32.mrb[0].mxu0
    %v3160 = vadd.f32 0.0, %v3159
    %v3161 = vpop.f32.mrb[0].mxu0
    %v3162 = vadd.f32 0.0, %v3161
    %3163 = vdwg.mxu0
    %3164 = vmatprep.subr.mxu0 %v2904
    %3165 = vmatpush1.msra.mxu0 %v2903
    %3166 = vmatprep.subr.mxu0 %v2910
    %3167 = vmatpush1.msra.mxu0 %v2909
    %3168 = vmatprep.subr.mxu0 %v2916
    %3169 = vmatpush1.msra.mxu0 %v2915
    %3170 = vmatprep.subr.mxu0 %v2922
    %3171 = vmatpush1.msra.mxu0 %v2921
    %3172 = vmatprep.subr.mxu0 %v2928
    %3173 = vmatpush1.msra.mxu0 %v2927
    %3174 = vmatprep.subr.mxu0 %v2934
    %3175 = vmatpush1.msra.mxu0 %v2933
    %3176 = vmatprep.subr.mxu0 %v2940
    %3177 = vmatpush1.msra.mxu0 %v2939
    %3178 = vmatprep.subr.mxu0 %v2946
    %3179 = vmatpush1.msra.mxu0 %v2945
    %3180 = vmatprep.subr.mxu0 %v2952
    %3181 = vmatpush1.msra.mxu0 %v2951
    %3182 = vmatprep.subr.mxu0 %v2958
    %3183 = vmatpush1.msra.mxu0 %v2957
    %3184 = vmatprep.subr.mxu0 %v2964
    %3185 = vmatpush1.msra.mxu0 %v2963
    %3186 = vmatprep.subr.mxu0 %v2970
    %3187 = vmatpush1.msra.mxu0 %v2969
    %3188 = vmatprep.subr.mxu0 %v2976
    %3189 = vmatpush1.msra.mxu0 %v2975
    %3190 = vmatprep.subr.mxu0 %v2982
    %3191 = vmatpush1.msra.mxu0 %v2981
    %3192 = vmatprep.subr.mxu0 %v2988
    %3193 = vmatpush1.msra.mxu0 %v2987
    %3194 = vmatprep.subr.mxu0 %v2994
    %3195 = vmatpush1.msra.mxu0 %v2993
    %3196 = vmatprep.subr.mxu0 %v3000
    %3197 = vmatpush1.msra.mxu0 %v2999
    %3198 = vmatprep.subr.mxu0 %v3006
    %3199 = vmatpush1.msra.mxu0 %v3005
    %3200 = vmatprep.subr.mxu0 %v3012
    %3201 = vmatpush1.msra.mxu0 %v3011
    %3202 = vmatprep.subr.mxu0 %v3018
    %3203 = vmatpush1.msra.mxu0 %v3017
    %3204 = vmatprep.subr.mxu0 %v3024
    %3205 = vmatpush1.msra.mxu0 %v3023
    %3206 = vmatprep.subr.mxu0 %v3030
    %3207 = vmatpush1.msra.mxu0 %v3029
    %3208 = vmatprep.subr.mxu0 %v3036
    %3209 = vmatpush1.msra.mxu0 %v3035
    %3210 = vmatprep.subr.mxu0 %v3042
    %3211 = vmatpush1.msra.mxu0 %v3041
    %3212 = vmatprep.subr.mxu0 %v3048
    %3213 = vmatpush1.msra.mxu0 %v3047
    %3214 = vmatprep.subr.mxu0 %v3054
    %3215 = vmatpush1.msra.mxu0 %v3053
    %3216 = vmatprep.subr.mxu0 %v3060
    %3217 = vmatpush1.msra.mxu0 %v3059
    %3218 = vmatprep.subr.mxu0 %v3066
    %3219 = vmatpush1.msra.mxu0 %v3065
    %3220 = vmatprep.subr.mxu0 %v3072
    %3221 = vmatpush1.msra.mxu0 %v3071
    %3222 = vmatprep.subr.mxu0 %v3078
    %3223 = vmatpush1.msra.mxu0 %v3077
    %3224 = vmatprep.subr.mxu0 %v3084
    %3225 = vmatpush1.msra.mxu0 %v3083
    %3226 = vmatprep.subr.mxu0 %v3090
    %3227 = vmatpush1.msra.mxu0 %v3089
    %3228 = vmatprep.mubr.f32.mxu0 %v2890
    %3229 = vmatmul.mubr.f32.gmra.mrb[0].mxu0 %v2889
    %v3230 = vpop.f32.mrb[0].mxu0
    %v3231 = vadd.f32 0.0, %v3230
    %v3232 = vpop.f32.mrb[0].mxu0
    %v3233 = vadd.f32 0.0, %v3232
    %3234 = vdwg.mxu0
    %3235 = vmatprep.subr.mxu0 %v2906
    %3236 = vmatpush1.msra.mxu0 %v2905
    %3237 = vmatprep.subr.mxu0 %v2912
    %3238 = vmatpush1.msra.mxu0 %v2911
    %3239 = vmatprep.subr.mxu0 %v2918
    %3240 = vmatpush1.msra.mxu0 %v2917
    %3241 = vmatprep.subr.mxu0 %v2924
    %3242 = vmatpush1.msra.mxu0 %v2923
    %3243 = vmatprep.subr.mxu0 %v2930
    %3244 = vmatpush1.msra.mxu0 %v2929
    %3245 = vmatprep.subr.mxu0 %v2936
    %3246 = vmatpush1.msra.mxu0 %v2935
    %3247 = vmatprep.subr.mxu0 %v2942
    %3248 = vmatpush1.msra.mxu0 %v2941
    %3249 = vmatprep.subr.mxu0 %v2948
    %3250 = vmatpush1.msra.mxu0 %v2947
    %3251 = vmatprep.subr.mxu0 %v2954
    %3252 = vmatpush1.msra.mxu0 %v2953
    %3253 = vmatprep.subr.mxu0 %v2960
    %3254 = vmatpush1.msra.mxu0 %v2959
    %3255 = vmatprep.subr.mxu0 %v2966
    %3256 = vmatpush1.msra.mxu0 %v2965
    %3257 = vmatprep.subr.mxu0 %v2972
    %3258 = vmatpush1.msra.mxu0 %v2971
    %3259 = vmatprep.subr.mxu0 %v2978
    %3260 = vmatpush1.msra.mxu0 %v2977
    %3261 = vmatprep.subr.mxu0 %v2984
    %3262 = vmatpush1.msra.mxu0 %v2983
    %3263 = vmatprep.subr.mxu0 %v2990
    %3264 = vmatpush1.msra.mxu0 %v2989
    %3265 = vmatprep.subr.mxu0 %v2996
    %3266 = vmatpush1.msra.mxu0 %v2995
    %3267 = vmatprep.subr.mxu0 %v3002
    %3268 = vmatpush1.msra.mxu0 %v3001
    %3269 = vmatprep.subr.mxu0 %v3008
    %3270 = vmatpush1.msra.mxu0 %v3007
    %3271 = vmatprep.subr.mxu0 %v3014
    %3272 = vmatpush1.msra.mxu0 %v3013
    %3273 = vmatprep.subr.mxu0 %v3020
    %3274 = vmatpush1.msra.mxu0 %v3019
    %3275 = vmatprep.subr.mxu0 %v3026
    %3276 = vmatpush1.msra.mxu0 %v3025
    %3277 = vmatprep.subr.mxu0 %v3032
    %3278 = vmatpush1.msra.mxu0 %v3031
    %3279 = vmatprep.subr.mxu0 %v3038
    %3280 = vmatpush1.msra.mxu0 %v3037
    %3281 = vmatprep.subr.mxu0 %v3044
    %3282 = vmatpush1.msra.mxu0 %v3043
    %3283 = vmatprep.subr.mxu0 %v3050
    %3284 = vmatpush1.msra.mxu0 %v3049
    %3285 = vmatprep.subr.mxu0 %v3056
    %3286 = vmatpush1.msra.mxu0 %v3055
    %3287 = vmatprep.subr.mxu0 %v3062
    %3288 = vmatpush1.msra.mxu0 %v3061
    %3289 = vmatprep.subr.mxu0 %v3068
    %3290 = vmatpush1.msra.mxu0 %v3067
    %3291 = vmatprep.subr.mxu0 %v3074
    %3292 = vmatpush1.msra.mxu0 %v3073
    %3293 = vmatprep.subr.mxu0 %v3080
    %3294 = vmatpush1.msra.mxu0 %v3079
    %3295 = vmatprep.subr.mxu0 %v3086
    %3296 = vmatpush1.msra.mxu0 %v3085
    %3297 = vmatprep.subr.mxu0 %v3092
    %3298 = vmatpush1.msra.mxu0 %v3091
    %3299 = vmatprep.mubr.f32.mxu0 %v2890
    %3300 = vmatmul.mubr.f32.gmra.mrb[0].mxu0 %v2889
    %v3301 = vpop.f32.mrb[0].mxu0
    %v3302 = vadd.f32 0.0, %v3301
    %v3303 = vpop.f32.mrb[0].mxu0
    %v3304 = vadd.f32 0.0, %v3303
    %3305 = vdwg.mxu0
    %v3306 = vadd.f32 %v2895, %v3160
    %v3307 = vadd.f32 %v2896, %v3162
    %v3308 = vadd.f32 %v2897, %v3231
    %v3309 = vadd.f32 %v2898, %v3233
    %v3310 = vxor.u32 %v3306, 2147483648
    %v3311 = vxor.u32 %v3307, 2147483648
    %v3312 = vxor.u32 %v3308, 2147483648
    %v3313 = vxor.u32 %v3309, 2147483648
    %v3314 = vmul.f32 %v3310, 1.442695
    %v3315 = vpow.pop %v3314
    %v3316 = vmul.f32 %v3311, 1.442695
    %v3317 = vpow.pop %v3316
    %v3318 = vmul.f32 %v3312, 1.442695
    %v3319 = vpow.pop %v3318
    %v3320 = vmul.f32 %v3313, 1.442695
    %v3321 = vpow.pop %v3320
    %v3322 = vadd.f32 %v3315, 1.0
    %v3323 = vadd.f32 %v3317, 1.0
    %v3324 = vadd.f32 %v3319, 1.0
    %v3325 = vadd.f32 %v3321, 1.0
    %v3326 = vrcp.pop %v3322
    %v3327 = vmul.f32 1.0, %v3326
    %v3328 = vrcp.pop %v3323
    %v3329 = vmul.f32 1.0, %v3328
    %v3330 = vrcp.pop %v3324
    %v3331 = vmul.f32 1.0, %v3330
    %v3332 = vrcp.pop %v3325
    %v3333 = vmul.f32 1.0, %v3332
    %v3334 = vld [vmem:[%s3] sm:$0x3]
    %v3336 = vlaneseq
    %v3337 = vshrl.u32 %v3336, 7
    %v3338 = vsub.s32 0, %v3337
    %v3339 = vrot.slane %v3334, %v3338
    %v3340 = vlaneseq
    %v3341 = vshrl.u32 %v3340, 7
    %v3342 = vsub.s32 1, %v3341
    %v3343 = vrot.slane %v3334, %v3342
    %v3346 = vadd.f32 %v3302, %v3339
    %v3347 = vadd.f32 %v3304, %v3343
    %v3348 = vmul.f32 %v3327, %v3346
    %v3349 = vmul.f32 %v3329, %v3347
    %v3350 = vadd.f32 %v2899, %v3348
    %v3351 = vadd.f32 %v2900, %v3349
    %v3352 = vtanh.pop %v3350
    %v3353 = vtanh.pop %v3351
    %v3354 = vsub.f32 1.0, %v3331
    %v3355 = vsub.f32 1.0, %v3333
    %v3356 = vmul.f32 %v3354, %v3352
    %v3357 = vmul.f32 %v3355, %v3353
    %v3358 = vmul.f32 %v3331, %v2889
    %v3359 = vmul.f32 %v3333, %v2890
    %v3360 = vadd.f32 %v3356, %v3358
    %v3361 = vadd.f32 %v3357, %v3359
    %s3362 = scalar_lea.vmem [#allocation9], 96
    %3363 = vst [vmem:[%s3362] sm:$0xff] %v3360
    %3364 = vst [vmem:[%s3362 + $0x8] sm:$0xff] %v3361
    %s3365 = scalar_lea.vmem [#allocation3], 336
    %v3366 = vld [vmem:[%s3365] sm:$0xff]
    %v3367 = vld [vmem:[%s3365 + $0x8] sm:$0xff]
    %v3368 = vld [vmem:[%s3365 + $0x10] sm:$0xff]
    %v3369 = vld [vmem:[%s3365 + $0x18] sm:$0xff]
    %v3370 = vld [vmem:[%s3365 + $0x20] sm:$0xff]
    %v3371 = vld [vmem:[%s3365 + $0x28] sm:$0xff]
    %v3372 = vld [vmem:[#allocation8] sm:$0xff]
    %v3373 = vld [vmem:[#allocation8 + $0x8] sm:$0xff]
    %v3374 = vld [vmem:[#allocation8 + $0x10] sm:$0xff]
    %v3375 = vld [vmem:[#allocation8 + $0x18] sm:$0xff]
    %v3376 = vld [vmem:[#allocation8 + $0x20] sm:$0xff]
    %v3377 = vld [vmem:[#allocation8 + $0x28] sm:$0xff]
    %v3378 = vld [vmem:[#allocation8 + $0x30] sm:$0xff]
    %v3379 = vld [vmem:[#allocation8 + $0x38] sm:$0xff]
    %v3380 = vld [vmem:[#allocation8 + $0x40] sm:$0xff]
    %v3381 = vld [vmem:[#allocation8 + $0x48] sm:$0xff]
    %v3382 = vld [vmem:[#allocation8 + $0x50] sm:$0xff]
    %v3383 = vld [vmem:[#allocation8 + $0x58] sm:$0xff]
    %v3384 = vld [vmem:[#allocation8 + $0x60] sm:$0xff]
    %v3385 = vld [vmem:[#allocation8 + $0x68] sm:$0xff]
    %v3386 = vld [vmem:[#allocation8 + $0x70] sm:$0xff]
    %v3387 = vld [vmem:[#allocation8 + $0x78] sm:$0xff]
    %v3388 = vld [vmem:[#allocation8 + $0x80] sm:$0xff]
    %v3389 = vld [vmem:[#allocation8 + $0x88] sm:$0xff]
    %v3390 = vld [vmem:[#allocation8 + $0x90] sm:$0xff]
    %v3391 = vld [vmem:[#allocation8 + $0x98] sm:$0xff]
    %v3392 = vld [vmem:[#allocation8 + $0xa0] sm:$0xff]
    %v3393 = vld [vmem:[#allocation8 + $0xa8] sm:$0xff]
    %v3394 = vld [vmem:[#allocation8 + $0xb0] sm:$0xff]
    %v3395 = vld [vmem:[#allocation8 + $0xb8] sm:$0xff]
    %v3396 = vld [vmem:[#allocation8 + $0xc0] sm:$0xff]
    %v3397 = vld [vmem:[#allocation8 + $0xc8] sm:$0xff]
    %v3398 = vld [vmem:[#allocation8 + $0xd0] sm:$0xff]
    %v3399 = vld [vmem:[#allocation8 + $0xd8] sm:$0xff]
    %v3400 = vld [vmem:[#allocation8 + $0xe0] sm:$0xff]
    %v3401 = vld [vmem:[#allocation8 + $0xe8] sm:$0xff]
    %v3402 = vld [vmem:[#allocation8 + $0xf0] sm:$0xff]
    %v3403 = vld [vmem:[#allocation8 + $0xf8] sm:$0xff]
    %v3404 = vld [vmem:[#allocation8 + $0x100] sm:$0xff]
    %v3405 = vld [vmem:[#allocation8 + $0x108] sm:$0xff]
    %v3406 = vld [vmem:[#allocation8 + $0x110] sm:$0xff]
    %v3407 = vld [vmem:[#allocation8 + $0x118] sm:$0xff]
    %v3408 = vld [vmem:[#allocation8 + $0x120] sm:$0xff]
    %v3409 = vld [vmem:[#allocation8 + $0x128] sm:$0xff]
    %v3410 = vld [vmem:[#allocation8 + $0x130] sm:$0xff]
    %v3411 = vld [vmem:[#allocation8 + $0x138] sm:$0xff]
    %v3412 = vld [vmem:[#allocation8 + $0x140] sm:$0xff]
    %v3413 = vld [vmem:[#allocation8 + $0x148] sm:$0xff]
    %v3414 = vld [vmem:[#allocation8 + $0x150] sm:$0xff]
    %v3415 = vld [vmem:[#allocation8 + $0x158] sm:$0xff]
    %v3416 = vld [vmem:[#allocation8 + $0x160] sm:$0xff]
    %v3417 = vld [vmem:[#allocation8 + $0x168] sm:$0xff]
    %v3418 = vld [vmem:[#allocation8 + $0x170] sm:$0xff]
    %v3419 = vld [vmem:[#allocation8 + $0x178] sm:$0xff]
    %v3420 = vld [vmem:[#allocation8 + $0x180] sm:$0xff]
    %v3421 = vld [vmem:[#allocation8 + $0x188] sm:$0xff]
    %v3422 = vld [vmem:[#allocation8 + $0x190] sm:$0xff]
    %v3423 = vld [vmem:[#allocation8 + $0x198] sm:$0xff]
    %v3424 = vld [vmem:[#allocation8 + $0x1a0] sm:$0xff]
    %v3425 = vld [vmem:[#allocation8 + $0x1a8] sm:$0xff]
    %v3426 = vld [vmem:[#allocation8 + $0x1b0] sm:$0xff]
    %v3427 = vld [vmem:[#allocation8 + $0x1b8] sm:$0xff]
    %v3428 = vld [vmem:[#allocation8 + $0x1c0] sm:$0xff]
    %v3429 = vld [vmem:[#allocation8 + $0x1c8] sm:$0xff]
    %v3430 = vld [vmem:[#allocation8 + $0x1d0] sm:$0xff]
    %v3431 = vld [vmem:[#allocation8 + $0x1d8] sm:$0xff]
    %v3432 = vld [vmem:[#allocation8 + $0x1e0] sm:$0xff]
    %v3433 = vld [vmem:[#allocation8 + $0x1e8] sm:$0xff]
    %v3434 = vld [vmem:[#allocation8 + $0x1f0] sm:$0xff]
    %v3435 = vld [vmem:[#allocation8 + $0x1f8] sm:$0xff]
    %v3436 = vld [vmem:[#allocation8 + $0x200] sm:$0xff]
    %v3437 = vld [vmem:[#allocation8 + $0x208] sm:$0xff]
    %v3438 = vld [vmem:[#allocation8 + $0x210] sm:$0xff]
    %v3439 = vld [vmem:[#allocation8 + $0x218] sm:$0xff]
    %v3440 = vld [vmem:[#allocation8 + $0x220] sm:$0xff]
    %v3441 = vld [vmem:[#allocation8 + $0x228] sm:$0xff]
    %v3442 = vld [vmem:[#allocation8 + $0x230] sm:$0xff]
    %v3443 = vld [vmem:[#allocation8 + $0x238] sm:$0xff]
    %v3444 = vld [vmem:[#allocation8 + $0x240] sm:$0xff]
    %v3445 = vld [vmem:[#allocation8 + $0x248] sm:$0xff]
    %v3446 = vld [vmem:[#allocation8 + $0x250] sm:$0xff]
    %v3447 = vld [vmem:[#allocation8 + $0x258] sm:$0xff]
    %v3448 = vld [vmem:[#allocation8 + $0x260] sm:$0xff]
    %v3449 = vld [vmem:[#allocation8 + $0x268] sm:$0xff]
    %v3450 = vld [vmem:[#allocation8 + $0x270] sm:$0xff]
    %v3451 = vld [vmem:[#allocation8 + $0x278] sm:$0xff]
    %v3452 = vld [vmem:[#allocation8 + $0x280] sm:$0xff]
    %v3453 = vld [vmem:[#allocation8 + $0x288] sm:$0xff]
    %v3454 = vld [vmem:[#allocation8 + $0x290] sm:$0xff]
    %v3455 = vld [vmem:[#allocation8 + $0x298] sm:$0xff]
    %v3456 = vld [vmem:[#allocation8 + $0x2a0] sm:$0xff]
    %v3457 = vld [vmem:[#allocation8 + $0x2a8] sm:$0xff]
    %v3458 = vld [vmem:[#allocation8 + $0x2b0] sm:$0xff]
    %v3459 = vld [vmem:[#allocation8 + $0x2b8] sm:$0xff]
    %v3460 = vld [vmem:[#allocation8 + $0x2c0] sm:$0xff]
    %v3461 = vld [vmem:[#allocation8 + $0x2c8] sm:$0xff]
    %v3462 = vld [vmem:[#allocation8 + $0x2d0] sm:$0xff]
    %v3463 = vld [vmem:[#allocation8 + $0x2d8] sm:$0xff]
    %v3464 = vld [vmem:[#allocation8 + $0x2e0] sm:$0xff]
    %v3465 = vld [vmem:[#allocation8 + $0x2e8] sm:$0xff]
    %v3466 = vld [vmem:[#allocation8 + $0x2f0] sm:$0xff]
    %v3467 = vld [vmem:[#allocation8 + $0x2f8] sm:$0xff]
    %v3468 = vld [vmem:[#allocation8 + $0x300] sm:$0xff]
    %v3469 = vld [vmem:[#allocation8 + $0x308] sm:$0xff]
    %v3470 = vld [vmem:[#allocation8 + $0x310] sm:$0xff]
    %v3471 = vld [vmem:[#allocation8 + $0x318] sm:$0xff]
    %v3472 = vld [vmem:[#allocation8 + $0x320] sm:$0xff]
    %v3473 = vld [vmem:[#allocation8 + $0x328] sm:$0xff]
    %v3474 = vld [vmem:[#allocation8 + $0x330] sm:$0xff]
    %v3475 = vld [vmem:[#allocation8 + $0x338] sm:$0xff]
    %v3476 = vld [vmem:[#allocation8 + $0x340] sm:$0xff]
    %v3477 = vld [vmem:[#allocation8 + $0x348] sm:$0xff]
    %v3478 = vld [vmem:[#allocation8 + $0x350] sm:$0xff]
    %v3479 = vld [vmem:[#allocation8 + $0x358] sm:$0xff]
    %v3480 = vld [vmem:[#allocation8 + $0x360] sm:$0xff]
    %v3481 = vld [vmem:[#allocation8 + $0x368] sm:$0xff]
    %v3482 = vld [vmem:[#allocation8 + $0x370] sm:$0xff]
    %v3483 = vld [vmem:[#allocation8 + $0x378] sm:$0xff]
    %v3484 = vld [vmem:[#allocation8 + $0x380] sm:$0xff]
    %v3485 = vld [vmem:[#allocation8 + $0x388] sm:$0xff]
    %v3486 = vld [vmem:[#allocation8 + $0x390] sm:$0xff]
    %v3487 = vld [vmem:[#allocation8 + $0x398] sm:$0xff]
    %v3488 = vld [vmem:[#allocation8 + $0x3a0] sm:$0xff]
    %v3489 = vld [vmem:[#allocation8 + $0x3a8] sm:$0xff]
    %v3490 = vld [vmem:[#allocation8 + $0x3b0] sm:$0xff]
    %v3491 = vld [vmem:[#allocation8 + $0x3b8] sm:$0xff]
    %v3492 = vld [vmem:[#allocation8 + $0x3c0] sm:$0xff]
    %v3493 = vld [vmem:[#allocation8 + $0x3c8] sm:$0xff]
    %v3494 = vld [vmem:[#allocation8 + $0x3d0] sm:$0xff]
    %v3495 = vld [vmem:[#allocation8 + $0x3d8] sm:$0xff]
    %v3496 = vld [vmem:[#allocation8 + $0x3e0] sm:$0xff]
    %v3497 = vld [vmem:[#allocation8 + $0x3e8] sm:$0xff]
    %v3498 = vld [vmem:[#allocation8 + $0x3f0] sm:$0xff]
    %v3499 = vld [vmem:[#allocation8 + $0x3f8] sm:$0xff]
    %v3500 = vld [vmem:[#allocation8 + $0x400] sm:$0xff]
    %v3501 = vld [vmem:[#allocation8 + $0x408] sm:$0xff]
    %v3502 = vld [vmem:[#allocation8 + $0x410] sm:$0xff]
    %v3503 = vld [vmem:[#allocation8 + $0x418] sm:$0xff]
    %v3504 = vld [vmem:[#allocation8 + $0x420] sm:$0xff]
    %v3505 = vld [vmem:[#allocation8 + $0x428] sm:$0xff]
    %v3506 = vld [vmem:[#allocation8 + $0x430] sm:$0xff]
    %v3507 = vld [vmem:[#allocation8 + $0x438] sm:$0xff]
    %v3508 = vld [vmem:[#allocation8 + $0x440] sm:$0xff]
    %v3509 = vld [vmem:[#allocation8 + $0x448] sm:$0xff]
    %v3510 = vld [vmem:[#allocation8 + $0x450] sm:$0xff]
    %v3511 = vld [vmem:[#allocation8 + $0x458] sm:$0xff]
    %v3512 = vld [vmem:[#allocation8 + $0x460] sm:$0xff]
    %v3513 = vld [vmem:[#allocation8 + $0x468] sm:$0xff]
    %v3514 = vld [vmem:[#allocation8 + $0x470] sm:$0xff]
    %v3515 = vld [vmem:[#allocation8 + $0x478] sm:$0xff]
    %v3516 = vld [vmem:[#allocation8 + $0x480] sm:$0xff]
    %v3517 = vld [vmem:[#allocation8 + $0x488] sm:$0xff]
    %v3518 = vld [vmem:[#allocation8 + $0x490] sm:$0xff]
    %v3519 = vld [vmem:[#allocation8 + $0x498] sm:$0xff]
    %v3520 = vld [vmem:[#allocation8 + $0x4a0] sm:$0xff]
    %v3521 = vld [vmem:[#allocation8 + $0x4a8] sm:$0xff]
    %v3522 = vld [vmem:[#allocation8 + $0x4b0] sm:$0xff]
    %v3523 = vld [vmem:[#allocation8 + $0x4b8] sm:$0xff]
    %v3524 = vld [vmem:[#allocation8 + $0x4c0] sm:$0xff]
    %v3525 = vld [vmem:[#allocation8 + $0x4c8] sm:$0xff]
    %v3526 = vld [vmem:[#allocation8 + $0x4d0] sm:$0xff]
    %v3527 = vld [vmem:[#allocation8 + $0x4d8] sm:$0xff]
    %v3528 = vld [vmem:[#allocation8 + $0x4e0] sm:$0xff]
    %v3529 = vld [vmem:[#allocation8 + $0x4e8] sm:$0xff]
    %v3530 = vld [vmem:[#allocation8 + $0x4f0] sm:$0xff]
    %v3531 = vld [vmem:[#allocation8 + $0x4f8] sm:$0xff]
    %v3532 = vld [vmem:[#allocation8 + $0x500] sm:$0xff]
    %v3533 = vld [vmem:[#allocation8 + $0x508] sm:$0xff]
    %v3534 = vld [vmem:[#allocation8 + $0x510] sm:$0xff]
    %v3535 = vld [vmem:[#allocation8 + $0x518] sm:$0xff]
    %v3536 = vld [vmem:[#allocation8 + $0x520] sm:$0xff]
    %v3537 = vld [vmem:[#allocation8 + $0x528] sm:$0xff]
    %v3538 = vld [vmem:[#allocation8 + $0x530] sm:$0xff]
    %v3539 = vld [vmem:[#allocation8 + $0x538] sm:$0xff]
    %v3540 = vld [vmem:[#allocation8 + $0x540] sm:$0xff]
    %v3541 = vld [vmem:[#allocation8 + $0x548] sm:$0xff]
    %v3542 = vld [vmem:[#allocation8 + $0x550] sm:$0xff]
    %v3543 = vld [vmem:[#allocation8 + $0x558] sm:$0xff]
    %v3544 = vld [vmem:[#allocation8 + $0x560] sm:$0xff]
    %v3545 = vld [vmem:[#allocation8 + $0x568] sm:$0xff]
    %v3546 = vld [vmem:[#allocation8 + $0x570] sm:$0xff]
    %v3547 = vld [vmem:[#allocation8 + $0x578] sm:$0xff]
    %v3548 = vld [vmem:[#allocation8 + $0x580] sm:$0xff]
    %v3549 = vld [vmem:[#allocation8 + $0x588] sm:$0xff]
    %v3550 = vld [vmem:[#allocation8 + $0x590] sm:$0xff]
    %v3551 = vld [vmem:[#allocation8 + $0x598] sm:$0xff]
    %v3552 = vld [vmem:[#allocation8 + $0x5a0] sm:$0xff]
    %v3553 = vld [vmem:[#allocation8 + $0x5a8] sm:$0xff]
    %v3554 = vld [vmem:[#allocation8 + $0x5b0] sm:$0xff]
    %v3555 = vld [vmem:[#allocation8 + $0x5b8] sm:$0xff]
    %v3556 = vld [vmem:[#allocation8 + $0x5c0] sm:$0xff]
    %v3557 = vld [vmem:[#allocation8 + $0x5c8] sm:$0xff]
    %v3558 = vld [vmem:[#allocation8 + $0x5d0] sm:$0xff]
    %v3559 = vld [vmem:[#allocation8 + $0x5d8] sm:$0xff]
    %v3560 = vld [vmem:[#allocation8 + $0x5e0] sm:$0xff]
    %v3561 = vld [vmem:[#allocation8 + $0x5e8] sm:$0xff]
    %v3562 = vld [vmem:[#allocation8 + $0x5f0] sm:$0xff]
    %v3563 = vld [vmem:[#allocation8 + $0x5f8] sm:$0xff]
    %3564 = vmatprep.subr.mxu0 %v3373
    %3565 = vmatpush1.msra.mxu0 %v3372
    %3566 = vmatprep.subr.mxu0 %v3379
    %3567 = vmatpush1.msra.mxu0 %v3378
    %3568 = vmatprep.subr.mxu0 %v3385
    %3569 = vmatpush1.msra.mxu0 %v3384
    %3570 = vmatprep.subr.mxu0 %v3391
    %3571 = vmatpush1.msra.mxu0 %v3390
    %3572 = vmatprep.subr.mxu0 %v3397
    %3573 = vmatpush1.msra.mxu0 %v3396
    %3574 = vmatprep.subr.mxu0 %v3403
    %3575 = vmatpush1.msra.mxu0 %v3402
    %3576 = vmatprep.subr.mxu0 %v3409
    %3577 = vmatpush1.msra.mxu0 %v3408
    %3578 = vmatprep.subr.mxu0 %v3415
    %3579 = vmatpush1.msra.mxu0 %v3414
    %3580 = vmatprep.subr.mxu0 %v3421
    %3581 = vmatpush1.msra.mxu0 %v3420
    %3582 = vmatprep.subr.mxu0 %v3427
    %3583 = vmatpush1.msra.mxu0 %v3426
    %3584 = vmatprep.subr.mxu0 %v3433
    %3585 = vmatpush1.msra.mxu0 %v3432
    %3586 = vmatprep.subr.mxu0 %v3439
    %3587 = vmatpush1.msra.mxu0 %v3438
    %3588 = vmatprep.subr.mxu0 %v3445
    %3589 = vmatpush1.msra.mxu0 %v3444
    %3590 = vmatprep.subr.mxu0 %v3451
    %3591 = vmatpush1.msra.mxu0 %v3450
    %3592 = vmatprep.subr.mxu0 %v3457
    %3593 = vmatpush1.msra.mxu0 %v3456
    %3594 = vmatprep.subr.mxu0 %v3463
    %3595 = vmatpush1.msra.mxu0 %v3462
    %3596 = vmatprep.subr.mxu0 %v3469
    %3597 = vmatpush1.msra.mxu0 %v3468
    %3598 = vmatprep.subr.mxu0 %v3475
    %3599 = vmatpush1.msra.mxu0 %v3474
    %3600 = vmatprep.subr.mxu0 %v3481
    %3601 = vmatpush1.msra.mxu0 %v3480
    %3602 = vmatprep.subr.mxu0 %v3487
    %3603 = vmatpush1.msra.mxu0 %v3486
    %3604 = vmatprep.subr.mxu0 %v3493
    %3605 = vmatpush1.msra.mxu0 %v3492
    %3606 = vmatprep.subr.mxu0 %v3499
    %3607 = vmatpush1.msra.mxu0 %v3498
    %3608 = vmatprep.subr.mxu0 %v3505
    %3609 = vmatpush1.msra.mxu0 %v3504
    %3610 = vmatprep.subr.mxu0 %v3511
    %3611 = vmatpush1.msra.mxu0 %v3510
    %3612 = vmatprep.subr.mxu0 %v3517
    %3613 = vmatpush1.msra.mxu0 %v3516
    %3614 = vmatprep.subr.mxu0 %v3523
    %3615 = vmatpush1.msra.mxu0 %v3522
    %3616 = vmatprep.subr.mxu0 %v3529
    %3617 = vmatpush1.msra.mxu0 %v3528
    %3618 = vmatprep.subr.mxu0 %v3535
    %3619 = vmatpush1.msra.mxu0 %v3534
    %3620 = vmatprep.subr.mxu0 %v3541
    %3621 = vmatpush1.msra.mxu0 %v3540
    %3622 = vmatprep.subr.mxu0 %v3547
    %3623 = vmatpush1.msra.mxu0 %v3546
    %3624 = vmatprep.subr.mxu0 %v3553
    %3625 = vmatpush1.msra.mxu0 %v3552
    %3626 = vmatprep.subr.mxu0 %v3559
    %3627 = vmatpush1.msra.mxu0 %v3558
    %3628 = vmatprep.mubr.f32.mxu0 %v3361
    %3629 = vmatmul.mubr.f32.gmra.mrb[0].mxu0 %v3360
    %v3630 = vpop.f32.mrb[0].mxu0
    %v3631 = vadd.f32 0.0, %v3630
    %v3632 = vpop.f32.mrb[0].mxu0
    %v3633 = vadd.f32 0.0, %v3632
    %3634 = vdwg.mxu0
    %3635 = vmatprep.subr.mxu0 %v3375
    %3636 = vmatpush1.msra.mxu0 %v3374
    %3637 = vmatprep.subr.mxu0 %v3381
    %3638 = vmatpush1.msra.mxu0 %v3380
    %3639 = vmatprep.subr.mxu0 %v3387
    %3640 = vmatpush1.msra.mxu0 %v3386
    %3641 = vmatprep.subr.mxu0 %v3393
    %3642 = vmatpush1.msra.mxu0 %v3392
    %3643 = vmatprep.subr.mxu0 %v3399
    %3644 = vmatpush1.msra.mxu0 %v3398
    %3645 = vmatprep.subr.mxu0 %v3405
    %3646 = vmatpush1.msra.mxu0 %v3404
    %3647 = vmatprep.subr.mxu0 %v3411
    %3648 = vmatpush1.msra.mxu0 %v3410
    %3649 = vmatprep.subr.mxu0 %v3417
    %3650 = vmatpush1.msra.mxu0 %v3416
    %3651 = vmatprep.subr.mxu0 %v3423
    %3652 = vmatpush1.msra.mxu0 %v3422
    %3653 = vmatprep.subr.mxu0 %v3429
    %3654 = vmatpush1.msra.mxu0 %v3428
    %3655 = vmatprep.subr.mxu0 %v3435
    %3656 = vmatpush1.msra.mxu0 %v3434
    %3657 = vmatprep.subr.mxu0 %v3441
    %3658 = vmatpush1.msra.mxu0 %v3440
    %3659 = vmatprep.subr.mxu0 %v3447
    %3660 = vmatpush1.msra.mxu0 %v3446
    %3661 = vmatprep.subr.mxu0 %v3453
    %3662 = vmatpush1.msra.mxu0 %v3452
    %3663 = vmatprep.subr.mxu0 %v3459
    %3664 = vmatpush1.msra.mxu0 %v3458
    %3665 = vmatprep.subr.mxu0 %v3465
    %3666 = vmatpush1.msra.mxu0 %v3464
    %3667 = vmatprep.subr.mxu0 %v3471
    %3668 = vmatpush1.msra.mxu0 %v3470
    %3669 = vmatprep.subr.mxu0 %v3477
    %3670 = vmatpush1.msra.mxu0 %v3476
    %3671 = vmatprep.subr.mxu0 %v3483
    %3672 = vmatpush1.msra.mxu0 %v3482
    %3673 = vmatprep.subr.mxu0 %v3489
    %3674 = vmatpush1.msra.mxu0 %v3488
    %3675 = vmatprep.subr.mxu0 %v3495
    %3676 = vmatpush1.msra.mxu0 %v3494
    %3677 = vmatprep.subr.mxu0 %v3501
    %3678 = vmatpush1.msra.mxu0 %v3500
    %3679 = vmatprep.subr.mxu0 %v3507
    %3680 = vmatpush1.msra.mxu0 %v3506
    %3681 = vmatprep.subr.mxu0 %v3513
    %3682 = vmatpush1.msra.mxu0 %v3512
    %3683 = vmatprep.subr.mxu0 %v3519
    %3684 = vmatpush1.msra.mxu0 %v3518
    %3685 = vmatprep.subr.mxu0 %v3525
    %3686 = vmatpush1.msra.mxu0 %v3524
    %3687 = vmatprep.subr.mxu0 %v3531
    %3688 = vmatpush1.msra.mxu0 %v3530
    %3689 = vmatprep.subr.mxu0 %v3537
    %3690 = vmatpush1.msra.mxu0 %v3536
    %3691 = vmatprep.subr.mxu0 %v3543
    %3692 = vmatpush1.msra.mxu0 %v3542
    %3693 = vmatprep.subr.mxu0 %v3549
    %3694 = vmatpush1.msra.mxu0 %v3548
    %3695 = vmatprep.subr.mxu0 %v3555
    %3696 = vmatpush1.msra.mxu0 %v3554
    %3697 = vmatprep.subr.mxu0 %v3561
    %3698 = vmatpush1.msra.mxu0 %v3560
    %3699 = vmatprep.mubr.f32.mxu0 %v3361
    %3700 = vmatmul.mubr.f32.gmra.mrb[0].mxu0 %v3360
    %v3701 = vpop.f32.mrb[0].mxu0
    %v3702 = vadd.f32 0.0, %v3701
    %v3703 = vpop.f32.mrb[0].mxu0
    %v3704 = vadd.f32 0.0, %v3703
    %3705 = vdwg.mxu0
    %3706 = vmatprep.subr.mxu0 %v3377
    %3707 = vmatpush1.msra.mxu0 %v3376
    %3708 = vmatprep.subr.mxu0 %v3383
    %3709 = vmatpush1.msra.mxu0 %v3382
    %3710 = vmatprep.subr.mxu0 %v3389
    %3711 = vmatpush1.msra.mxu0 %v3388
    %3712 = vmatprep.subr.mxu0 %v3395
    %3713 = vmatpush1.msra.mxu0 %v3394
    %3714 = vmatprep.subr.mxu0 %v3401
    %3715 = vmatpush1.msra.mxu0 %v3400
    %3716 = vmatprep.subr.mxu0 %v3407
    %3717 = vmatpush1.msra.mxu0 %v3406
    %3718 = vmatprep.subr.mxu0 %v3413
    %3719 = vmatpush1.msra.mxu0 %v3412
    %3720 = vmatprep.subr.mxu0 %v3419
    %3721 = vmatpush1.msra.mxu0 %v3418
    %3722 = vmatprep.subr.mxu0 %v3425
    %3723 = vmatpush1.msra.mxu0 %v3424
    %3724 = vmatprep.subr.mxu0 %v3431
    %3725 = vmatpush1.msra.mxu0 %v3430
    %3726 = vmatprep.subr.mxu0 %v3437
    %3727 = vmatpush1.msra.mxu0 %v3436
    %3728 = vmatprep.subr.mxu0 %v3443
    %3729 = vmatpush1.msra.mxu0 %v3442
    %3730 = vmatprep.subr.mxu0 %v3449
    %3731 = vmatpush1.msra.mxu0 %v3448
    %3732 = vmatprep.subr.mxu0 %v3455
    %3733 = vmatpush1.msra.mxu0 %v3454
    %3734 = vmatprep.subr.mxu0 %v3461
    %3735 = vmatpush1.msra.mxu0 %v3460
    %3736 = vmatprep.subr.mxu0 %v3467
    %3737 = vmatpush1.msra.mxu0 %v3466
    %3738 = vmatprep.subr.mxu0 %v3473
    %3739 = vmatpush1.msra.mxu0 %v3472
    %3740 = vmatprep.subr.mxu0 %v3479
    %3741 = vmatpush1.msra.mxu0 %v3478
    %3742 = vmatprep.subr.mxu0 %v3485
    %3743 = vmatpush1.msra.mxu0 %v3484
    %3744 = vmatprep.subr.mxu0 %v3491
    %3745 = vmatpush1.msra.mxu0 %v3490
    %3746 = vmatprep.subr.mxu0 %v3497
    %3747 = vmatpush1.msra.mxu0 %v3496
    %3748 = vmatprep.subr.mxu0 %v3503
    %3749 = vmatpush1.msra.mxu0 %v3502
    %3750 = vmatprep.subr.mxu0 %v3509
    %3751 = vmatpush1.msra.mxu0 %v3508
    %3752 = vmatprep.subr.mxu0 %v3515
    %3753 = vmatpush1.msra.mxu0 %v3514
    %3754 = vmatprep.subr.mxu0 %v3521
    %3755 = vmatpush1.msra.mxu0 %v3520
    %3756 = vmatprep.subr.mxu0 %v3527
    %3757 = vmatpush1.msra.mxu0 %v3526
    %3758 = vmatprep.subr.mxu0 %v3533
    %3759 = vmatpush1.msra.mxu0 %v3532
    %3760 = vmatprep.subr.mxu0 %v3539
    %3761 = vmatpush1.msra.mxu0 %v3538
    %3762 = vmatprep.subr.mxu0 %v3545
    %3763 = vmatpush1.msra.mxu0 %v3544
    %3764 = vmatprep.subr.mxu0 %v3551
    %3765 = vmatpush1.msra.mxu0 %v3550
    %3766 = vmatprep.subr.mxu0 %v3557
    %3767 = vmatpush1.msra.mxu0 %v3556
    %3768 = vmatprep.subr.mxu0 %v3563
    %3769 = vmatpush1.msra.mxu0 %v3562
    %3770 = vmatprep.mubr.f32.mxu0 %v3361
    %3771 = vmatmul.mubr.f32.gmra.mrb[0].mxu0 %v3360
    %v3772 = vpop.f32.mrb[0].mxu0
    %v3773 = vadd.f32 0.0, %v3772
    %v3774 = vpop.f32.mrb[0].mxu0
    %v3775 = vadd.f32 0.0, %v3774
    %3776 = vdwg.mxu0
    %v3777 = vadd.f32 %v3366, %v3631
    %v3778 = vadd.f32 %v3367, %v3633
    %v3779 = vadd.f32 %v3368, %v3702
    %v3780 = vadd.f32 %v3369, %v3704
    %v3781 = vxor.u32 %v3777, 2147483648
    %v3782 = vxor.u32 %v3778, 2147483648
    %v3783 = vxor.u32 %v3779, 2147483648
    %v3784 = vxor.u32 %v3780, 2147483648
    %v3785 = vmul.f32 %v3781, 1.442695
    %v3786 = vpow.pop %v3785
    %v3787 = vmul.f32 %v3782, 1.442695
    %v3788 = vpow.pop %v3787
    %v3789 = vmul.f32 %v3783, 1.442695
    %v3790 = vpow.pop %v3789
    %v3791 = vmul.f32 %v3784, 1.442695
    %v3792 = vpow.pop %v3791
    %v3793 = vadd.f32 %v3786, 1.0
    %v3794 = vadd.f32 %v3788, 1.0
    %v3795 = vadd.f32 %v3790, 1.0
    %v3796 = vadd.f32 %v3792, 1.0
    %v3797 = vrcp.pop %v3793
    %v3798 = vmul.f32 1.0, %v3797
    %v3799 = vrcp.pop %v3794
    %v3800 = vmul.f32 1.0, %v3799
    %v3801 = vrcp.pop %v3795
    %v3802 = vmul.f32 1.0, %v3801
    %v3803 = vrcp.pop %v3796
    %v3804 = vmul.f32 1.0, %v3803
    %v3805 = vld [vmem:[%s3] sm:$0x3]
    %v3807 = vlaneseq
    %v3808 = vshrl.u32 %v3807, 7
    %v3809 = vsub.s32 0, %v3808
    %v3810 = vrot.slane %v3805, %v3809
    %v3811 = vlaneseq
    %v3812 = vshrl.u32 %v3811, 7
    %v3813 = vsub.s32 1, %v3812
    %v3814 = vrot.slane %v3805, %v3813
    %v3817 = vadd.f32 %v3773, %v3810
    %v3818 = vadd.f32 %v3775, %v3814
    %v3819 = vmul.f32 %v3798, %v3817
    %v3820 = vmul.f32 %v3800, %v3818
    %v3821 = vadd.f32 %v3370, %v3819
    %v3822 = vadd.f32 %v3371, %v3820
    %v3823 = vtanh.pop %v3821
    %v3824 = vtanh.pop %v3822
    %v3825 = vsub.f32 1.0, %v3802
    %v3826 = vsub.f32 1.0, %v3804
    %v3827 = vmul.f32 %v3825, %v3823
    %v3828 = vmul.f32 %v3826, %v3824
    %v3829 = vmul.f32 %v3802, %v3360
    %v3830 = vmul.f32 %v3804, %v3361
    %v3831 = vadd.f32 %v3827, %v3829
    %v3832 = vadd.f32 %v3828, %v3830
    %s3833 = scalar_lea.vmem [#allocation9], 112
    %3834 = vst [vmem:[%s3833] sm:$0xff] %v3831
    %3835 = vst [vmem:[%s3833 + $0x8] sm:$0xff] %v3832
    %3836 = vst [vmem:[#allocation2] sm:$0xff] %v3831
    %3837 = vst [vmem:[#allocation2 + $0x8] sm:$0xff] %v3832
    %3838 = vst [vmem:[#allocation10] sm:$0xff] %v3831
    %3839 = vst [vmem:[#allocation10 + $0x8] sm:$0xff] %v3832
    // Predicated region
    $region34: #{tpu_custom_call.1} parent=1 // pred_check
      _
    $region35: #{tpu_custom_call.1} parent=1 // pred_check_branch
      %3841 = sbr.rel (0) target = $region37
    $region36: #{tpu_custom_call.1} parent=1 // pred_region
      %s3843 = ssub.s32 2048, 2048
      %3844 = vsyncadd [#allocation5], %s3843
      %s3845 = sshll.u32 [#allocation9], 4
      %s3846 = int_to_ptr.vmem [resolvable:$true] %s3845
      %3851 = dma.vmem_to_hbm [thread:$0]  %s3846, 2048, %s4, [#allocation5], 256, 256, 16
    $region37: #{tpu_custom_call.1} parent=1 // pred_fallthru
      _
    // Predicated region
    $region38: #{tpu_custom_call.1} parent=1 // pred_check
      _
    $region39: #{tpu_custom_call.1} parent=1 // pred_check_branch
      %3853 = sbr.rel (0) target = $region41
    $region40: #{tpu_custom_call.1} parent=1 // pred_region
      %s3855 = ssub.s32 256, 256
      %3856 = vsyncadd [#allocation11], %s3855
      %s3858 = sshll.u32 [#allocation10], 4
      %s3859 = int_to_ptr.vmem [resolvable:$true] %s3858
      %3861 = dma.vmem_to_hbm [thread:$0]  %s3859, 256, %s5, [#allocation11]
    $region41: #{tpu_custom_call.1} parent=1 // pred_fallthru
      _
    // Predicated region
    $region42: #{tpu_custom_call.1} parent=1 // pred_check
      _
    $region43: #{tpu_custom_call.1} parent=1 // pred_check_branch
      %3863 = sbr.rel (0) target = $region45
    $region44: #{tpu_custom_call.1} parent=1 // pred_region
      %3864 = dma.done [#allocation5], 2048
    $region45: #{tpu_custom_call.1} parent=1 // pred_fallthru
      _
    // Predicated region
    $region46: #{tpu_custom_call.1} parent=1 // pred_check
      _
    $region47: #{tpu_custom_call.1} parent=1 // pred_check_branch
      %3866 = sbr.rel (0) target = $region49
    $region48: #{tpu_custom_call.1} parent=1 // pred_region
      %3867 = dma.done [#allocation11], 256
    $region49: #{tpu_custom_call.1} parent=1 // pred_fallthru
      _
    %3868 = vsyncpa [#allocation4], 1
    %3869 = vsyncpa [#allocation7], 1
    %3870 = vsyncpa [#allocation5], 1
    %3871 = vsyncpa [#allocation11], 1

</llo_original>
